<compile_context>
chip_gen: v7x
topology: tpu7x:2x2x1
jax: 0.10.0
libtpu: 0.0.40
codegen_flags: <defaults>
</compile_context>

<pallas_src>
import functools
import math

import jax
import jax.numpy as jnp
from jax.experimental import pallas as pl
from jax.experimental.pallas import tpu as pltpu

# ----------------------------- configuration --------------------------------
BATCH = 2
IN_CH = 3
IMG_H = IMG_W = 16
POOL_DIMS = (16, 32)        # synthetic encoder output channels per pool layer
POOL_FACTORS = (2, 4)       # spatial downsample per pool layer -> 8x8, 4x4
COND_VEC = 32               # condition_vector (must be divisible by 4)
COUPLING_BLOCKS = 4
CLAMP_ALPHA = 1.9
LANE_TILE = 128             # fibers per grid step (fibers live on the lane axis)
CIN_PAD = 8                 # pad 3 input channels to 8 for TPU-friendly matmul

# padded (shared) flow dimensions so every layer runs the same static kernel code
C_PAD = max(POOL_DIMS)              # 32
S1_PAD = C_PAD - C_PAD // 2         # 16
S2_PAD = C_PAD // 2                 # 16
D_IN_PAD = S1_PAD + COND_VEC        # 48  (subnet input = [x1_pad ; cond])
HID_PAD = 2 * D_IN_PAD              # 96
D_OUT_PAD = 2 * S2_PAD              # 32


def _cdiv(a, b):
    return -(-a // b)


# ----------------------------- Pallas kernel ---------------------------------
def _cflow_fused_kernel(lids_ref,                       # scalar prefetch (SMEM)
                        x_ref, c_ref, ew_ref, eb_ref,
                        w1_ref, b1_ref, w2_ref, b2_ref,
                        wps1_ref, wps2_ref, pb_ref,
                        out_ref, xc_ref,
                        *, n_blocks, s1, s2, clamp, layer_consts):
    """Fused CFLOW: encoder 1x1-conv+ReLU -> coupling blocks -> get_logp / dim.

    Channels live on sublanes, fibers on lanes (x is (C, FB) with FB=128).
    Mirrors FrEIA AllInOneBlock (non-reverse, hard permutation, SOFTPLUS global
    affine) with all parameter-only math hoisted to init: global scale folded
    into the permutation matrix (wps1|wps2, split along its contraction),
    global offset folded into a permutation bias, FrEIA's 0.1 output scaling
    folded into w2/b2, and the per-layer get_logp constants folded in here.
    """
    layer = lids_ref[pl.program_id(0)]

    # park the condition fibers in the persistent subnet-input buffer: cast ONCE
    xc_ref[s1:, :] = c_ref[...].astype(jnp.bfloat16)

    # fused synthetic-encoder 1x1 conv + ReLU: (C, Cin) @ (Cin, FB)
    x = jnp.maximum(
        jnp.dot(ew_ref[0], x_ref[...].astype(jnp.bfloat16),
                preferred_element_type=jnp.float32) + eb_ref[0],
        0.0,
    )                                                    # (C_PAD, FB) f32
    logdet = jnp.zeros((1, x.shape[1]), jnp.float32)     # (1, FB)

    for k in range(n_blocks):                            # static unroll
        x1 = x[:s1, :]
        x2 = x[s1:, :]

        # subnet_fc(concat([x1, cond])) without a concat: only x1 rows rewritten
        xc_ref[:s1, :] = x1.astype(jnp.bfloat16)
        h = jnp.maximum(
            jnp.dot(w1_ref[k], xc_ref[...], preferred_element_type=jnp.float32)
            + b1_ref[k],
            0.0,
        )
        a = (jnp.dot(w2_ref[k], h.astype(jnp.bfloat16),
                     preferred_element_type=jnp.float32)
             + b2_ref[k])                                # FrEIA 0.1 folded at init

        # affine coupling on x2
        sub_jac = clamp * jnp.tanh(a[:s2, :])
        x2 = x2 * jnp.exp(sub_jac) + a[s2:, :]
        logdet = logdet + jnp.sum(sub_jac, axis=0, keepdims=True)

        # global affine + hard permutation.  Scale folded into wps, offset into
        # pb; contraction split so the bf16 x1 already stored in xc is reused
        # (no concatenate, no second cast of x1).
        x = (jnp.dot(wps1_ref[k], xc_ref[:s1, :], preferred_element_type=jnp.float32)
             + jnp.dot(wps2_ref[k], x2.astype(jnp.bfloat16),
                       preferred_element_type=jnp.float32)
             + pb_ref[k])

    # get_logp(C, p_u, logdet) / C with per-layer constants selected on layer id
    c_add = jnp.float32(layer_consts[0][0])
    inv_n = jnp.float32(layer_consts[0][1])
    for li in range(1, len(layer_consts)):
        c_add = jnp.where(layer == li, jnp.float32(layer_consts[li][0]), c_add)
        inv_n = jnp.where(layer == li, jnp.float32(layer_consts[li][1]), inv_n)

    logp = c_add + (logdet - 0.5 * jnp.sum(x * x, axis=0, keepdims=True)) * inv_n
    out_ref[...] = logp                                  # lane-dense (1, FB) store


# ----------------------------- kernel wrapper ---------------------------------
def run_cflow_fused(params, x_packed, cfg):
    """One fused pallas_call for all pool layers (grid = fiber tiles)."""
    n_tiles = cfg["n_tiles_total"]
    fb = LANE_TILE
    kernel = functools.partial(
        _cflow_fused_kernel,
        n_blocks=COUPLING_BLOCKS, s1=S1_PAD, s2=S2_PAD,
        clamp=CLAMP_ALPHA, layer_consts=cfg["layer_consts"])

    grid_spec = pltpu.PrefetchScalarGridSpec(
        num_scalar_prefetch=1,                    # per-tile layer-id table (SMEM)
        grid=(n_tiles,),
        in_specs=[
            pl.BlockSpec((CIN_PAD, fb), lambda i, lids: (0, i)),          # pooled fibers
            pl.BlockSpec((COND_VEC, fb), lambda i, lids: (0, i)),         # cond fibers
            pl.BlockSpec((1, C_PAD, CIN_PAD), lambda i, lids: (lids[i], 0, 0)),
            pl.BlockSpec((1, C_PAD, 1), lambda i, lids: (lids[i], 0, 0)),
            pl.BlockSpec((COUPLING_BLOCKS, HID_PAD, D_IN_PAD),
                         lambda i, lids: (lids[i], 0, 0)),
            pl.BlockSpec((COUPLING_BLOCKS, HID_PAD, 1),
                         lambda i, lids: (lids[i], 0, 0)),
            pl.BlockSpec((COUPLING_BLOCKS, D_OUT_PAD, HID_PAD),
                         lambda i, lids: (lids[i], 0, 0)),
            pl.BlockSpec((COUPLING_BLOCKS, D_OUT_PAD, 1),
                         lambda i, lids: (lids[i], 0, 0)),
            pl.BlockSpec((COUPLING_BLOCKS, C_PAD, S1_PAD),
                         lambda i, lids: (lids[i], 0, 0)),
            pl.BlockSpec((COUPLING_BLOCKS, C_PAD, S2_PAD),
                         lambda i, lids: (lids[i], 0, 0)),
            pl.BlockSpec((COUPLING_BLOCKS, C_PAD, 1),
                         lambda i, lids: (lids[i], 0, 0)),
        ],
        out_specs=pl.BlockSpec((1, fb), lambda i, lids: (0, i)),
        scratch_shapes=[pltpu.VMEM((D_IN_PAD, fb), jnp.bfloat16)],  # persistent [x1; cond] buffer
    )
    out = pl.pallas_call(
        kernel,
        grid_spec=grid_spec,
        out_shape=jax.ShapeDtypeStruct((1, n_tiles * fb), jnp.float32),
        compiler_params=pltpu.CompilerParams(
            dimension_semantics=("parallel",)),
    )(params["layer_ids"], x_packed, params["cond"],
      params["ew"], params["eb"],
      params["w1"], params["b1"], params["w2"], params["b2"],
      params["wps1"], params["wps2"], params["pbias"])
    return out                                            # (1, total_n_pad)


# ----------------------------- JAX glue (jitted) ------------------------------
def _pool_fibers(images, factor, n_pad_fibers):
    """Avg-pool by `factor`, flatten to (CIN_PAD, n_pad) with fibers on lanes."""
    b, cin, h_img, w_img = images.shape
    h, w = h_img // factor, w_img // factor
    pooled = images.reshape(b, cin, h, factor, w, factor).mean(axis=(3, 5))
    x = jnp.transpose(pooled, (1, 0, 2, 3)).reshape(cin, b * h * w)   # 'b c h w -> c (b h w)'
    return jnp.pad(x, ((0, CIN_PAD - cin), (0, n_pad_fibers - b * h * w)))


def compute_anomaly_map(dists, params, cfg):
    """anomalib CFLOW AnomalyMapGenerator (bilinear upsample is plain-JAX glue)."""
    score_map = None
    for li, m in enumerate(cfg["layers"]):
        probs = jnp.exp(dists[li] - jnp.max(dists[li]))   # likelihoods -> (0, 1]
        lm = probs.reshape(-1, m["h"], m["w"])            # (B, h, w)
        up = jnp.einsum("Hh,bhw,Ww->bHW", params["rh"][li], lm, params["rw"][li])
        score_map = up if score_map is None else score_map + up
    anomaly_map = jnp.max(score_map) - score_map          # invert probs -> anomaly
    return anomaly_map[:, None, :, :]                     # (B, 1, H, W)


def _forward(images, params, cfg):
    xs = [_pool_fibers(images, m["factor"], m["n_tiles"] * LANE_TILE)
          for m in cfg["layers"]]
    x_packed = jnp.concatenate(xs, axis=1)                # (CIN_PAD, total_n_pad)
    out = run_cflow_fused(params, x_packed, cfg)          # (1, total_n_pad)
    dists = [out[0, m["start"]: m["start"] + m["n_real"]] for m in cfg["layers"]]
    anomaly_map = compute_anomaly_map(dists, params, cfg)
    pred_score = jnp.max(anomaly_map, axis=(-2, -1))      # (B, 1)
    return pred_score, anomaly_map


# ----------------------------- init-time constants ----------------------------
def positional_encoding_2d(cond_vec, height, width):
    """2D sinusoidal positional encoding, shape (cond_vec, height, width)."""
    d_model = cond_vec // 2
    div_term = jnp.exp(jnp.arange(0.0, d_model, 2.0) * (-math.log(1e4) / d_model))
    pos_w = jnp.arange(0.0, width)[:, None]
    pos_h = jnp.arange(0.0, height)[:, None]
    sin_w = jnp.sin(pos_w * div_term).T
    cos_w = jnp.cos(pos_w * div_term).T
    sin_h = jnp.sin(pos_h * div_term).T
    cos_h = jnp.cos(pos_h * div_term).T
    half = d_model // 2
    pe = jnp.zeros((cond_vec, height, width), jnp.float32)
    pe = pe.at[0:d_model:2, :, :].set(jnp.broadcast_to(sin_w[:, None, :], (half, height, width)))
    pe = pe.at[1:d_model:2, :, :].set(jnp.broadcast_to(cos_w[:, None, :], (half, height, width)))
    pe = pe.at[d_model::2, :, :].set(jnp.broadcast_to(sin_h[:, :, None], (half, height, width)))
    pe = pe.at[d_model + 1::2, :, :].set(jnp.broadcast_to(cos_h[:, :, None], (half, height, width)))
    return pe


def _interp_matrix(out_size, in_size):
    """Row matrix for 1D bilinear interpolation with align_corners=True."""
    if in_size == 1:
        return jnp.ones((out_size, 1), jnp.float32)
    src = jnp.arange(out_size, dtype=jnp.float32) * (in_size - 1) / (out_size - 1)
    lo = jnp.floor(src).astype(jnp.int32)
    hi = jnp.minimum(lo + 1, in_size - 1)
    frac = src - lo.astype(jnp.float32)
    rows = jnp.arange(out_size)
    m = jnp.zeros((out_size, in_size), jnp.float32)
    m = m.at[rows, lo].add(1.0 - frac)
    m = m.at[rows, hi].add(frac)
    return m


def build_model(key):
    """Init all parameters and hoist every static/parameter-only tensor."""
    ln_sqrt_2pi = -0.5 * math.log(2.0 * math.pi)
    # FrEIA AllInOneBlock init: global_affine_type='SOFTPLUS', global_affine_init=1.0
    gscale_init = 2.0 * math.log(math.exp(0.5 * 10.0 * 1.0) - 1.0)

    layers, cond_parts, layer_id_parts = [], [], []
    start = 0
    for li, (factor, _) in enumerate(zip(POOL_FACTORS, POOL_DIMS)):
        h, w = IMG_H // factor, IMG_W // factor
        n_real = BATCH * h * w
        n_tiles = _cdiv(n_real, LANE_TILE)
        n_pad = n_tiles * LANE_TILE
        pe = positional_encoding_2d(COND_VEC, h, w).reshape(COND_VEC, h * w)
        cond = jnp.tile(pe, (1, BATCH))                    # '(b h w)' fiber order
        cond_parts.append(jnp.pad(cond, ((0, 0), (0, n_pad - n_real))))
        layer_id_parts.extend([li] * n_tiles)
        layers.append(dict(factor=factor, h=h, w=w, n_real=n_real,
                           n_tiles=n_tiles, start=start))
        start += n_pad

    ew_l, eb_l = [], []
    w1_l, b1_l, w2_l, b2_l, wps1_l, wps2_l, pb_l = [], [], [], [], [], [], []
    layer_consts = []
    for f in POOL_DIMS:
        s1, s2 = f - f // 2, f // 2
        d_in, hid, d_out = s1 + COND_VEC, 2 * (s1 + COND_VEC), 2 * (f // 2)
        # real channel c -> padded channel position (keeps x1/x2 split aligned)
        pmap = jnp.concatenate([jnp.arange(s1), S1_PAD + jnp.arange(s2)])
        cmap = jnp.concatenate([jnp.arange(s1), S1_PAD + jnp.arange(COND_VEC)])
        rmap = jnp.concatenate([jnp.arange(s2), S2_PAD + jnp.arange(s2)])

        key, k_ew, k_eb = jax.random.split(key, 3)
        ew = jax.random.normal(k_ew, (f, CIN_PAD), jnp.float32) * 0.5
        eb = jax.random.normal(k_eb, (f, 1), jnp.float32) * 0.1
        ew_l.append(jnp.zeros((C_PAD, CIN_PAD), jnp.float32)
                    .at[pmap, :].set(ew).astype(jnp.bfloat16))
        eb_l.append(jnp.zeros((C_PAD, 1), jnp.float32).at[pmap, :].set(eb))

        perm_ld_total = 0.0
        for _ in range(COUPLING_BLOCKS):
            key, kp, k1, k2, k3, k4 = jax.random.split(key, 6)
            perm = jax.random.permutation(kp, f)
            w_perm = jnp.zeros((f, f), jnp.float32).at[jnp.arange(f), perm].set(1.0)
            gscale = jnp.full((f,), gscale_init, jnp.float32)
            goffset = jnp.zeros((f,), jnp.float32)
            # hoisted parameter-only math:
            scale = 0.2 * jnp.log1p(jnp.exp(0.5 * gscale))     # 0.1 * softplus(beta=0.5)
            perm_ld_total += float(jnp.sum(jnp.log(scale)))
            wps = w_perm * scale[None, :]                      # W_perm @ diag(scale)
            pbias = w_perm @ goffset                           # W_perm @ offset
            wps_pad = (jnp.zeros((C_PAD, C_PAD), jnp.float32)
                       .at[pmap[:, None], pmap[None, :]].set(wps))
            wps1_l.append(wps_pad[:, :S1_PAD].astype(jnp.bfloat16))
            wps2_l.append(wps_pad[:, S1_PAD:].astype(jnp.bfloat16))
            pb_l.append(jnp.zeros((C_PAD, 1), jnp.float32).at[pmap, 0].set(pbias))

            # subnet weights stored transposed: h = W1 @ [x1; c], a = W2 @ h,
            # FrEIA's 0.1 output scaling folded into W2/b2
            w1 = jax.random.normal(k1, (hid, d_in), jnp.float32) / math.sqrt(d_in)
            b1 = jax.random.normal(k2, (hid, 1), jnp.float32) * 0.01
            w2 = jax.random.normal(k3, (d_out, hid), jnp.float32) / math.sqrt(hid) * 0.1
            b2 = jax.random.normal(k4, (d_out, 1), jnp.float32) * 0.01 * 0.1
            w1_l.append(jnp.zeros((HID_PAD, D_IN_PAD), jnp.float32)
                        .at[jnp.arange(hid)[:, None], cmap[None, :]].set(w1)
                        .astype(jnp.bfloat16))
            b1_l.append(jnp.zeros((HID_PAD, 1), jnp.float32).at[:hid, :].set(b1))
            w2_l.append(jnp.zeros((D_OUT_PAD, HID_PAD), jnp.float32)
                        .at[rmap[:, None], jnp.arange(hid)[None, :]].set(w2)
                        .astype(jnp.bfloat16))
            b2_l.append(jnp.zeros((D_OUT_PAD, 1), jnp.float32).at[rmap, :].set(b2))

        # get_logp constant + permutation/global-scale log-jacobian, pre-divided by dim
        layer_consts.append(((f * ln_sqrt_2pi + perm_ld_total) / f, 1.0 / f))

    params = dict(
        layer_ids=jnp.asarray(layer_id_parts, jnp.int32),
        cond=jnp.concatenate(cond_parts, axis=1),
        ew=jnp.stack(ew_l), eb=jnp.stack(eb_l),
        w1=jnp.stack(w1_l), b1=jnp.stack(b1_l),
        w2=jnp.stack(w2_l), b2=jnp.stack(b2_l),
        wps1=jnp.stack(wps1_l), wps2=jnp.stack(wps2_l), pbias=jnp.stack(pb_l),
        rh=[_interp_matrix(IMG_H, m["h"]) for m in layers],
        rw=[_interp_matrix(IMG_W, m["w"]) for m in layers],
    )
    cfg = dict(layers=layers,
               n_tiles_total=len(layer_id_parts),
               layer_consts=tuple(tuple(c) for c in layer_consts))
    return params, cfg


# ----------------------------- main -------------------------------------------
if __name__ == "__main__":
    key = jax.random.PRNGKey(0)
    k_img, k_param = jax.random.split(key)
    images = jax.random.normal(k_img, (BATCH, IN_CH, IMG_H, IMG_W), jnp.float32)

    params, cfg = build_model(k_param)
    forward = jax.jit(functools.partial(_forward, cfg=cfg))

    pred_score, anomaly_map = forward(images, params)
    jax.block_until_ready((pred_score, anomaly_map))

    assert anomaly_map.shape == (BATCH, 1, IMG_H, IMG_W), anomaly_map.shape
    assert pred_score.shape == (BATCH, 1), pred_score.shape
    assert bool(jnp.all(jnp.isfinite(anomaly_map))) and bool(jnp.all(jnp.isfinite(pred_score)))
    print("KERNEL_OK")
</pallas_src>

<mosaic_0001>
module attributes {stable_mosaic.version = 11 : i64} {
  func.func @_cflow_fused_kernel(%arg0: i32, %arg1: memref<2xi32, #tpu.memory_space<smem>>, %arg2: memref<8x128xf32, #tpu.memory_space<vmem>>, %arg3: memref<32x128xf32, #tpu.memory_space<vmem>>, %arg4: memref<1x32x8xbf16, #tpu.memory_space<vmem>>, %arg5: memref<1x32x1xf32, #tpu.memory_space<vmem>>, %arg6: memref<4x96x48xbf16, #tpu.memory_space<vmem>>, %arg7: memref<4x96x1xf32, #tpu.memory_space<vmem>>, %arg8: memref<4x32x96xbf16, #tpu.memory_space<vmem>>, %arg9: memref<4x32x1xf32, #tpu.memory_space<vmem>>, %arg10: memref<4x32x16xbf16, #tpu.memory_space<vmem>>, %arg11: memref<4x32x16xbf16, #tpu.memory_space<vmem>>, %arg12: memref<4x32x1xf32, #tpu.memory_space<vmem>>, %arg13: memref<1x128xf32, #tpu.memory_space<vmem>>, %arg14: memref<48x128xbf16, #tpu.memory_space<vmem>>) attributes {dimension_semantics = [#tpu.dimension_semantics<parallel>], iteration_bounds = array<i64: 2>, scalar_prefetch = 1 : i64, scratch_operands = 1 : i64, tpu.core_type = #tpu.core_type<tc>, window_params = [{transform_indices = @transform_0, window_bounds = array<i64: 8, 128>}, {transform_indices = @transform_1, window_bounds = array<i64: 32, 128>}, {transform_indices = @transform_2, window_bounds = array<i64: 1, 32, 8>}, {transform_indices = @transform_3, window_bounds = array<i64: 1, 32, 1>}, {transform_indices = @transform_4, window_bounds = array<i64: 4, 96, 48>}, {transform_indices = @transform_5, window_bounds = array<i64: 4, 96, 1>}, {transform_indices = @transform_6, window_bounds = array<i64: 4, 32, 96>}, {transform_indices = @transform_7, window_bounds = array<i64: 4, 32, 1>}, {transform_indices = @transform_8, window_bounds = array<i64: 4, 32, 16>}, {transform_indices = @transform_9, window_bounds = array<i64: 4, 32, 16>}, {transform_indices = @transform_10, window_bounds = array<i64: 4, 32, 1>}, {transform_indices = @transform_11, window_bounds = array<i64: 1, 128>}]} {
    %0 = arith.index_cast %arg0 : i32 to index
    %1 = memref.load %arg1[%0] : memref<2xi32, #tpu.memory_space<smem>>
    %c0 = arith.constant 0 : index
    %c0_0 = arith.constant 0 : index
    %2 = vector.load %arg3[%c0, %c0_0] : memref<32x128xf32, #tpu.memory_space<vmem>>, vector<32x128xf32>
    %3 = arith.truncf %2 : vector<32x128xf32> to vector<32x128xbf16>
    %c16 = arith.constant 16 : index
    %c0_1 = arith.constant 0 : index
    %4 = vector.load %arg14[%c16, %c0_1] : memref<48x128xbf16, #tpu.memory_space<vmem>>, vector<32x128xbf16>
    tpu.vector_store %arg14[%c16, %c0_1], %3 {strides = array<i32>} : memref<48x128xbf16, #tpu.memory_space<vmem>>, vector<32x128xbf16>,
    %c0_2 = arith.constant 0 : index
    %c0_3 = arith.constant 0 : index
    %c0_4 = arith.constant 0 : index
    %5 = vector.load %arg4[%c0_2, %c0_3, %c0_4] : memref<1x32x8xbf16, #tpu.memory_space<vmem>>, vector<1x32x8xbf16>
    %6 = vector.shape_cast %5 : vector<1x32x8xbf16> to vector<32x8xbf16>
    %c0_5 = arith.constant 0 : index
    %c0_6 = arith.constant 0 : index
    %7 = vector.load %arg2[%c0_5, %c0_6] : memref<8x128xf32, #tpu.memory_space<vmem>>, vector<8x128xf32>
    %8 = arith.truncf %7 : vector<8x128xf32> to vector<8x128xbf16>
    %cst = arith.constant dense<0.000000e+00> : vector<32x128xf32>
    %9 = tpu.matmul %6, %8, %cst {dimension_numbers = #tpu.dot_dimension_numbers<[1], [0], [0], [1], [0, 0, 1, 1], [], []>} : vector<32x8xbf16>, vector<8x128xbf16>, vector<32x128xf32> -> vector<32x128xf32>
    %c0_7 = arith.constant 0 : index
    %c0_8 = arith.constant 0 : index
    %c0_9 = arith.constant 0 : index
    %10 = vector.load %arg5[%c0_7, %c0_8, %c0_9] : memref<1x32x1xf32, #tpu.memory_space<vmem>>, vector<1x32x1xf32>
    %11 = vector.shape_cast %10 : vector<1x32x1xf32> to vector<32x1xf32>
    %12 = vector.broadcast %11 : vector<32x1xf32> to vector<32x128xf32>
    %13 = arith.addf %9, %12 : vector<32x128xf32>
    %cst_10 = arith.constant 0.000000e+00 : f32
    %14 = vector.broadcast %cst_10 : f32 to vector<32x128xf32>
    %15 = arith.maximumf %13, %14 : vector<32x128xf32>
    %cst_11 = arith.constant 0.000000e+00 : f32
    %16 = vector.broadcast %cst_11 : f32 to vector<1x128xf32>
    %17 = vector.extract_strided_slice %15 {offsets = [0, 0], sizes = [16, 128], strides = [1, 1]} : vector<32x128xf32> to vector<16x128xf32>
    %18 = vector.extract_strided_slice %15 {offsets = [16, 0], sizes = [16, 128], strides = [1, 1]} : vector<32x128xf32> to vector<16x128xf32>
    %19 = arith.truncf %17 : vector<16x128xf32> to vector<16x128xbf16>
    %c0_12 = arith.constant 0 : index
    %c0_13 = arith.constant 0 : index
    %20 = vector.load %arg14[%c0_12, %c0_13] : memref<48x128xbf16, #tpu.memory_space<vmem>>, vector<16x128xbf16>
    tpu.vector_store %arg14[%c0_12, %c0_13], %19 {strides = array<i32>} : memref<48x128xbf16, #tpu.memory_space<vmem>>, vector<16x128xbf16>,
    %c0_14 = arith.constant 0 : index
    %c0_15 = arith.constant 0 : index
    %c0_16 = arith.constant 0 : index
    %21 = vector.load %arg6[%c0_14, %c0_15, %c0_16] : memref<4x96x48xbf16, #tpu.memory_space<vmem>>, vector<1x96x48xbf16>
    %22 = vector.shape_cast %21 : vector<1x96x48xbf16> to vector<96x48xbf16>
    %c0_17 = arith.constant 0 : index
    %c0_18 = arith.constant 0 : index
    %23 = vector.load %arg14[%c0_17, %c0_18] : memref<48x128xbf16, #tpu.memory_space<vmem>>, vector<48x128xbf16>
    %cst_19 = arith.constant dense<0.000000e+00> : vector<96x128xf32>
    %24 = tpu.matmul %22, %23, %cst_19 {dimension_numbers = #tpu.dot_dimension_numbers<[1], [0], [0], [1], [0, 0, 1, 1], [], []>} : vector<96x48xbf16>, vector<48x128xbf16>, vector<96x128xf32> -> vector<96x128xf32>
    %c0_20 = arith.constant 0 : index
    %c0_21 = arith.constant 0 : index
    %c0_22 = arith.constant 0 : index
    %25 = vector.load %arg7[%c0_20, %c0_21, %c0_22] : memref<4x96x1xf32, #tpu.memory_space<vmem>>, vector<1x96x1xf32>
    %26 = vector.shape_cast %25 : vector<1x96x1xf32> to vector<96x1xf32>
    %27 = vector.broadcast %26 : vector<96x1xf32> to vector<96x128xf32>
    %28 = arith.addf %24, %27 : vector<96x128xf32>
    %cst_23 = arith.constant 0.000000e+00 : f32
    %29 = vector.broadcast %cst_23 : f32 to vector<96x128xf32>
    %30 = arith.maximumf %28, %29 : vector<96x128xf32>
    %c0_24 = arith.constant 0 : index
    %c0_25 = arith.constant 0 : index
    %c0_26 = arith.constant 0 : index
    %31 = vector.load %arg8[%c0_24, %c0_25, %c0_26] : memref<4x32x96xbf16, #tpu.memory_space<vmem>>, vector<1x32x96xbf16>
    %32 = vector.shape_cast %31 : vector<1x32x96xbf16> to vector<32x96xbf16>
    %33 = arith.truncf %30 : vector<96x128xf32> to vector<96x128xbf16>
    %cst_27 = arith.constant dense<0.000000e+00> : vector<32x128xf32>
    %34 = tpu.matmul %32, %33, %cst_27 {dimension_numbers = #tpu.dot_dimension_numbers<[1], [0], [0], [1], [0, 0, 1, 1], [], []>} : vector<32x96xbf16>, vector<96x128xbf16>, vector<32x128xf32> -> vector<32x128xf32>
    %c0_28 = arith.constant 0 : index
    %c0_29 = arith.constant 0 : index
    %c0_30 = arith.constant 0 : index
    %35 = vector.load %arg9[%c0_28, %c0_29, %c0_30] : memref<4x32x1xf32, #tpu.memory_space<vmem>>, vector<1x32x1xf32>
    %36 = vector.shape_cast %35 : vector<1x32x1xf32> to vector<32x1xf32>
    %37 = vector.broadcast %36 : vector<32x1xf32> to vector<32x128xf32>
    %38 = arith.addf %34, %37 : vector<32x128xf32>
    %39 = vector.extract_strided_slice %38 {offsets = [0, 0], sizes = [16, 128], strides = [1, 1]} : vector<32x128xf32> to vector<16x128xf32>
    %40 = math.tanh %39 : vector<16x128xf32>
    %cst_31 = arith.constant 1.900000e+00 : f32
    %41 = vector.broadcast %cst_31 : f32 to vector<16x128xf32>
    %42 = arith.mulf %41, %40 : vector<16x128xf32>
    %43 = math.exp %42 : vector<16x128xf32>
    %44 = arith.mulf %18, %43 : vector<16x128xf32>
    %45 = vector.extract_strided_slice %38 {offsets = [16, 0], sizes = [16, 128], strides = [1, 1]} : vector<32x128xf32> to vector<16x128xf32>
    %46 = arith.addf %44, %45 : vector<16x128xf32>
    %cst_32 = arith.constant dense<0.000000e+00> : vector<128xf32>
    %47 = vector.multi_reduction <add>, %42, %cst_32 [0] : vector<16x128xf32> to vector<128xf32>
    %48 = vector.shape_cast %47 : vector<128xf32> to vector<1x128xf32>
    %49 = arith.addf %16, %48 : vector<1x128xf32>
    %c0_33 = arith.constant 0 : index
    %c0_34 = arith.constant 0 : index
    %c0_35 = arith.constant 0 : index
    %50 = vector.load %arg10[%c0_33, %c0_34, %c0_35] : memref<4x32x16xbf16, #tpu.memory_space<vmem>>, vector<1x32x16xbf16>
    %51 = vector.shape_cast %50 : vector<1x32x16xbf16> to vector<32x16xbf16>
    %c0_36 = arith.constant 0 : index
    %c0_37 = arith.constant 0 : index
    %52 = vector.load %arg14[%c0_36, %c0_37] : memref<48x128xbf16, #tpu.memory_space<vmem>>, vector<16x128xbf16>
    %cst_38 = arith.constant dense<0.000000e+00> : vector<32x128xf32>
    %53 = tpu.matmul %51, %52, %cst_38 {dimension_numbers = #tpu.dot_dimension_numbers<[1], [0], [0], [1], [0, 0, 1, 1], [], []>} : vector<32x16xbf16>, vector<16x128xbf16>, vector<32x128xf32> -> vector<32x128xf32>
    %c0_39 = arith.constant 0 : index
    %c0_40 = arith.constant 0 : index
    %c0_41 = arith.constant 0 : index
    %54 = vector.load %arg11[%c0_39, %c0_40, %c0_41] : memref<4x32x16xbf16, #tpu.memory_space<vmem>>, vector<1x32x16xbf16>
    %55 = vector.shape_cast %54 : vector<1x32x16xbf16> to vector<32x16xbf16>
    %56 = arith.truncf %46 : vector<16x128xf32> to vector<16x128xbf16>
    %cst_42 = arith.constant dense<0.000000e+00> : vector<32x128xf32>
    %57 = tpu.matmul %55, %56, %cst_42 {dimension_numbers = #tpu.dot_dimension_numbers<[1], [0], [0], [1], [0, 0, 1, 1], [], []>} : vector<32x16xbf16>, vector<16x128xbf16>, vector<32x128xf32> -> vector<32x128xf32>
    %58 = arith.addf %53, %57 : vector<32x128xf32>
    %c0_43 = arith.constant 0 : index
    %c0_44 = arith.constant 0 : index
    %c0_45 = arith.constant 0 : index
    %59 = vector.load %arg12[%c0_43, %c0_44, %c0_45] : memref<4x32x1xf32, #tpu.memory_space<vmem>>, vector<1x32x1xf32>
    %60 = vector.shape_cast %59 : vector<1x32x1xf32> to vector<32x1xf32>
    %61 = vector.broadcast %60 : vector<32x1xf32> to vector<32x128xf32>
    %62 = arith.addf %58, %61 : vector<32x128xf32>
    %63 = vector.extract_strided_slice %62 {offsets = [0, 0], sizes = [16, 128], strides = [1, 1]} : vector<32x128xf32> to vector<16x128xf32>
    %64 = vector.extract_strided_slice %62 {offsets = [16, 0], sizes = [16, 128], strides = [1, 1]} : vector<32x128xf32> to vector<16x128xf32>
    %65 = arith.truncf %63 : vector<16x128xf32> to vector<16x128xbf16>
    %c0_46 = arith.constant 0 : index
    %c0_47 = arith.constant 0 : index
    %66 = vector.load %arg14[%c0_46, %c0_47] : memref<48x128xbf16, #tpu.memory_space<vmem>>, vector<16x128xbf16>
    tpu.vector_store %arg14[%c0_46, %c0_47], %65 {strides = array<i32>} : memref<48x128xbf16, #tpu.memory_space<vmem>>, vector<16x128xbf16>,
    %c1 = arith.constant 1 : index
    %c0_48 = arith.constant 0 : index
    %c0_49 = arith.constant 0 : index
    %67 = vector.load %arg6[%c1, %c0_48, %c0_49] : memref<4x96x48xbf16, #tpu.memory_space<vmem>>, vector<1x96x48xbf16>
    %68 = vector.shape_cast %67 : vector<1x96x48xbf16> to vector<96x48xbf16>
    %c0_50 = arith.constant 0 : index
    %c0_51 = arith.constant 0 : index
    %69 = vector.load %arg14[%c0_50, %c0_51] : memref<48x128xbf16, #tpu.memory_space<vmem>>, vector<48x128xbf16>
    %cst_52 = arith.constant dense<0.000000e+00> : vector<96x128xf32>
    %70 = tpu.matmul %68, %69, %cst_52 {dimension_numbers = #tpu.dot_dimension_numbers<[1], [0], [0], [1], [0, 0, 1, 1], [], []>} : vector<96x48xbf16>, vector<48x128xbf16>, vector<96x128xf32> -> vector<96x128xf32>
    %c1_53 = arith.constant 1 : index
    %c0_54 = arith.constant 0 : index
    %c0_55 = arith.constant 0 : index
    %71 = vector.load %arg7[%c1_53, %c0_54, %c0_55] : memref<4x96x1xf32, #tpu.memory_space<vmem>>, vector<1x96x1xf32>
    %72 = vector.shape_cast %71 : vector<1x96x1xf32> to vector<96x1xf32>
    %73 = vector.broadcast %72 : vector<96x1xf32> to vector<96x128xf32>
    %74 = arith.addf %70, %73 : vector<96x128xf32>
    %cst_56 = arith.constant 0.000000e+00 : f32
    %75 = vector.broadcast %cst_56 : f32 to vector<96x128xf32>
    %76 = arith.maximumf %74, %75 : vector<96x128xf32>
    %c1_57 = arith.constant 1 : index
    %c0_58 = arith.constant 0 : index
    %c0_59 = arith.constant 0 : index
    %77 = vector.load %arg8[%c1_57, %c0_58, %c0_59] : memref<4x32x96xbf16, #tpu.memory_space<vmem>>, vector<1x32x96xbf16>
    %78 = vector.shape_cast %77 : vector<1x32x96xbf16> to vector<32x96xbf16>
    %79 = arith.truncf %76 : vector<96x128xf32> to vector<96x128xbf16>
    %cst_60 = arith.constant dense<0.000000e+00> : vector<32x128xf32>
    %80 = tpu.matmul %78, %79, %cst_60 {dimension_numbers = #tpu.dot_dimension_numbers<[1], [0], [0], [1], [0, 0, 1, 1], [], []>} : vector<32x96xbf16>, vector<96x128xbf16>, vector<32x128xf32> -> vector<32x128xf32>
    %c1_61 = arith.constant 1 : index
    %c0_62 = arith.constant 0 : index
    %c0_63 = arith.constant 0 : index
    %81 = vector.load %arg9[%c1_61, %c0_62, %c0_63] : memref<4x32x1xf32, #tpu.memory_space<vmem>>, vector<1x32x1xf32>
    %82 = vector.shape_cast %81 : vector<1x32x1xf32> to vector<32x1xf32>
    %83 = vector.broadcast %82 : vector<32x1xf32> to vector<32x128xf32>
    %84 = arith.addf %80, %83 : vector<32x128xf32>
    %85 = vector.extract_strided_slice %84 {offsets = [0, 0], sizes = [16, 128], strides = [1, 1]} : vector<32x128xf32> to vector<16x128xf32>
    %86 = math.tanh %85 : vector<16x128xf32>
    %cst_64 = arith.constant 1.900000e+00 : f32
    %87 = vector.broadcast %cst_64 : f32 to vector<16x128xf32>
    %88 = arith.mulf %87, %86 : vector<16x128xf32>
    %89 = math.exp %88 : vector<16x128xf32>
    %90 = arith.mulf %64, %89 : vector<16x128xf32>
    %91 = vector.extract_strided_slice %84 {offsets = [16, 0], sizes = [16, 128], strides = [1, 1]} : vector<32x128xf32> to vector<16x128xf32>
    %92 = arith.addf %90, %91 : vector<16x128xf32>
    %cst_65 = arith.constant dense<0.000000e+00> : vector<128xf32>
    %93 = vector.multi_reduction <add>, %88, %cst_65 [0] : vector<16x128xf32> to vector<128xf32>
    %94 = vector.shape_cast %93 : vector<128xf32> to vector<1x128xf32>
    %95 = arith.addf %49, %94 : vector<1x128xf32>
    %c1_66 = arith.constant 1 : index
    %c0_67 = arith.constant 0 : index
    %c0_68 = arith.constant 0 : index
    %96 = vector.load %arg10[%c1_66, %c0_67, %c0_68] : memref<4x32x16xbf16, #tpu.memory_space<vmem>>, vector<1x32x16xbf16>
    %97 = vector.shape_cast %96 : vector<1x32x16xbf16> to vector<32x16xbf16>
    %c0_69 = arith.constant 0 : index
    %c0_70 = arith.constant 0 : index
    %98 = vector.load %arg14[%c0_69, %c0_70] : memref<48x128xbf16, #tpu.memory_space<vmem>>, vector<16x128xbf16>
    %cst_71 = arith.constant dense<0.000000e+00> : vector<32x128xf32>
    %99 = tpu.matmul %97, %98, %cst_71 {dimension_numbers = #tpu.dot_dimension_numbers<[1], [0], [0], [1], [0, 0, 1, 1], [], []>} : vector<32x16xbf16>, vector<16x128xbf16>, vector<32x128xf32> -> vector<32x128xf32>
    %c1_72 = arith.constant 1 : index
    %c0_73 = arith.constant 0 : index
    %c0_74 = arith.constant 0 : index
    %100 = vector.load %arg11[%c1_72, %c0_73, %c0_74] : memref<4x32x16xbf16, #tpu.memory_space<vmem>>, vector<1x32x16xbf16>
    %101 = vector.shape_cast %100 : vector<1x32x16xbf16> to vector<32x16xbf16>
    %102 = arith.truncf %92 : vector<16x128xf32> to vector<16x128xbf16>
    %cst_75 = arith.constant dense<0.000000e+00> : vector<32x128xf32>
    %103 = tpu.matmul %101, %102, %cst_75 {dimension_numbers = #tpu.dot_dimension_numbers<[1], [0], [0], [1], [0, 0, 1, 1], [], []>} : vector<32x16xbf16>, vector<16x128xbf16>, vector<32x128xf32> -> vector<32x128xf32>
    %104 = arith.addf %99, %103 : vector<32x128xf32>
    %c1_76 = arith.constant 1 : index
    %c0_77 = arith.constant 0 : index
    %c0_78 = arith.constant 0 : index
    %105 = vector.load %arg12[%c1_76, %c0_77, %c0_78] : memref<4x32x1xf32, #tpu.memory_space<vmem>>, vector<1x32x1xf32>
    %106 = vector.shape_cast %105 : vector<1x32x1xf32> to vector<32x1xf32>
    %107 = vector.broadcast %106 : vector<32x1xf32> to vector<32x128xf32>
    %108 = arith.addf %104, %107 : vector<32x128xf32>
    %109 = vector.extract_strided_slice %108 {offsets = [0, 0], sizes = [16, 128], strides = [1, 1]} : vector<32x128xf32> to vector<16x128xf32>
    %110 = vector.extract_strided_slice %108 {offsets = [16, 0], sizes = [16, 128], strides = [1, 1]} : vector<32x128xf32> to vector<16x128xf32>
    %111 = arith.truncf %109 : vector<16x128xf32> to vector<16x128xbf16>
    %c0_79 = arith.constant 0 : index
    %c0_80 = arith.constant 0 : index
    %112 = vector.load %arg14[%c0_79, %c0_80] : memref<48x128xbf16, #tpu.memory_space<vmem>>, vector<16x128xbf16>
    tpu.vector_store %arg14[%c0_79, %c0_80], %111 {strides = array<i32>} : memref<48x128xbf16, #tpu.memory_space<vmem>>, vector<16x128xbf16>,
    %c2 = arith.constant 2 : index
    %c0_81 = arith.constant 0 : index
    %c0_82 = arith.constant 0 : index
    %113 = vector.load %arg6[%c2, %c0_81, %c0_82] : memref<4x96x48xbf16, #tpu.memory_space<vmem>>, vector<1x96x48xbf16>
    %114 = vector.shape_cast %113 : vector<1x96x48xbf16> to vector<96x48xbf16>
    %c0_83 = arith.constant 0 : index
    %c0_84 = arith.constant 0 : index
    %115 = vector.load %arg14[%c0_83, %c0_84] : memref<48x128xbf16, #tpu.memory_space<vmem>>, vector<48x128xbf16>
    %cst_85 = arith.constant dense<0.000000e+00> : vector<96x128xf32>
    %116 = tpu.matmul %114, %115, %cst_85 {dimension_numbers = #tpu.dot_dimension_numbers<[1], [0], [0], [1], [0, 0, 1, 1], [], []>} : vector<96x48xbf16>, vector<48x128xbf16>, vector<96x128xf32> -> vector<96x128xf32>
    %c2_86 = arith.constant 2 : index
    %c0_87 = arith.constant 0 : index
    %c0_88 = arith.constant 0 : index
    %117 = vector.load %arg7[%c2_86, %c0_87, %c0_88] : memref<4x96x1xf32, #tpu.memory_space<vmem>>, vector<1x96x1xf32>
    %118 = vector.shape_cast %117 : vector<1x96x1xf32> to vector<96x1xf32>
    %119 = vector.broadcast %118 : vector<96x1xf32> to vector<96x128xf32>
    %120 = arith.addf %116, %119 : vector<96x128xf32>
    %cst_89 = arith.constant 0.000000e+00 : f32
    %121 = vector.broadcast %cst_89 : f32 to vector<96x128xf32>
    %122 = arith.maximumf %120, %121 : vector<96x128xf32>
    %c2_90 = arith.constant 2 : index
    %c0_91 = arith.constant 0 : index
    %c0_92 = arith.constant 0 : index
    %123 = vector.load %arg8[%c2_90, %c0_91, %c0_92] : memref<4x32x96xbf16, #tpu.memory_space<vmem>>, vector<1x32x96xbf16>
    %124 = vector.shape_cast %123 : vector<1x32x96xbf16> to vector<32x96xbf16>
    %125 = arith.truncf %122 : vector<96x128xf32> to vector<96x128xbf16>
    %cst_93 = arith.constant dense<0.000000e+00> : vector<32x128xf32>
    %126 = tpu.matmul %124, %125, %cst_93 {dimension_numbers = #tpu.dot_dimension_numbers<[1], [0], [0], [1], [0, 0, 1, 1], [], []>} : vector<32x96xbf16>, vector<96x128xbf16>, vector<32x128xf32> -> vector<32x128xf32>
    %c2_94 = arith.constant 2 : index
    %c0_95 = arith.constant 0 : index
    %c0_96 = arith.constant 0 : index
    %127 = vector.load %arg9[%c2_94, %c0_95, %c0_96] : memref<4x32x1xf32, #tpu.memory_space<vmem>>, vector<1x32x1xf32>
    %128 = vector.shape_cast %127 : vector<1x32x1xf32> to vector<32x1xf32>
    %129 = vector.broadcast %128 : vector<32x1xf32> to vector<32x128xf32>
    %130 = arith.addf %126, %129 : vector<32x128xf32>
    %131 = vector.extract_strided_slice %130 {offsets = [0, 0], sizes = [16, 128], strides = [1, 1]} : vector<32x128xf32> to vector<16x128xf32>
    %132 = math.tanh %131 : vector<16x128xf32>
    %cst_97 = arith.constant 1.900000e+00 : f32
    %133 = vector.broadcast %cst_97 : f32 to vector<16x128xf32>
    %134 = arith.mulf %133, %132 : vector<16x128xf32>
    %135 = math.exp %134 : vector<16x128xf32>
    %136 = arith.mulf %110, %135 : vector<16x128xf32>
    %137 = vector.extract_strided_slice %130 {offsets = [16, 0], sizes = [16, 128], strides = [1, 1]} : vector<32x128xf32> to vector<16x128xf32>
    %138 = arith.addf %136, %137 : vector<16x128xf32>
    %cst_98 = arith.constant dense<0.000000e+00> : vector<128xf32>
    %139 = vector.multi_reduction <add>, %134, %cst_98 [0] : vector<16x128xf32> to vector<128xf32>
    %140 = vector.shape_cast %139 : vector<128xf32> to vector<1x128xf32>
    %141 = arith.addf %95, %140 : vector<1x128xf32>
    %c2_99 = arith.constant 2 : index
    %c0_100 = arith.constant 0 : index
    %c0_101 = arith.constant 0 : index
    %142 = vector.load %arg10[%c2_99, %c0_100, %c0_101] : memref<4x32x16xbf16, #tpu.memory_space<vmem>>, vector<1x32x16xbf16>
    %143 = vector.shape_cast %142 : vector<1x32x16xbf16> to vector<32x16xbf16>
    %c0_102 = arith.constant 0 : index
    %c0_103 = arith.constant 0 : index
    %144 = vector.load %arg14[%c0_102, %c0_103] : memref<48x128xbf16, #tpu.memory_space<vmem>>, vector<16x128xbf16>
    %cst_104 = arith.constant dense<0.000000e+00> : vector<32x128xf32>
    %145 = tpu.matmul %143, %144, %cst_104 {dimension_numbers = #tpu.dot_dimension_numbers<[1], [0], [0], [1], [0, 0, 1, 1], [], []>} : vector<32x16xbf16>, vector<16x128xbf16>, vector<32x128xf32> -> vector<32x128xf32>
    %c2_105 = arith.constant 2 : index
    %c0_106 = arith.constant 0 : index
    %c0_107 = arith.constant 0 : index
    %146 = vector.load %arg11[%c2_105, %c0_106, %c0_107] : memref<4x32x16xbf16, #tpu.memory_space<vmem>>, vector<1x32x16xbf16>
    %147 = vector.shape_cast %146 : vector<1x32x16xbf16> to vector<32x16xbf16>
    %148 = arith.truncf %138 : vector<16x128xf32> to vector<16x128xbf16>
    %cst_108 = arith.constant dense<0.000000e+00> : vector<32x128xf32>
    %149 = tpu.matmul %147, %148, %cst_108 {dimension_numbers = #tpu.dot_dimension_numbers<[1], [0], [0], [1], [0, 0, 1, 1], [], []>} : vector<32x16xbf16>, vector<16x128xbf16>, vector<32x128xf32> -> vector<32x128xf32>
    %150 = arith.addf %145, %149 : vector<32x128xf32>
    %c2_109 = arith.constant 2 : index
    %c0_110 = arith.constant 0 : index
    %c0_111 = arith.constant 0 : index
    %151 = vector.load %arg12[%c2_109, %c0_110, %c0_111] : memref<4x32x1xf32, #tpu.memory_space<vmem>>, vector<1x32x1xf32>
    %152 = vector.shape_cast %151 : vector<1x32x1xf32> to vector<32x1xf32>
    %153 = vector.broadcast %152 : vector<32x1xf32> to vector<32x128xf32>
    %154 = arith.addf %150, %153 : vector<32x128xf32>
    %155 = vector.extract_strided_slice %154 {offsets = [0, 0], sizes = [16, 128], strides = [1, 1]} : vector<32x128xf32> to vector<16x128xf32>
    %156 = vector.extract_strided_slice %154 {offsets = [16, 0], sizes = [16, 128], strides = [1, 1]} : vector<32x128xf32> to vector<16x128xf32>
    %157 = arith.truncf %155 : vector<16x128xf32> to vector<16x128xbf16>
    %c0_112 = arith.constant 0 : index
    %c0_113 = arith.constant 0 : index
    %158 = vector.load %arg14[%c0_112, %c0_113] : memref<48x128xbf16, #tpu.memory_space<vmem>>, vector<16x128xbf16>
    tpu.vector_store %arg14[%c0_112, %c0_113], %157 {strides = array<i32>} : memref<48x128xbf16, #tpu.memory_space<vmem>>, vector<16x128xbf16>,
    %c3 = arith.constant 3 : index
    %c0_114 = arith.constant 0 : index
    %c0_115 = arith.constant 0 : index
    %159 = vector.load %arg6[%c3, %c0_114, %c0_115] : memref<4x96x48xbf16, #tpu.memory_space<vmem>>, vector<1x96x48xbf16>
    %160 = vector.shape_cast %159 : vector<1x96x48xbf16> to vector<96x48xbf16>
    %c0_116 = arith.constant 0 : index
    %c0_117 = arith.constant 0 : index
    %161 = vector.load %arg14[%c0_116, %c0_117] : memref<48x128xbf16, #tpu.memory_space<vmem>>, vector<48x128xbf16>
    %cst_118 = arith.constant dense<0.000000e+00> : vector<96x128xf32>
    %162 = tpu.matmul %160, %161, %cst_118 {dimension_numbers = #tpu.dot_dimension_numbers<[1], [0], [0], [1], [0, 0, 1, 1], [], []>} : vector<96x48xbf16>, vector<48x128xbf16>, vector<96x128xf32> -> vector<96x128xf32>
    %c3_119 = arith.constant 3 : index
    %c0_120 = arith.constant 0 : index
    %c0_121 = arith.constant 0 : index
    %163 = vector.load %arg7[%c3_119, %c0_120, %c0_121] : memref<4x96x1xf32, #tpu.memory_space<vmem>>, vector<1x96x1xf32>
    %164 = vector.shape_cast %163 : vector<1x96x1xf32> to vector<96x1xf32>
    %165 = vector.broadcast %164 : vector<96x1xf32> to vector<96x128xf32>
    %166 = arith.addf %162, %165 : vector<96x128xf32>
    %cst_122 = arith.constant 0.000000e+00 : f32
    %167 = vector.broadcast %cst_122 : f32 to vector<96x128xf32>
    %168 = arith.maximumf %166, %167 : vector<96x128xf32>
    %c3_123 = arith.constant 3 : index
    %c0_124 = arith.constant 0 : index
    %c0_125 = arith.constant 0 : index
    %169 = vector.load %arg8[%c3_123, %c0_124, %c0_125] : memref<4x32x96xbf16, #tpu.memory_space<vmem>>, vector<1x32x96xbf16>
    %170 = vector.shape_cast %169 : vector<1x32x96xbf16> to vector<32x96xbf16>
    %171 = arith.truncf %168 : vector<96x128xf32> to vector<96x128xbf16>
    %cst_126 = arith.constant dense<0.000000e+00> : vector<32x128xf32>
    %172 = tpu.matmul %170, %171, %cst_126 {dimension_numbers = #tpu.dot_dimension_numbers<[1], [0], [0], [1], [0, 0, 1, 1], [], []>} : vector<32x96xbf16>, vector<96x128xbf16>, vector<32x128xf32> -> vector<32x128xf32>
    %c3_127 = arith.constant 3 : index
    %c0_128 = arith.constant 0 : index
    %c0_129 = arith.constant 0 : index
    %173 = vector.load %arg9[%c3_127, %c0_128, %c0_129] : memref<4x32x1xf32, #tpu.memory_space<vmem>>, vector<1x32x1xf32>
    %174 = vector.shape_cast %173 : vector<1x32x1xf32> to vector<32x1xf32>
    %175 = vector.broadcast %174 : vector<32x1xf32> to vector<32x128xf32>
    %176 = arith.addf %172, %175 : vector<32x128xf32>
    %177 = vector.extract_strided_slice %176 {offsets = [0, 0], sizes = [16, 128], strides = [1, 1]} : vector<32x128xf32> to vector<16x128xf32>
    %178 = math.tanh %177 : vector<16x128xf32>
    %cst_130 = arith.constant 1.900000e+00 : f32
    %179 = vector.broadcast %cst_130 : f32 to vector<16x128xf32>
    %180 = arith.mulf %179, %178 : vector<16x128xf32>
    %181 = math.exp %180 : vector<16x128xf32>
    %182 = arith.mulf %156, %181 : vector<16x128xf32>
    %183 = vector.extract_strided_slice %176 {offsets = [16, 0], sizes = [16, 128], strides = [1, 1]} : vector<32x128xf32> to vector<16x128xf32>
    %184 = arith.addf %182, %183 : vector<16x128xf32>
    %cst_131 = arith.constant dense<0.000000e+00> : vector<128xf32>
    %185 = vector.multi_reduction <add>, %180, %cst_131 [0] : vector<16x128xf32> to vector<128xf32>
    %186 = vector.shape_cast %185 : vector<128xf32> to vector<1x128xf32>
    %187 = arith.addf %141, %186 : vector<1x128xf32>
    %c3_132 = arith.constant 3 : index
    %c0_133 = arith.constant 0 : index
    %c0_134 = arith.constant 0 : index
    %188 = vector.load %arg10[%c3_132, %c0_133, %c0_134] : memref<4x32x16xbf16, #tpu.memory_space<vmem>>, vector<1x32x16xbf16>
    %189 = vector.shape_cast %188 : vector<1x32x16xbf16> to vector<32x16xbf16>
    %c0_135 = arith.constant 0 : index
    %c0_136 = arith.constant 0 : index
    %190 = vector.load %arg14[%c0_135, %c0_136] : memref<48x128xbf16, #tpu.memory_space<vmem>>, vector<16x128xbf16>
    %cst_137 = arith.constant dense<0.000000e+00> : vector<32x128xf32>
    %191 = tpu.matmul %189, %190, %cst_137 {dimension_numbers = #tpu.dot_dimension_numbers<[1], [0], [0], [1], [0, 0, 1, 1], [], []>} : vector<32x16xbf16>, vector<16x128xbf16>, vector<32x128xf32> -> vector<32x128xf32>
    %c3_138 = arith.constant 3 : index
    %c0_139 = arith.constant 0 : index
    %c0_140 = arith.constant 0 : index
    %192 = vector.load %arg11[%c3_138, %c0_139, %c0_140] : memref<4x32x16xbf16, #tpu.memory_space<vmem>>, vector<1x32x16xbf16>
    %193 = vector.shape_cast %192 : vector<1x32x16xbf16> to vector<32x16xbf16>
    %194 = arith.truncf %184 : vector<16x128xf32> to vector<16x128xbf16>
    %cst_141 = arith.constant dense<0.000000e+00> : vector<32x128xf32>
    %195 = tpu.matmul %193, %194, %cst_141 {dimension_numbers = #tpu.dot_dimension_numbers<[1], [0], [0], [1], [0, 0, 1, 1], [], []>} : vector<32x16xbf16>, vector<16x128xbf16>, vector<32x128xf32> -> vector<32x128xf32>
    %196 = arith.addf %191, %195 : vector<32x128xf32>
    %c3_142 = arith.constant 3 : index
    %c0_143 = arith.constant 0 : index
    %c0_144 = arith.constant 0 : index
    %197 = vector.load %arg12[%c3_142, %c0_143, %c0_144] : memref<4x32x1xf32, #tpu.memory_space<vmem>>, vector<1x32x1xf32>
    %198 = vector.shape_cast %197 : vector<1x32x1xf32> to vector<32x1xf32>
    %199 = vector.broadcast %198 : vector<32x1xf32> to vector<32x128xf32>
    %200 = arith.addf %196, %199 : vector<32x128xf32>
    %c1_i32 = arith.constant 1 : i32
    %201 = arith.cmpi eq, %1, %c1_i32 : i32
    %cst_145 = arith.constant -0.918938517 : f32
    %cst_146 = arith.constant -0.918938517 : f32
    %202 = arith.select %201, %cst_145, %cst_146 : f32
    %c1_i32_147 = arith.constant 1 : i32
    %203 = arith.cmpi eq, %1, %c1_i32_147 : i32
    %cst_148 = arith.constant 3.125000e-02 : f32
    %cst_149 = arith.constant 6.250000e-02 : f32
    %204 = arith.select %203, %cst_148, %cst_149 : f32
    %205 = arith.mulf %200, %200 : vector<32x128xf32>
    %cst_150 = arith.constant dense<0.000000e+00> : vector<128xf32>
    %206 = vector.multi_reduction <add>, %205, %cst_150 [0] : vector<32x128xf32> to vector<128xf32>
    %207 = vector.shape_cast %206 : vector<128xf32> to vector<1x128xf32>
    %cst_151 = arith.constant 5.000000e-01 : f32
    %208 = vector.broadcast %cst_151 : f32 to vector<1x128xf32>
    %209 = arith.mulf %208, %207 : vector<1x128xf32>
    %210 = arith.subf %187, %209 : vector<1x128xf32>
    %211 = vector.broadcast %204 : f32 to vector<1x128xf32>
    %212 = arith.mulf %210, %211 : vector<1x128xf32>
    %213 = vector.broadcast %202 : f32 to vector<1x128xf32>
    %214 = arith.addf %213, %212 : vector<1x128xf32>
    %c0_152 = arith.constant 0 : index
    %c0_153 = arith.constant 0 : index
    %215 = vector.load %arg13[%c0_152, %c0_153] : memref<1x128xf32, #tpu.memory_space<vmem>>, vector<1x128xf32>
    tpu.vector_store %arg13[%c0_152, %c0_153], %214 {strides = array<i32>} : memref<1x128xf32, #tpu.memory_space<vmem>>, vector<1x128xf32>,
    return
  }
  func.func @transform_0(%arg0: i32, %arg1: memref<2xi32, #tpu.memory_space<smem>>) -> (i32, i32) {
    %c0_i32 = arith.constant 0 : i32
    %c0_i32_0 = arith.constant 0 : i32
    return %c0_i32, %arg0 : i32, i32
  }
  func.func @transform_1(%arg0: i32, %arg1: memref<2xi32, #tpu.memory_space<smem>>) -> (i32, i32) {
    %c0_i32 = arith.constant 0 : i32
    %c0_i32_0 = arith.constant 0 : i32
    return %c0_i32, %arg0 : i32, i32
  }
  func.func @transform_2(%arg0: i32, %arg1: memref<2xi32, #tpu.memory_space<smem>>) -> (i32, i32, i32) {
    %0 = arith.index_cast %arg0 : i32 to index
    %1 = memref.load %arg1[%0] : memref<2xi32, #tpu.memory_space<smem>>
    %c0_i32 = arith.constant 0 : i32
    %c0_i32_0 = arith.constant 0 : i32
    %c0_i32_1 = arith.constant 0 : i32
    return %1, %c0_i32, %c0_i32_0 : i32, i32, i32
  }
  func.func @transform_3(%arg0: i32, %arg1: memref<2xi32, #tpu.memory_space<smem>>) -> (i32, i32, i32) {
    %0 = arith.index_cast %arg0 : i32 to index
    %1 = memref.load %arg1[%0] : memref<2xi32, #tpu.memory_space<smem>>
    %c0_i32 = arith.constant 0 : i32
    %c0_i32_0 = arith.constant 0 : i32
    %c0_i32_1 = arith.constant 0 : i32
    return %1, %c0_i32, %c0_i32_0 : i32, i32, i32
  }
  func.func @transform_4(%arg0: i32, %arg1: memref<2xi32, #tpu.memory_space<smem>>) -> (i32, i32, i32) {
    %0 = arith.index_cast %arg0 : i32 to index
    %1 = memref.load %arg1[%0] : memref<2xi32, #tpu.memory_space<smem>>
    %c0_i32 = arith.constant 0 : i32
    %c0_i32_0 = arith.constant 0 : i32
    %c0_i32_1 = arith.constant 0 : i32
    return %1, %c0_i32, %c0_i32_0 : i32, i32, i32
  }
  func.func @transform_5(%arg0: i32, %arg1: memref<2xi32, #tpu.memory_space<smem>>) -> (i32, i32, i32) {
    %0 = arith.index_cast %arg0 : i32 to index
    %1 = memref.load %arg1[%0] : memref<2xi32, #tpu.memory_space<smem>>
    %c0_i32 = arith.constant 0 : i32
    %c0_i32_0 = arith.constant 0 : i32
    %c0_i32_1 = arith.constant 0 : i32
    return %1, %c0_i32, %c0_i32_0 : i32, i32, i32
  }
  func.func @transform_6(%arg0: i32, %arg1: memref<2xi32, #tpu.memory_space<smem>>) -> (i32, i32, i32) {
    %0 = arith.index_cast %arg0 : i32 to index
    %1 = memref.load %arg1[%0] : memref<2xi32, #tpu.memory_space<smem>>
    %c0_i32 = arith.constant 0 : i32
    %c0_i32_0 = arith.constant 0 : i32
    %c0_i32_1 = arith.constant 0 : i32
    return %1, %c0_i32, %c0_i32_0 : i32, i32, i32
  }
  func.func @transform_7(%arg0: i32, %arg1: memref<2xi32, #tpu.memory_space<smem>>) -> (i32, i32, i32) {
    %0 = arith.index_cast %arg0 : i32 to index
    %1 = memref.load %arg1[%0] : memref<2xi32, #tpu.memory_space<smem>>
    %c0_i32 = arith.constant 0 : i32
    %c0_i32_0 = arith.constant 0 : i32
    %c0_i32_1 = arith.constant 0 : i32
    return %1, %c0_i32, %c0_i32_0 : i32, i32, i32
  }
  func.func @transform_8(%arg0: i32, %arg1: memref<2xi32, #tpu.memory_space<smem>>) -> (i32, i32, i32) {
    %0 = arith.index_cast %arg0 : i32 to index
    %1 = memref.load %arg1[%0] : memref<2xi32, #tpu.memory_space<smem>>
    %c0_i32 = arith.constant 0 : i32
    %c0_i32_0 = arith.constant 0 : i32
    %c0_i32_1 = arith.constant 0 : i32
    return %1, %c0_i32, %c0_i32_0 : i32, i32, i32
  }
  func.func @transform_9(%arg0: i32, %arg1: memref<2xi32, #tpu.memory_space<smem>>) -> (i32, i32, i32) {
    %0 = arith.index_cast %arg0 : i32 to index
    %1 = memref.load %arg1[%0] : memref<2xi32, #tpu.memory_space<smem>>
    %c0_i32 = arith.constant 0 : i32
    %c0_i32_0 = arith.constant 0 : i32
    %c0_i32_1 = arith.constant 0 : i32
    return %1, %c0_i32, %c0_i32_0 : i32, i32, i32
  }
  func.func @transform_10(%arg0: i32, %arg1: memref<2xi32, #tpu.memory_space<smem>>) -> (i32, i32, i32) {
    %0 = arith.index_cast %arg0 : i32 to index
    %1 = memref.load %arg1[%0] : memref<2xi32, #tpu.memory_space<smem>>
    %c0_i32 = arith.constant 0 : i32
    %c0_i32_0 = arith.constant 0 : i32
    %c0_i32_1 = arith.constant 0 : i32
    return %1, %c0_i32, %c0_i32_0 : i32, i32, i32
  }
  func.func @transform_11(%arg0: i32, %arg1: memref<2xi32, #tpu.memory_space<smem>>) -> (i32, i32) {
    %c0_i32 = arith.constant 0 : i32
    %c0_i32_0 = arith.constant 0 : i32
    return %c0_i32, %arg0 : i32, i32
  }
}

</mosaic_0001>

<llo_original>
// kernel: _forward.1
$region0: #{_forward.1}
  #allocation0 [shape = 'u32[]', space=smem, size = 0x4, offset = 0x4, fixed_abs, tag = 'smem constant byte address 0x4 - core index']
  #allocation1 [shape = 'u32[144,128]{1,0:T(1,128)}', space=vmem, size = 0x12000, scoped, tag = 'internal scratch']
  #allocation2 [shape = 'bf16[48,128]{1,0:T(16,128)(2,1)}', space=vmem, size = 0x3000, scoped, tag = 'scratch operand']
  #allocation3 [shape = 's32[1]{0}', space=sflag, size = 0x4, scoped, tag = 'scoped memory for _forward.1']
  #allocation4 [shape = 'u8[512]{0}', space=smem, size = 0x200, scoped, tag = 'prefetched SMEM operand 0']
  %s0 = inlined_call_operand.vmem [shape: s32[2], index: 0, kind: input, shape index: {}]
  %s1 = inlined_call_operand.vmem [shape: f32[8,256], index: 1, kind: input, shape index: {}]
  %s2 = inlined_call_operand.vmem [shape: f32[32,256], index: 2, kind: input, shape index: {}]
  %s3 = inlined_call_operand.vmem [shape: bf16[2,32,8], index: 3, kind: input, shape index: {}]
  %s4 = inlined_call_operand.vmem [shape: f32[2,32,1], index: 4, kind: input, shape index: {}]
  %s5 = inlined_call_operand.vmem [shape: bf16[8,96,48], index: 5, kind: input, shape index: {}]
  %s6 = inlined_call_operand.vmem [shape: f32[8,96,1], index: 6, kind: input, shape index: {}]
  %s7 = inlined_call_operand.vmem [shape: bf16[8,32,96], index: 7, kind: input, shape index: {}]
  %s8 = inlined_call_operand.vmem [shape: f32[8,32,1], index: 8, kind: input, shape index: {}]
  %s9 = inlined_call_operand.vmem [shape: bf16[8,32,16], index: 9, kind: input, shape index: {}]
  %s10 = inlined_call_operand.vmem [shape: bf16[8,32,16], index: 10, kind: input, shape index: {}]
  %s11 = inlined_call_operand.vmem [shape: f32[8,32,1], index: 11, kind: input, shape index: {}]
  %s12 = inlined_call_operand.vmem [shape: f32[1,256], index: 12, kind: output, shape index: {}]
  %s13 = sld [smem:[#allocation0]]
  $region115: #{_forward.1} parent=0
    _
  %s15 = ssub.s32 1, %s13
  %s16 = scalar_select 0, %s15, %s13
  %s17 = sshll.u32 %s0, 4
  %s18 = int_to_ptr.vmem [resolvable:$true] %s17
  %20 = dma.vmem_to_smem %s18, 16, [#allocation4], [#allocation3]
  %21 = dma.done [#allocation3], 16
  %22 = sfence
  $region1: #{_forward.1} parent=0
    #allocation5 [shape = 'u8[32768]{0}', space=vmem, size = 0x8000, scoped, tag = 'input window, operand 2']
    loop: start=0, step=1, limit=4
    $region2: #{_forward.1} parent=1 // loop_pre_header
      _
    $region3: #{_forward.1} parent=1 // loop_header
      %s24 = sphi 0, %s28
      %p25 = scmp.ge.s32.totalorder %s24, 4
      %s34 = sphi 0, %s36
      %s37 = sphi 0, %s34
      %s38 = sphi 0, %s37
      %s54 = sphi 0, %s38
      %s60 = sphi 0, %s62
      %s63 = sphi 0, %s60
      %s64 = sphi 0, %s63
      %s80 = sphi 0, %s64
      %s88 = sphi 0, %s90
      %s91 = sphi 0, %s88
      %s92 = sphi 0, %s91
      %s108 = sphi 0, %s92
      %s116 = sphi 0, %s118
      %s119 = sphi 0, %s116
      %s120 = sphi 0, %s119
      %s136 = sphi 0, %s120
      %s144 = sphi 0, %s146
      %s147 = sphi 0, %s144
      %s148 = sphi 0, %s147
      %s164 = sphi 0, %s148
      %s172 = sphi 0, %s174
      %s175 = sphi 0, %s172
      %s176 = sphi 0, %s175
      %s192 = sphi 0, %s176
      %s200 = sphi 0, %s202
      %s203 = sphi 0, %s200
      %s204 = sphi 0, %s203
      %s220 = sphi 0, %s204
      %s228 = sphi 0, %s230
      %s231 = sphi 0, %s228
      %s232 = sphi 0, %s231
      %s248 = sphi 0, %s232
      %s256 = sphi 0, %s258
      %s259 = sphi 0, %s256
      %s260 = sphi 0, %s259
      %s276 = sphi 0, %s260
      %s284 = sphi 0, %s286
      %s287 = sphi 0, %s284
      %s288 = sphi 0, %s287
      %s304 = sphi 0, %s288
      %s312 = sphi 0, %s314
      %s315 = sphi 0, %s312
      %s316 = sphi 0, %s315
      %s332 = sphi 0, %s316
      %s338 = sphi 0, %s340
      %s341 = sphi 0, %s338
      %s342 = sphi 0, %s341
      %s358 = sphi 0, %s342
    $region4: #{_forward.1} parent=1 // loop_header_branch
      %27 = sbr.rel (%p25) target = $region8
    $region5: #{_forward.1} parent=1 // loop_body
      %s29 = ssub.s32 %s24, 1
      %s30 = ssub.s32 %s24, 2
      %s31 = sadd.s32 %s24, 1
      %s32 = ssub.s32 %s24, %s31
      %p33 = scmp.eq.s32.totalorder %s32, 0
      %s35 = sadd.s32 %s34, 1
      %s36 = scalar_select %p33, %s34, %s35
      %p39 = pneg %p33
      %p40 = scmp.eq.s32.totalorder %s24, 1
      %p41 = por %p39, %p40
      %p42 = scmp.ne.s32.totalorder %s34, %s37
      %p43 = scmp.eq.s32.totalorder %s24, 0
      %p44 = por %p42, %p43
      %p45 = scmp.ne.s32.totalorder %s34, %s37
      %p46 = scmp.eq.s32.totalorder %s29, 1
      %p47 = por %p45, %p46
      %p48 = scmp.ne.s32.totalorder %s37, %s38
      %p49 = scmp.eq.s32.totalorder %s29, 0
      %p50 = por %p48, %p49
      %p51 = scmp.ne.s32.totalorder %s37, %s38
      %p52 = scmp.eq.s32.totalorder %s30, 1
      %p53 = por %p51, %p52
      %p55 = scmp.ne.s32.totalorder %s38, %s54
      %p56 = scmp.eq.s32.totalorder %s30, 0
      %p57 = por %p55, %p56
      %s58 = ssub.s32 %s24, %s31
      %p59 = scmp.eq.s32.totalorder %s58, 0
      %s61 = sadd.s32 %s60, 1
      %s62 = scalar_select %p59, %s60, %s61
      %p65 = pneg %p59
      %p66 = scmp.eq.s32.totalorder %s24, 1
      %p67 = por %p65, %p66
      %p68 = scmp.ne.s32.totalorder %s60, %s63
      %p69 = scmp.eq.s32.totalorder %s24, 0
      %p70 = por %p68, %p69
      %p71 = scmp.ne.s32.totalorder %s60, %s63
      %p72 = scmp.eq.s32.totalorder %s29, 1
      %p73 = por %p71, %p72
      %p74 = scmp.ne.s32.totalorder %s63, %s64
      %p75 = scmp.eq.s32.totalorder %s29, 0
      %p76 = por %p74, %p75
      %p77 = scmp.ne.s32.totalorder %s63, %s64
      %p78 = scmp.eq.s32.totalorder %s30, 1
      %p79 = por %p77, %p78
      %p81 = scmp.ne.s32.totalorder %s64, %s80
      %p82 = scmp.eq.s32.totalorder %s30, 0
      %p83 = por %p81, %p82
      %s84 = sld [smem:[#allocation4 + %s24]]
      %s85 = sld [smem:[#allocation4 + %s31]]
      %s86 = ssub.s32 %s84, %s85
      %p87 = scmp.eq.s32.totalorder %s86, 0
      %s89 = sadd.s32 %s88, 1
      %s90 = scalar_select %p87, %s88, %s89
      %p93 = pneg %p87
      %p94 = scmp.eq.s32.totalorder %s24, 1
      %p95 = por %p93, %p94
      %p96 = scmp.ne.s32.totalorder %s88, %s91
      %p97 = scmp.eq.s32.totalorder %s24, 0
      %p98 = por %p96, %p97
      %p99 = scmp.ne.s32.totalorder %s88, %s91
      %p100 = scmp.eq.s32.totalorder %s29, 1
      %p101 = por %p99, %p100
      %p102 = scmp.ne.s32.totalorder %s91, %s92
      %p103 = scmp.eq.s32.totalorder %s29, 0
      %p104 = por %p102, %p103
      %p105 = scmp.ne.s32.totalorder %s91, %s92
      %p106 = scmp.eq.s32.totalorder %s30, 1
      %p107 = por %p105, %p106
      %p109 = scmp.ne.s32.totalorder %s92, %s108
      %p110 = scmp.eq.s32.totalorder %s30, 0
      %p111 = por %p109, %p110
      %s112 = sld [smem:[#allocation4 + %s24]]
      %s113 = sld [smem:[#allocation4 + %s31]]
      %s114 = ssub.s32 %s112, %s113
      %p115 = scmp.eq.s32.totalorder %s114, 0
      %s117 = sadd.s32 %s116, 1
      %s118 = scalar_select %p115, %s116, %s117
      %p121 = pneg %p115
      %p122 = scmp.eq.s32.totalorder %s24, 1
      %p123 = por %p121, %p122
      %p124 = scmp.ne.s32.totalorder %s116, %s119
      %p125 = scmp.eq.s32.totalorder %s24, 0
      %p126 = por %p124, %p125
      %p127 = scmp.ne.s32.totalorder %s116, %s119
      %p128 = scmp.eq.s32.totalorder %s29, 1
      %p129 = por %p127, %p128
      %p130 = scmp.ne.s32.totalorder %s119, %s120
      %p131 = scmp.eq.s32.totalorder %s29, 0
      %p132 = por %p130, %p131
      %p133 = scmp.ne.s32.totalorder %s119, %s120
      %p134 = scmp.eq.s32.totalorder %s30, 1
      %p135 = por %p133, %p134
      %p137 = scmp.ne.s32.totalorder %s120, %s136
      %p138 = scmp.eq.s32.totalorder %s30, 0
      %p139 = por %p137, %p138
      %s140 = sld [smem:[#allocation4 + %s24]]
      %s141 = sld [smem:[#allocation4 + %s31]]
      %s142 = ssub.s32 %s140, %s141
      %p143 = scmp.eq.s32.totalorder %s142, 0
      %s145 = sadd.s32 %s144, 1
      %s146 = scalar_select %p143, %s144, %s145
      %p149 = pneg %p143
      %p150 = scmp.eq.s32.totalorder %s24, 1
      %p151 = por %p149, %p150
      %p152 = scmp.ne.s32.totalorder %s144, %s147
      %p153 = scmp.eq.s32.totalorder %s24, 0
      %p154 = por %p152, %p153
      %p155 = scmp.ne.s32.totalorder %s144, %s147
      %p156 = scmp.eq.s32.totalorder %s29, 1
      %p157 = por %p155, %p156
      %p158 = scmp.ne.s32.totalorder %s147, %s148
      %p159 = scmp.eq.s32.totalorder %s29, 0
      %p160 = por %p158, %p159
      %p161 = scmp.ne.s32.totalorder %s147, %s148
      %p162 = scmp.eq.s32.totalorder %s30, 1
      %p163 = por %p161, %p162
      %p165 = scmp.ne.s32.totalorder %s148, %s164
      %p166 = scmp.eq.s32.totalorder %s30, 0
      %p167 = por %p165, %p166
      %s168 = sld [smem:[#allocation4 + %s24]]
      %s169 = sld [smem:[#allocation4 + %s31]]
      %s170 = ssub.s32 %s168, %s169
      %p171 = scmp.eq.s32.totalorder %s170, 0
      %s173 = sadd.s32 %s172, 1
      %s174 = scalar_select %p171, %s172, %s173
      %p177 = pneg %p171
      %p178 = scmp.eq.s32.totalorder %s24, 1
      %p179 = por %p177, %p178
      %p180 = scmp.ne.s32.totalorder %s172, %s175
      %p181 = scmp.eq.s32.totalorder %s24, 0
      %p182 = por %p180, %p181
      %p183 = scmp.ne.s32.totalorder %s172, %s175
      %p184 = scmp.eq.s32.totalorder %s29, 1
      %p185 = por %p183, %p184
      %p186 = scmp.ne.s32.totalorder %s175, %s176
      %p187 = scmp.eq.s32.totalorder %s29, 0
      %p188 = por %p186, %p187
      %p189 = scmp.ne.s32.totalorder %s175, %s176
      %p190 = scmp.eq.s32.totalorder %s30, 1
      %p191 = por %p189, %p190
      %p193 = scmp.ne.s32.totalorder %s176, %s192
      %p194 = scmp.eq.s32.totalorder %s30, 0
      %p195 = por %p193, %p194
      %s196 = sld [smem:[#allocation4 + %s24]]
      %s197 = sld [smem:[#allocation4 + %s31]]
      %s198 = ssub.s32 %s196, %s197
      %p199 = scmp.eq.s32.totalorder %s198, 0
      %s201 = sadd.s32 %s200, 1
      %s202 = scalar_select %p199, %s200, %s201
      %p205 = pneg %p199
      %p206 = scmp.eq.s32.totalorder %s24, 1
      %p207 = por %p205, %p206
      %p208 = scmp.ne.s32.totalorder %s200, %s203
      %p209 = scmp.eq.s32.totalorder %s24, 0
      %p210 = por %p208, %p209
      %p211 = scmp.ne.s32.totalorder %s200, %s203
      %p212 = scmp.eq.s32.totalorder %s29, 1
      %p213 = por %p211, %p212
      %p214 = scmp.ne.s32.totalorder %s203, %s204
      %p215 = scmp.eq.s32.totalorder %s29, 0
      %p216 = por %p214, %p215
      %p217 = scmp.ne.s32.totalorder %s203, %s204
      %p218 = scmp.eq.s32.totalorder %s30, 1
      %p219 = por %p217, %p218
      %p221 = scmp.ne.s32.totalorder %s204, %s220
      %p222 = scmp.eq.s32.totalorder %s30, 0
      %p223 = por %p221, %p222
      %s224 = sld [smem:[#allocation4 + %s24]]
      %s225 = sld [smem:[#allocation4 + %s31]]
      %s226 = ssub.s32 %s224, %s225
      %p227 = scmp.eq.s32.totalorder %s226, 0
      %s229 = sadd.s32 %s228, 1
      %s230 = scalar_select %p227, %s228, %s229
      %p233 = pneg %p227
      %p234 = scmp.eq.s32.totalorder %s24, 1
      %p235 = por %p233, %p234
      %p236 = scmp.ne.s32.totalorder %s228, %s231
      %p237 = scmp.eq.s32.totalorder %s24, 0
      %p238 = por %p236, %p237
      %p239 = scmp.ne.s32.totalorder %s228, %s231
      %p240 = scmp.eq.s32.totalorder %s29, 1
      %p241 = por %p239, %p240
      %p242 = scmp.ne.s32.totalorder %s231, %s232
      %p243 = scmp.eq.s32.totalorder %s29, 0
      %p244 = por %p242, %p243
      %p245 = scmp.ne.s32.totalorder %s231, %s232
      %p246 = scmp.eq.s32.totalorder %s30, 1
      %p247 = por %p245, %p246
      %p249 = scmp.ne.s32.totalorder %s232, %s248
      %p250 = scmp.eq.s32.totalorder %s30, 0
      %p251 = por %p249, %p250
      %s252 = sld [smem:[#allocation4 + %s24]]
      %s253 = sld [smem:[#allocation4 + %s31]]
      %s254 = ssub.s32 %s252, %s253
      %p255 = scmp.eq.s32.totalorder %s254, 0
      %s257 = sadd.s32 %s256, 1
      %s258 = scalar_select %p255, %s256, %s257
      %p261 = pneg %p255
      %p262 = scmp.eq.s32.totalorder %s24, 1
      %p263 = por %p261, %p262
      %p264 = scmp.ne.s32.totalorder %s256, %s259
      %p265 = scmp.eq.s32.totalorder %s24, 0
      %p266 = por %p264, %p265
      %p267 = scmp.ne.s32.totalorder %s256, %s259
      %p268 = scmp.eq.s32.totalorder %s29, 1
      %p269 = por %p267, %p268
      %p270 = scmp.ne.s32.totalorder %s259, %s260
      %p271 = scmp.eq.s32.totalorder %s29, 0
      %p272 = por %p270, %p271
      %p273 = scmp.ne.s32.totalorder %s259, %s260
      %p274 = scmp.eq.s32.totalorder %s30, 1
      %p275 = por %p273, %p274
      %p277 = scmp.ne.s32.totalorder %s260, %s276
      %p278 = scmp.eq.s32.totalorder %s30, 0
      %p279 = por %p277, %p278
      %s280 = sld [smem:[#allocation4 + %s24]]
      %s281 = sld [smem:[#allocation4 + %s31]]
      %s282 = ssub.s32 %s280, %s281
      %p283 = scmp.eq.s32.totalorder %s282, 0
      %s285 = sadd.s32 %s284, 1
      %s286 = scalar_select %p283, %s284, %s285
      %p289 = pneg %p283
      %p290 = scmp.eq.s32.totalorder %s24, 1
      %p291 = por %p289, %p290
      %p292 = scmp.ne.s32.totalorder %s284, %s287
      %p293 = scmp.eq.s32.totalorder %s24, 0
      %p294 = por %p292, %p293
      %p295 = scmp.ne.s32.totalorder %s284, %s287
      %p296 = scmp.eq.s32.totalorder %s29, 1
      %p297 = por %p295, %p296
      %p298 = scmp.ne.s32.totalorder %s287, %s288
      %p299 = scmp.eq.s32.totalorder %s29, 0
      %p300 = por %p298, %p299
      %p301 = scmp.ne.s32.totalorder %s287, %s288
      %p302 = scmp.eq.s32.totalorder %s30, 1
      %p303 = por %p301, %p302
      %p305 = scmp.ne.s32.totalorder %s288, %s304
      %p306 = scmp.eq.s32.totalorder %s30, 0
      %p307 = por %p305, %p306
      %s308 = sld [smem:[#allocation4 + %s24]]
      %s309 = sld [smem:[#allocation4 + %s31]]
      %s310 = ssub.s32 %s308, %s309
      %p311 = scmp.eq.s32.totalorder %s310, 0
      %s313 = sadd.s32 %s312, 1
      %s314 = scalar_select %p311, %s312, %s313
      %p317 = pneg %p311
      %p318 = scmp.eq.s32.totalorder %s24, 1
      %p319 = por %p317, %p318
      %p320 = scmp.ne.s32.totalorder %s312, %s315
      %p321 = scmp.eq.s32.totalorder %s24, 0
      %p322 = por %p320, %p321
      %p323 = scmp.ne.s32.totalorder %s312, %s315
      %p324 = scmp.eq.s32.totalorder %s29, 1
      %p325 = por %p323, %p324
      %p326 = scmp.ne.s32.totalorder %s315, %s316
      %p327 = scmp.eq.s32.totalorder %s29, 0
      %p328 = por %p326, %p327
      %p329 = scmp.ne.s32.totalorder %s315, %s316
      %p330 = scmp.eq.s32.totalorder %s30, 1
      %p331 = por %p329, %p330
      %p333 = scmp.ne.s32.totalorder %s316, %s332
      %p334 = scmp.eq.s32.totalorder %s30, 0
      %p335 = por %p333, %p334
      %s336 = ssub.s32 %s24, %s31
      %p337 = scmp.eq.s32.totalorder %s336, 0
      %s339 = sadd.s32 %s338, 1
      %s340 = scalar_select %p337, %s338, %s339
      %p343 = pneg %p337
      %p344 = scmp.eq.s32.totalorder %s24, 1
      %p345 = por %p343, %p344
      %p346 = scmp.ne.s32.totalorder %s338, %s341
      %p347 = scmp.eq.s32.totalorder %s24, 0
      %p348 = por %p346, %p347
      %p349 = scmp.ne.s32.totalorder %s338, %s341
      %p350 = scmp.eq.s32.totalorder %s29, 1
      %p351 = por %p349, %p350
      %p352 = scmp.ne.s32.totalorder %s341, %s342
      %p353 = scmp.eq.s32.totalorder %s29, 0
      %p354 = por %p352, %p353
      %p355 = scmp.ne.s32.totalorder %s341, %s342
      %p356 = scmp.eq.s32.totalorder %s30, 1
      %p357 = por %p355, %p356
      %p359 = scmp.ne.s32.totalorder %s342, %s358
      %p360 = scmp.eq.s32.totalorder %s30, 0
      %p361 = por %p359, %p360
      %p362 = scmp.le.s32.totalorder 1, %s24
      %p363 = scmp.lt.s32.totalorder %s24, 3
      %p364 = pnand %p362, %p363
      %p365 = pneg %p364
      // Predicated region
      $region9: #{_forward.1} parent=5 // pred_check
        _
      $region10: #{_forward.1} parent=5 // pred_check_branch
        %367 = sbr.rel (%p364) target = $region12
      $region11: #{_forward.1} parent=5 // pred_region
        %s368 = ssub.s32 %s24, 1
      $region12: #{_forward.1} parent=5 // pred_fallthru
        _
      %p369 = scmp.lt.s32.totalorder %s24, 2
      // Predicated region
      $region13: #{_forward.1} parent=5 // pred_check
        %p370 = pneg %p369
      $region14: #{_forward.1} parent=5 // pred_check_branch
        %372 = sbr.rel (%p370) target = $region16
      $region15: #{_forward.1} parent=5 // pred_region
        // Predicated region
        $region17: #{_forward.1} parent=15 // pred_check
          %p373 = pneg %p44
        $region18: #{_forward.1} parent=15 // pred_check_branch
          %375 = sbr.rel (%p373) target = $region20
        $region19: #{_forward.1} parent=15 // pred_region
          %p376 = scmp.lt.s32.totalorder %s24, 1
          %s377 = scalar_select %p376, %s24, 1
          %s378 = smul.addr %s377, 8
          %s379 = scalar_lea.vmem %s1, %s378
        $region20: #{_forward.1} parent=15 // pred_fallthru
          _
        // Predicated region
        $region21: #{_forward.1} parent=15 // pred_check
          %p380 = pneg %p70
        $region22: #{_forward.1} parent=15 // pred_check_branch
          %382 = sbr.rel (%p380) target = $region24
        $region23: #{_forward.1} parent=15 // pred_region
          %s383 = sand.u32 %s60, 1
          %s384 = sand.u32 %s60, 1
          %s385 = smul.addr %s384, 32
          %s386 = scalar_lea.vmem [#allocation5], %s385
          %s387 = smul.addr %s24, 8
          %s388 = scalar_lea.vmem %s2, %s387
          // Predicated region
          $region25: #{_forward.1} parent=23 // pred_check
            _
          $region26: #{_forward.1} parent=23 // pred_check_branch
            %390 = sbr.rel (0) target = $region28
          $region27: #{_forward.1} parent=23 // pred_region
            // Predicated region
            $region29: #{_forward.1} parent=27 // pred_check
              _
            $region30: #{_forward.1} parent=27 // pred_check_branch
              %392 = sbr.rel (0) target = $region32
            $region31: #{_forward.1} parent=27 // pred_region
              // Predicated region
              $region44: #{_forward.1} parent=31 // pred_check
                _
              $region45: #{_forward.1} parent=31 // pred_check_branch
                %413 = sbr.rel (0) target = $region47
              $region46: #{_forward.1} parent=31 // pred_region
                loop: start=0, step=1, limit=1
                $region48: #{_forward.1} parent=46 // loop_pre_header
                  _
                $region49: #{_forward.1} parent=46 // loop_header
                  %s415 = sphi 0, %s419
                  %p416 = scmp.ge.s32.totalorder %s415, 1
                  %s420 = sphi %s388, %s388
                  %s421 = sphi %s386, %s386
                $region50: #{_forward.1} parent=46 // loop_header_branch
                  %418 = sbr.rel (%p416) target = $region54
                $region51: #{_forward.1} parent=46 // loop_body
                  %v422 = vld [vmem:[%s420] sm:$0xff]
                  %423 = vst [vmem:[%s421] sm:$0xff] %v422
                  %v424 = vld [vmem:[%s420 + $0x10] sm:$0xff]
                  %425 = vst [vmem:[%s421 + $0x8] sm:$0xff] %v424
                  %v426 = vld [vmem:[%s420 + $0x20] sm:$0xff]
                  %427 = vst [vmem:[%s421 + $0x10] sm:$0xff] %v426
                  %v428 = vld [vmem:[%s420 + $0x30] sm:$0xff]
                  %429 = vst [vmem:[%s421 + $0x18] sm:$0xff] %v428
                $region52: #{_forward.1} parent=46 // loop_footer
                  %s419 = sadd.s32 1, %s415
                $region53: #{_forward.1} parent=46 // loop_footer_branch
                  %414 = sbr.rel target = $region49
                $region54: #{_forward.1} parent=46 // loop_exit
                  _
              $region47: #{_forward.1} parent=31 // pred_fallthru
                _
              // Predicated region
              $region55: #{_forward.1} parent=31 // pred_check
                _
              $region56: #{_forward.1} parent=31 // pred_check_branch
                %431 = sbr.rel target = $region58
              $region57: #{_forward.1} parent=31 // pred_region
                _
              $region58: #{_forward.1} parent=31 // pred_fallthru
                _
            $region32: #{_forward.1} parent=27 // pred_fallthru
              _
            // Predicated region
            $region33: #{_forward.1} parent=27 // pred_check
              _
            $region34: #{_forward.1} parent=27 // pred_check_branch
              %394 = sbr.rel target = $region36
            $region35: #{_forward.1} parent=27 // pred_region
              loop: start=0, step=1, limit=1
              $region37: #{_forward.1} parent=35 // loop_pre_header
                _
              $region38: #{_forward.1} parent=35 // loop_header
                %s397 = sphi 0, %s401
                %p398 = scmp.ge.s32.totalorder %s397, 1
                %s402 = sphi %s388, %s388
                %s403 = sphi %s386, %s386
              $region39: #{_forward.1} parent=35 // loop_header_branch
                %400 = sbr.rel (%p398) target = $region43
              $region40: #{_forward.1} parent=35 // loop_body
                %v404 = vld [vmem:[%s402] sm:$0xff]
                %405 = vst [vmem:[%s403] sm:$0xff] %v404
                %v406 = vld [vmem:[%s402 + $0x10] sm:$0xff]
                %407 = vst [vmem:[%s403 + $0x8] sm:$0xff] %v406
                %v408 = vld [vmem:[%s402 + $0x20] sm:$0xff]
                %409 = vst [vmem:[%s403 + $0x10] sm:$0xff] %v408
                %v410 = vld [vmem:[%s402 + $0x30] sm:$0xff]
                %411 = vst [vmem:[%s403 + $0x18] sm:$0xff] %v410
              $region41: #{_forward.1} parent=35 // loop_footer
                %s401 = sadd.s32 1, %s397
              $region42: #{_forward.1} parent=35 // loop_footer_branch
                %396 = sbr.rel target = $region38
              $region43: #{_forward.1} parent=35 // loop_exit
                _
            $region36: #{_forward.1} parent=27 // pred_fallthru
              _
          $region28: #{_forward.1} parent=23 // pred_fallthru
            _
          %432 = vnop
        $region24: #{_forward.1} parent=15 // pred_fallthru
          _
        // Predicated region
        $region59: #{_forward.1} parent=15 // pred_check
          %p433 = pneg %p98
        $region60: #{_forward.1} parent=15 // pred_check_branch
          %435 = sbr.rel (%p433) target = $region62
        $region61: #{_forward.1} parent=15 // pred_region
          %s436 = sld [smem:[#allocation4 + %s24]]
          %p437 = scmp.lt.s32.totalorder %s436, 1
          %s438 = scalar_select %p437, %s436, 1
          %s439 = smul.addr %s438, 4
          %s440 = smul.addr %s439, 4
          %s441 = scalar_lea.vmem %s3, %s440
          %s442 = sld [smem:[#allocation4 + %s24]]
        $region62: #{_forward.1} parent=15 // pred_fallthru
          _
        // Predicated region
        $region63: #{_forward.1} parent=15 // pred_check
          %p443 = pneg %p126
        $region64: #{_forward.1} parent=15 // pred_check_branch
          %445 = sbr.rel (%p443) target = $region66
        $region65: #{_forward.1} parent=15 // pred_region
          %s446 = sld [smem:[#allocation4 + %s24]]
          %p447 = scmp.lt.s32.totalorder %s446, 1
          %s448 = scalar_select %p447, %s446, 1
          %s449 = smul.addr %s448, 4
          %s450 = smul.addr %s449, 8
          %s451 = scalar_lea.vmem %s4, %s450
          %s452 = sld [smem:[#allocation4 + %s24]]
        $region66: #{_forward.1} parent=15 // pred_fallthru
          _
        // Predicated region
        $region67: #{_forward.1} parent=15 // pred_check
          %p453 = pneg %p154
        $region68: #{_forward.1} parent=15 // pred_check_branch
          %455 = sbr.rel (%p453) target = $region70
        $region69: #{_forward.1} parent=15 // pred_region
          %s456 = sld [smem:[#allocation4 + %s24]]
          %s457 = smul.u32 4, %s456
          %p458 = scmp.lt.s32.totalorder %s457, 7
          %s459 = scalar_select %p458, %s457, 7
          %s460 = smul.addr %s459, 12
          %s461 = smul.addr %s460, 4
          %s462 = scalar_lea.vmem %s5, %s461
          %s463 = sld [smem:[#allocation4 + %s24]]
          %s464 = smul.u32 4, %s463
        $region70: #{_forward.1} parent=15 // pred_fallthru
          _
        // Predicated region
        $region71: #{_forward.1} parent=15 // pred_check
          %p465 = pneg %p182
        $region72: #{_forward.1} parent=15 // pred_check_branch
          %467 = sbr.rel (%p465) target = $region74
        $region73: #{_forward.1} parent=15 // pred_region
          %s468 = sld [smem:[#allocation4 + %s24]]
          %s469 = smul.u32 4, %s468
          %p470 = scmp.lt.s32.totalorder %s469, 7
          %s471 = scalar_select %p470, %s469, 7
          %s472 = smul.addr %s471, 12
          %s473 = smul.addr %s472, 8
          %s474 = scalar_lea.vmem %s6, %s473
          %s475 = sld [smem:[#allocation4 + %s24]]
          %s476 = smul.u32 4, %s475
        $region74: #{_forward.1} parent=15 // pred_fallthru
          _
        // Predicated region
        $region75: #{_forward.1} parent=15 // pred_check
          %p477 = pneg %p210
        $region76: #{_forward.1} parent=15 // pred_check_branch
          %479 = sbr.rel (%p477) target = $region78
        $region77: #{_forward.1} parent=15 // pred_region
          %s480 = sld [smem:[#allocation4 + %s24]]
          %s481 = smul.u32 4, %s480
          %p482 = scmp.lt.s32.totalorder %s481, 7
          %s483 = scalar_select %p482, %s481, 7
          %s484 = smul.addr %s483, 4
          %s485 = smul.addr %s484, 4
          %s486 = scalar_lea.vmem %s7, %s485
          %s487 = sld [smem:[#allocation4 + %s24]]
          %s488 = smul.u32 4, %s487
        $region78: #{_forward.1} parent=15 // pred_fallthru
          _
        // Predicated region
        $region79: #{_forward.1} parent=15 // pred_check
          %p489 = pneg %p238
        $region80: #{_forward.1} parent=15 // pred_check_branch
          %491 = sbr.rel (%p489) target = $region82
        $region81: #{_forward.1} parent=15 // pred_region
          %s492 = sld [smem:[#allocation4 + %s24]]
          %s493 = smul.u32 4, %s492
          %p494 = scmp.lt.s32.totalorder %s493, 7
          %s495 = scalar_select %p494, %s493, 7
          %s496 = smul.addr %s495, 4
          %s497 = smul.addr %s496, 8
          %s498 = scalar_lea.vmem %s8, %s497
          %s499 = sld [smem:[#allocation4 + %s24]]
          %s500 = smul.u32 4, %s499
        $region82: #{_forward.1} parent=15 // pred_fallthru
          _
        // Predicated region
        $region83: #{_forward.1} parent=15 // pred_check
          %p501 = pneg %p266
        $region84: #{_forward.1} parent=15 // pred_check_branch
          %503 = sbr.rel (%p501) target = $region86
        $region85: #{_forward.1} parent=15 // pred_region
          %s504 = sld [smem:[#allocation4 + %s24]]
          %s505 = smul.u32 4, %s504
          %p506 = scmp.lt.s32.totalorder %s505, 7
          %s507 = scalar_select %p506, %s505, 7
          %s508 = smul.addr %s507, 4
          %s509 = smul.addr %s508, 4
          %s510 = scalar_lea.vmem %s9, %s509
          %s511 = sld [smem:[#allocation4 + %s24]]
          %s512 = smul.u32 4, %s511
        $region86: #{_forward.1} parent=15 // pred_fallthru
          _
        // Predicated region
        $region87: #{_forward.1} parent=15 // pred_check
          %p513 = pneg %p294
        $region88: #{_forward.1} parent=15 // pred_check_branch
          %515 = sbr.rel (%p513) target = $region90
        $region89: #{_forward.1} parent=15 // pred_region
          %s516 = sld [smem:[#allocation4 + %s24]]
          %s517 = smul.u32 4, %s516
          %p518 = scmp.lt.s32.totalorder %s517, 7
          %s519 = scalar_select %p518, %s517, 7
          %s520 = smul.addr %s519, 4
          %s521 = smul.addr %s520, 4
          %s522 = scalar_lea.vmem %s10, %s521
          %s523 = sld [smem:[#allocation4 + %s24]]
          %s524 = smul.u32 4, %s523
        $region90: #{_forward.1} parent=15 // pred_fallthru
          _
        // Predicated region
        $region91: #{_forward.1} parent=15 // pred_check
          %p525 = pneg %p322
        $region92: #{_forward.1} parent=15 // pred_check_branch
          %527 = sbr.rel (%p525) target = $region94
        $region93: #{_forward.1} parent=15 // pred_region
          %s528 = sld [smem:[#allocation4 + %s24]]
          %s529 = smul.u32 4, %s528
          %p530 = scmp.lt.s32.totalorder %s529, 7
          %s531 = scalar_select %p530, %s529, 7
          %s532 = smul.addr %s531, 4
          %s533 = smul.addr %s532, 8
          %s534 = scalar_lea.vmem %s11, %s533
          %s535 = sld [smem:[#allocation4 + %s24]]
          %s536 = smul.u32 4, %s535
        $region94: #{_forward.1} parent=15 // pred_fallthru
          _
      $region16: #{_forward.1} parent=5 // pred_fallthru
        _
      %p537 = scmp.le.s32.totalorder 1, %s24
      %p538 = scmp.lt.s32.totalorder %s24, 3
      %p539 = pnand %p537, %p538
      %p540 = pneg %p539
      // Predicated region
      $region95: #{_forward.1} parent=5 // pred_check
        _
      $region96: #{_forward.1} parent=5 // pred_check_branch
        %542 = sbr.rel (%p539) target = $region98
      $region97: #{_forward.1} parent=5 // pred_region
        %s543 = ssub.s32 %s24, 1
        %s544 = sand.u32 %s63, 1
        %s545 = sand.u32 %s63, 1
        %s546 = smul.addr %s545, 32
        %s547 = scalar_lea.vmem [#allocation5], %s546
        // Predicated region
        $region99: #{_forward.1} parent=97 // pred_check
          %p548 = pneg %p76
        $region100: #{_forward.1} parent=97 // pred_check_branch
          %550 = sbr.rel (%p548) target = $region102
        $region101: #{_forward.1} parent=97 // pred_region
          _
        $region102: #{_forward.1} parent=97 // pred_fallthru
          _
        %p551 = scmp.lt.s32.totalorder %s29, 1
        %s552 = scalar_select %p551, %s29, 1
        %s553 = smul.addr %s552, 8
        %s554 = scalar_lea.vmem %s1, %s553
        %p555 = pneg %p50
        %p556 = pneg %p47
        %s557 = sand.u32 %s63, 1
        %s558 = sand.u32 %s63, 1
        %s559 = smul.addr %s558, 32
        %s560 = scalar_lea.vmem [#allocation5], %s559
        %p561 = pneg %p76
        %p562 = pneg %p73
        %s563 = sld [smem:[#allocation4 + %s29]]
        %p564 = scmp.lt.s32.totalorder %s563, 1
        %s565 = scalar_select %p564, %s563, 1
        %s566 = smul.addr %s565, 4
        %s567 = smul.addr %s566, 4
        %s568 = scalar_lea.vmem %s3, %s567
        %p569 = pneg %p104
        %p570 = pneg %p101
        %s571 = sld [smem:[#allocation4 + %s29]]
        %p572 = scmp.lt.s32.totalorder %s571, 1
        %s573 = scalar_select %p572, %s571, 1
        %s574 = smul.addr %s573, 4
        %s575 = smul.addr %s574, 8
        %s576 = scalar_lea.vmem %s4, %s575
        %p577 = pneg %p132
        %p578 = pneg %p129
        %s579 = sld [smem:[#allocation4 + %s29]]
        %s580 = smul.u32 4, %s579
        %p581 = scmp.lt.s32.totalorder %s580, 7
        %s582 = scalar_select %p581, %s580, 7
        %s583 = smul.addr %s582, 12
        %s584 = smul.addr %s583, 4
        %s585 = scalar_lea.vmem %s5, %s584
        %p586 = pneg %p160
        %p587 = pneg %p157
        %s588 = sld [smem:[#allocation4 + %s29]]
        %s589 = smul.u32 4, %s588
        %p590 = scmp.lt.s32.totalorder %s589, 7
        %s591 = scalar_select %p590, %s589, 7
        %s592 = smul.addr %s591, 12
        %s593 = smul.addr %s592, 8
        %s594 = scalar_lea.vmem %s6, %s593
        %p595 = pneg %p188
        %p596 = pneg %p185
        %s597 = sld [smem:[#allocation4 + %s29]]
        %s598 = smul.u32 4, %s597
        %p599 = scmp.lt.s32.totalorder %s598, 7
        %s600 = scalar_select %p599, %s598, 7
        %s601 = smul.addr %s600, 4
        %s602 = smul.addr %s601, 4
        %s603 = scalar_lea.vmem %s7, %s602
        %p604 = pneg %p216
        %p605 = pneg %p213
        %s606 = sld [smem:[#allocation4 + %s29]]
        %s607 = smul.u32 4, %s606
        %p608 = scmp.lt.s32.totalorder %s607, 7
        %s609 = scalar_select %p608, %s607, 7
        %s610 = smul.addr %s609, 4
        %s611 = smul.addr %s610, 8
        %s612 = scalar_lea.vmem %s8, %s611
        %p613 = pneg %p244
        %p614 = pneg %p241
        %s615 = sld [smem:[#allocation4 + %s29]]
        %s616 = smul.u32 4, %s615
        %p617 = scmp.lt.s32.totalorder %s616, 7
        %s618 = scalar_select %p617, %s616, 7
        %s619 = smul.addr %s618, 4
        %s620 = smul.addr %s619, 4
        %s621 = scalar_lea.vmem %s9, %s620
        %p622 = pneg %p272
        %p623 = pneg %p269
        %s624 = sld [smem:[#allocation4 + %s29]]
        %s625 = smul.u32 4, %s624
        %p626 = scmp.lt.s32.totalorder %s625, 7
        %s627 = scalar_select %p626, %s625, 7
        %s628 = smul.addr %s627, 4
        %s629 = smul.addr %s628, 4
        %s630 = scalar_lea.vmem %s10, %s629
        %p631 = pneg %p300
        %p632 = pneg %p297
        %s633 = sld [smem:[#allocation4 + %s29]]
        %s634 = smul.u32 4, %s633
        %p635 = scmp.lt.s32.totalorder %s634, 7
        %s636 = scalar_select %p635, %s634, 7
        %s637 = smul.addr %s636, 4
        %s638 = smul.addr %s637, 8
        %s639 = scalar_lea.vmem %s11, %s638
        %p640 = pneg %p328
        %p641 = pneg %p325
        %p642 = pneg %p354
        %p643 = pneg %p351
        %p644 = scmp.lt.s32.totalorder %s29, 1
        %s645 = scalar_select %p644, %s29, 1
        %s646 = scalar_lea.vmem %s12, %s645
        %p647 = scmp.lt.s32.totalorder %s29, 1
        %s648 = scalar_select %p647, %s29, 1
        %s649 = smul.addr %s648, 8
        %s650 = scalar_lea.vmem %s1, %s649
        %s651 = sld [smem:[#allocation4 + %s29]]
        %p652 = scmp.lt.s32.totalorder %s651, 1
        %s653 = scalar_select %p652, %s651, 1
        %s654 = smul.addr %s653, 4
        %s655 = smul.addr %s654, 4
        %s656 = scalar_lea.vmem %s3, %s655
        %s657 = sld [smem:[#allocation4 + %s29]]
        %s658 = sld [smem:[#allocation4 + %s29]]
        %p659 = scmp.lt.s32.totalorder %s658, 1
        %s660 = scalar_select %p659, %s658, 1
        %s661 = smul.addr %s660, 4
        %s662 = smul.addr %s661, 8
        %s663 = scalar_lea.vmem %s4, %s662
        %s664 = sld [smem:[#allocation4 + %s29]]
        %s665 = sld [smem:[#allocation4 + %s29]]
        %s666 = smul.u32 4, %s665
        %p667 = scmp.lt.s32.totalorder %s666, 7
        %s668 = scalar_select %p667, %s666, 7
        %s669 = smul.addr %s668, 12
        %s670 = smul.addr %s669, 4
        %s671 = scalar_lea.vmem %s5, %s670
        %s672 = sld [smem:[#allocation4 + %s29]]
        %s673 = smul.u32 4, %s672
        %s674 = sld [smem:[#allocation4 + %s29]]
        %s675 = smul.u32 4, %s674
        %p676 = scmp.lt.s32.totalorder %s675, 7
        %s677 = scalar_select %p676, %s675, 7
        %s678 = smul.addr %s677, 12
        %s679 = smul.addr %s678, 8
        %s680 = scalar_lea.vmem %s6, %s679
        %s681 = sld [smem:[#allocation4 + %s29]]
        %s682 = smul.u32 4, %s681
        %s683 = sld [smem:[#allocation4 + %s29]]
        %s684 = smul.u32 4, %s683
        %p685 = scmp.lt.s32.totalorder %s684, 7
        %s686 = scalar_select %p685, %s684, 7
        %s687 = smul.addr %s686, 4
        %s688 = smul.addr %s687, 4
        %s689 = scalar_lea.vmem %s7, %s688
        %s690 = sld [smem:[#allocation4 + %s29]]
        %s691 = smul.u32 4, %s690
        %s692 = sld [smem:[#allocation4 + %s29]]
        %s693 = smul.u32 4, %s692
        %p694 = scmp.lt.s32.totalorder %s693, 7
        %s695 = scalar_select %p694, %s693, 7
        %s696 = smul.addr %s695, 4
        %s697 = smul.addr %s696, 8
        %s698 = scalar_lea.vmem %s8, %s697
        %s699 = sld [smem:[#allocation4 + %s29]]
        %s700 = smul.u32 4, %s699
        %s701 = sld [smem:[#allocation4 + %s29]]
        %s702 = smul.u32 4, %s701
        %p703 = scmp.lt.s32.totalorder %s702, 7
        %s704 = scalar_select %p703, %s702, 7
        %s705 = smul.addr %s704, 4
        %s706 = smul.addr %s705, 4
        %s707 = scalar_lea.vmem %s9, %s706
        %s708 = sld [smem:[#allocation4 + %s29]]
        %s709 = smul.u32 4, %s708
        %s710 = sld [smem:[#allocation4 + %s29]]
        %s711 = smul.u32 4, %s710
        %p712 = scmp.lt.s32.totalorder %s711, 7
        %s713 = scalar_select %p712, %s711, 7
        %s714 = smul.addr %s713, 4
        %s715 = smul.addr %s714, 4
        %s716 = scalar_lea.vmem %s10, %s715
        %s717 = sld [smem:[#allocation4 + %s29]]
        %s718 = smul.u32 4, %s717
        %s719 = sld [smem:[#allocation4 + %s29]]
        %s720 = smul.u32 4, %s719
        %p721 = scmp.lt.s32.totalorder %s720, 7
        %s722 = scalar_select %p721, %s720, 7
        %s723 = smul.addr %s722, 4
        %s724 = smul.addr %s723, 8
        %s725 = scalar_lea.vmem %s11, %s724
        %s726 = sld [smem:[#allocation4 + %s29]]
        %s727 = smul.u32 4, %s726
        %p728 = scmp.lt.s32.totalorder %s29, 1
        %s729 = scalar_select %p728, %s29, 1
        %s730 = scalar_lea.vmem %s12, %s729
        %s732 = sld [smem:[#allocation4 + %s29]]
        %v733 = vld [vmem:[%s547] sm:$0xff]
        %v734 = vld [vmem:[%s547 + $0x8] sm:$0xff]
        %v735 = vld [vmem:[%s547 + $0x10] sm:$0xff]
        %v736 = vld [vmem:[%s547 + $0x18] sm:$0xff]
        %v737 = vpack.c.bf16 %v734, %v733
        %v738 = vpack.c.bf16 %v736, %v735
        %739 = vst [vmem:[#allocation2 + $0x8] sm:$0xff] %v737
        %740 = vst [vmem:[#allocation2 + $0x10] sm:$0xff] %v738
        %v741 = vld [vmem:[%s656] sm:$0xf]
        %v742 = vld [vmem:[%s656 + $0x4] sm:$0xf]
        %v743 = vld [vmem:[%s656 + $0x8] sm:$0xf]
        %v744 = vld [vmem:[%s656 + $0xc] sm:$0xf]
        %v745 = vld [vmem:[%s650] sm:$0xff]
        %v746 = vpack.c.bf16 %v745, %v745
        %v747 = vld [vmem:[%s663] sm:$0xff]
        %v748 = vld [vmem:[%s663 + $0x8] sm:$0xff]
        %v749 = vld [vmem:[%s663 + $0x10] sm:$0xff]
        %v750 = vld [vmem:[%s663 + $0x18] sm:$0xff]
        %752 = vset.pattern.permute.xlu0 0
        %753 = vperm.xlu0 %752, %v747
        %v754 = vpop.permute.xlu0 %753
        %757 = vset.pattern.permute.xlu0 0
        %758 = vperm.xlu0 %757, %v748
        %v759 = vpop.permute.xlu0 %758
        %762 = vset.pattern.permute.xlu0 0
        %763 = vperm.xlu0 %762, %v749
        %v764 = vpop.permute.xlu0 %763
        %767 = vset.pattern.permute.xlu0 0
        %768 = vperm.xlu0 %767, %v750
        %v769 = vpop.permute.xlu0 %768
        %v775 = vunpack.c.l.b16 %v741
        %v776 = vunpack.c.l.b16 %v742
        %v777 = vunpack.c.l.b16 %v743
        %v778 = vunpack.c.l.b16 %v744
        %v779 = vpack.c.b16 %v776, %v775
        %v780 = vpack.c.b16 %v778, %v777
        %vm781 = vcmask 64512
        %v783 = vsel %vm781, %v779, 0
        %v786 = vsel %vm781, %v780, 0
        %vm788 = vcmask 1043456
        %v790 = vsel %vm788, %v746, 0
        %792 = vmatprep.subr.bf16.mxu0 0
        %793 = vmatpush1.bf16.msra.mxu0 %v790
        %794 = vmatprep.subr.bf16.mxu0 0
        %795 = vmatpush1.bf16.msra.mxu0 0
        %796 = vmatprep.subr.bf16.mxu0 0
        %797 = vmatpush1.bf16.msra.mxu0 0
        %798 = vmatprep.subr.bf16.mxu0 0
        %799 = vmatpush1.bf16.msra.mxu0 0
        %800 = vmatprep.subr.bf16.mxu0 0
        %801 = vmatpush1.bf16.msra.mxu0 0
        %802 = vmatprep.subr.bf16.mxu0 0
        %803 = vmatpush1.bf16.msra.mxu0 0
        %804 = vmatprep.subr.bf16.mxu0 0
        %805 = vmatpush1.bf16.msra.mxu0 0
        %806 = vmatprep.subr.bf16.mxu0 0
        %807 = vmatpush1.bf16.msra.mxu0 0
        %808 = vmatprep.subr.bf16.mxu0 0
        %809 = vmatpush1.bf16.msra.mxu0 0
        %810 = vmatprep.subr.bf16.mxu0 0
        %811 = vmatpush1.bf16.msra.mxu0 0
        %812 = vmatprep.subr.bf16.mxu0 0
        %813 = vmatpush1.bf16.msra.mxu0 0
        %814 = vmatprep.subr.bf16.mxu0 0
        %815 = vmatpush1.bf16.msra.mxu0 0
        %816 = vmatprep.subr.bf16.mxu0 0
        %817 = vmatpush1.bf16.msra.mxu0 0
        %818 = vmatprep.subr.bf16.mxu0 0
        %819 = vmatpush1.bf16.msra.mxu0 0
        %820 = vmatprep.subr.bf16.mxu0 0
        %821 = vmatpush1.bf16.msra.mxu0 0
        %822 = vmatprep.subr.bf16.mxu0 0
        %823 = vmatpush1.bf16.msra.mxu0 0
        %824 = vmatprep.mubr.bf16.mxu0 0
        %825 = vmatmul.mubr.bf16.gmra.mrb[0].mxu0 %v783
        %v826 = vpop.f32.mrb[0].mxu0
        %v827 = vadd.f32 %v754, %v826
        %v828 = vpop.f32.mrb[0].mxu0
        %v829 = vpop.f32.mrb[0].mxu0
        %v830 = vadd.f32 %v759, %v829
        %v831 = vpop.f32.mrb[0].mxu0
        %832 = vmatprep.mubr.bf16.mxu0 0
        %833 = vmatmul.mubr.bf16.gmra.mrb[0].mxu0 %v786
        %v834 = vpop.f32.mrb[0].mxu0
        %v835 = vadd.f32 %v764, %v834
        %v836 = vpop.f32.mrb[0].mxu0
        %v837 = vpop.f32.mrb[0].mxu0
        %v838 = vadd.f32 %v769, %v837
        %v839 = vpop.f32.mrb[0].mxu0
        %840 = vdwg.mxu0
        %v841 = vmax.f32 %v827, 0.0
        %v842 = vmax.f32 %v830, 0.0
        %v843 = vmax.f32 %v835, 0.0
        %v844 = vmax.f32 %v838, 0.0
        %v845 = vpack.c.bf16 %v842, %v841
        %846 = vst [vmem:[#allocation2] sm:$0xff] %v845
        %v847 = vld [vmem:[%s671] sm:$0xf]
        %v848 = vld [vmem:[%s671 + $0x4] sm:$0xf]
        %v849 = vld [vmem:[%s671 + $0x8] sm:$0xf]
        %v850 = vld [vmem:[%s671 + $0xc] sm:$0xf]
        %v851 = vld [vmem:[%s671 + $0x10] sm:$0xf]
        %v852 = vld [vmem:[%s671 + $0x14] sm:$0xf]
        %v853 = vld [vmem:[%s671 + $0x18] sm:$0xf]
        %v854 = vld [vmem:[%s671 + $0x1c] sm:$0xf]
        %v855 = vld [vmem:[%s671 + $0x20] sm:$0xf]
        %v856 = vld [vmem:[%s671 + $0x24] sm:$0xf]
        %v857 = vld [vmem:[%s671 + $0x28] sm:$0xf]
        %v858 = vld [vmem:[%s671 + $0x2c] sm:$0xf]
        %v859 = vld [vmem:[#allocation2] sm:$0xff]
        %v860 = vld [vmem:[#allocation2 + $0x8] sm:$0xff]
        %v861 = vld [vmem:[#allocation2 + $0x10] sm:$0xff]
        %v862 = vld [vmem:[%s680] sm:$0xff]
        %v863 = vld [vmem:[%s680 + $0x8] sm:$0xff]
        %v864 = vld [vmem:[%s680 + $0x10] sm:$0xff]
        %v865 = vld [vmem:[%s680 + $0x18] sm:$0xff]
        %v866 = vld [vmem:[%s680 + $0x20] sm:$0xff]
        %v867 = vld [vmem:[%s680 + $0x28] sm:$0xff]
        %v868 = vld [vmem:[%s680 + $0x30] sm:$0xff]
        %v869 = vld [vmem:[%s680 + $0x38] sm:$0xff]
        %v870 = vld [vmem:[%s680 + $0x40] sm:$0xff]
        %v871 = vld [vmem:[%s680 + $0x48] sm:$0xff]
        %v872 = vld [vmem:[%s680 + $0x50] sm:$0xff]
        %v873 = vld [vmem:[%s680 + $0x58] sm:$0xff]
        %875 = vset.pattern.permute.xlu0 0
        %876 = vperm.xlu0 %875, %v862
        %v877 = vpop.permute.xlu0 %876
        %880 = vset.pattern.permute.xlu0 0
        %881 = vperm.xlu0 %880, %v863
        %v882 = vpop.permute.xlu0 %881
        %885 = vset.pattern.permute.xlu0 0
        %886 = vperm.xlu0 %885, %v864
        %v887 = vpop.permute.xlu0 %886
        %890 = vset.pattern.permute.xlu0 0
        %891 = vperm.xlu0 %890, %v865
        %v892 = vpop.permute.xlu0 %891
        %895 = vset.pattern.permute.xlu0 0
        %896 = vperm.xlu0 %895, %v866
        %v897 = vpop.permute.xlu0 %896
        %900 = vset.pattern.permute.xlu0 0
        %901 = vperm.xlu0 %900, %v867
        %v902 = vpop.permute.xlu0 %901
        %905 = vset.pattern.permute.xlu0 0
        %906 = vperm.xlu0 %905, %v868
        %v907 = vpop.permute.xlu0 %906
        %910 = vset.pattern.permute.xlu0 0
        %911 = vperm.xlu0 %910, %v869
        %v912 = vpop.permute.xlu0 %911
        %915 = vset.pattern.permute.xlu0 0
        %916 = vperm.xlu0 %915, %v870
        %v917 = vpop.permute.xlu0 %916
        %920 = vset.pattern.permute.xlu0 0
        %921 = vperm.xlu0 %920, %v871
        %v922 = vpop.permute.xlu0 %921
        %925 = vset.pattern.permute.xlu0 0
        %926 = vperm.xlu0 %925, %v872
        %v927 = vpop.permute.xlu0 %926
        %930 = vset.pattern.permute.xlu0 0
        %931 = vperm.xlu0 %930, %v873
        %v932 = vpop.permute.xlu0 %931
        %v946 = vunpack.c.l.b16 %v847
        %v947 = vunpack.c.l.b16 %v848
        %v948 = vunpack.c.l.b16 %v849
        %v949 = vunpack.c.l.b16 %v850
        %v950 = vunpack.c.l.b16 %v851
        %v951 = vunpack.c.l.b16 %v852
        %v952 = vunpack.c.l.b16 %v853
        %v953 = vunpack.c.l.b16 %v854
        %v954 = vunpack.c.l.b16 %v855
        %v955 = vunpack.c.l.b16 %v856
        %v956 = vunpack.c.l.b16 %v857
        %v957 = vunpack.c.l.b16 %v858
        %v958 = vpack.c.b16 %v947, %v946
        %v959 = vpack.c.b16 %v949, %v948
        %v960 = vpack.c.b16 %v951, %v950
        %v961 = vpack.c.b16 %v953, %v952
        %v962 = vpack.c.b16 %v955, %v954
        %v963 = vpack.c.b16 %v957, %v956
        %vm964 = vcmask 392192
        %v966 = vsel %vm964, %v958, 0
        %v969 = vsel %vm964, %v959, 0
        %v972 = vsel %vm964, %v960, 0
        %v975 = vsel %vm964, %v961, 0
        %v978 = vsel %vm964, %v962, 0
        %v981 = vsel %vm964, %v963, 0
        %983 = vmatprep.subr.bf16.mxu0 0
        %984 = vmatpush1.bf16.msra.mxu0 %v859
        %985 = vmatprep.subr.bf16.mxu0 0
        %986 = vmatpush1.bf16.msra.mxu0 %v860
        %987 = vmatprep.subr.bf16.mxu0 0
        %988 = vmatpush1.bf16.msra.mxu0 %v861
        %989 = vmatprep.subr.bf16.mxu0 0
        %990 = vmatpush1.bf16.msra.mxu0 0
        %991 = vmatprep.subr.bf16.mxu0 0
        %992 = vmatpush1.bf16.msra.mxu0 0
        %993 = vmatprep.subr.bf16.mxu0 0
        %994 = vmatpush1.bf16.msra.mxu0 0
        %995 = vmatprep.subr.bf16.mxu0 0
        %996 = vmatpush1.bf16.msra.mxu0 0
        %997 = vmatprep.subr.bf16.mxu0 0
        %998 = vmatpush1.bf16.msra.mxu0 0
        %999 = vmatprep.subr.bf16.mxu0 0
        %1000 = vmatpush1.bf16.msra.mxu0 0
        %1001 = vmatprep.subr.bf16.mxu0 0
        %1002 = vmatpush1.bf16.msra.mxu0 0
        %1003 = vmatprep.subr.bf16.mxu0 0
        %1004 = vmatpush1.bf16.msra.mxu0 0
        %1005 = vmatprep.subr.bf16.mxu0 0
        %1006 = vmatpush1.bf16.msra.mxu0 0
        %1007 = vmatprep.subr.bf16.mxu0 0
        %1008 = vmatpush1.bf16.msra.mxu0 0
        %1009 = vmatprep.subr.bf16.mxu0 0
        %1010 = vmatpush1.bf16.msra.mxu0 0
        %1011 = vmatprep.subr.bf16.mxu0 0
        %1012 = vmatpush1.bf16.msra.mxu0 0
        %1013 = vmatprep.subr.bf16.mxu0 0
        %1014 = vmatpush1.bf16.msra.mxu0 0
        %1015 = vmatprep.mubr.bf16.mxu0 0
        %1016 = vmatmul.mubr.bf16.gmra.mrb[0].mxu0 %v966
        %v1017 = vpop.f32.mrb[0].mxu0
        %v1018 = vadd.f32 %v877, %v1017
        %v1019 = vpop.f32.mrb[0].mxu0
        %v1020 = vpop.f32.mrb[0].mxu0
        %v1021 = vadd.f32 %v882, %v1020
        %v1022 = vpop.f32.mrb[0].mxu0
        %1023 = vmatprep.mubr.bf16.mxu0 0
        %1024 = vmatmul.mubr.bf16.gmra.mrb[0].mxu0 %v969
        %v1025 = vpop.f32.mrb[0].mxu0
        %v1026 = vadd.f32 %v887, %v1025
        %v1027 = vpop.f32.mrb[0].mxu0
        %v1028 = vpop.f32.mrb[0].mxu0
        %v1029 = vadd.f32 %v892, %v1028
        %v1030 = vpop.f32.mrb[0].mxu0
        %1031 = vmatprep.mubr.bf16.mxu0 0
        %1032 = vmatmul.mubr.bf16.gmra.mrb[0].mxu0 %v972
        %v1033 = vpop.f32.mrb[0].mxu0
        %v1034 = vadd.f32 %v897, %v1033
        %v1035 = vpop.f32.mrb[0].mxu0
        %v1036 = vpop.f32.mrb[0].mxu0
        %v1037 = vadd.f32 %v902, %v1036
        %v1038 = vpop.f32.mrb[0].mxu0
        %1039 = vmatprep.mubr.bf16.mxu0 0
        %1040 = vmatmul.mubr.bf16.gmra.mrb[0].mxu0 %v975
        %v1041 = vpop.f32.mrb[0].mxu0
        %v1042 = vadd.f32 %v907, %v1041
        %v1043 = vpop.f32.mrb[0].mxu0
        %v1044 = vpop.f32.mrb[0].mxu0
        %v1045 = vadd.f32 %v912, %v1044
        %v1046 = vpop.f32.mrb[0].mxu0
        %1047 = vmatprep.mubr.bf16.mxu0 0
        %1048 = vmatmul.mubr.bf16.gmra.mrb[0].mxu0 %v978
        %v1049 = vpop.f32.mrb[0].mxu0
        %v1050 = vadd.f32 %v917, %v1049
        %v1051 = vpop.f32.mrb[0].mxu0
        %v1052 = vpop.f32.mrb[0].mxu0
        %v1053 = vadd.f32 %v922, %v1052
        %v1054 = vpop.f32.mrb[0].mxu0
        %1055 = vmatprep.mubr.bf16.mxu0 0
        %1056 = vmatmul.mubr.bf16.gmra.mrb[0].mxu0 %v981
        %v1057 = vpop.f32.mrb[0].mxu0
        %v1058 = vadd.f32 %v927, %v1057
        %v1059 = vpop.f32.mrb[0].mxu0
        %v1060 = vpop.f32.mrb[0].mxu0
        %v1061 = vadd.f32 %v932, %v1060
        %v1062 = vpop.f32.mrb[0].mxu0
        %1063 = vdwg.mxu0
        %v1064 = vmax.f32 %v1018, 0.0
        %v1065 = vmax.f32 %v1021, 0.0
        %v1066 = vmax.f32 %v1026, 0.0
        %v1067 = vmax.f32 %v1029, 0.0
        %v1068 = vmax.f32 %v1034, 0.0
        %v1069 = vmax.f32 %v1037, 0.0
        %v1070 = vmax.f32 %v1042, 0.0
        %v1071 = vmax.f32 %v1045, 0.0
        %v1072 = vmax.f32 %v1050, 0.0
        %v1073 = vmax.f32 %v1053, 0.0
        %v1074 = vmax.f32 %v1058, 0.0
        %v1075 = vmax.f32 %v1061, 0.0
        %v1076 = vld [vmem:[%s689] sm:$0xf]
        %v1077 = vld [vmem:[%s689 + $0x4] sm:$0xf]
        %v1078 = vld [vmem:[%s689 + $0x8] sm:$0xf]
        %v1079 = vld [vmem:[%s689 + $0xc] sm:$0xf]
        %v1080 = vpack.c.bf16 %v1065, %v1064
        %v1081 = vpack.c.bf16 %v1067, %v1066
        %v1082 = vpack.c.bf16 %v1069, %v1068
        %v1083 = vpack.c.bf16 %v1071, %v1070
        %v1084 = vpack.c.bf16 %v1073, %v1072
        %v1085 = vpack.c.bf16 %v1075, %v1074
        %v1086 = vld [vmem:[%s698] sm:$0xff]
        %v1087 = vld [vmem:[%s698 + $0x8] sm:$0xff]
        %v1088 = vld [vmem:[%s698 + $0x10] sm:$0xff]
        %v1089 = vld [vmem:[%s698 + $0x18] sm:$0xff]
        %1091 = vset.pattern.permute.xlu0 0
        %1092 = vperm.xlu0 %1091, %v1086
        %v1093 = vpop.permute.xlu0 %1092
        %1096 = vset.pattern.permute.xlu0 0
        %1097 = vperm.xlu0 %1096, %v1087
        %v1098 = vpop.permute.xlu0 %1097
        %1101 = vset.pattern.permute.xlu0 0
        %1102 = vperm.xlu0 %1101, %v1088
        %v1103 = vpop.permute.xlu0 %1102
        %1106 = vset.pattern.permute.xlu0 0
        %1107 = vperm.xlu0 %1106, %v1089
        %v1108 = vpop.permute.xlu0 %1107
        %v1114 = vunpack.c.l.b16 %v1076
        %v1115 = vunpack.c.l.b16 %v1077
        %v1116 = vunpack.c.l.b16 %v1078
        %v1117 = vunpack.c.l.b16 %v1079
        %v1118 = vpack.c.b16 %v1115, %v1114
        %v1119 = vpack.c.b16 %v1117, %v1116
        %vm1120 = vcmask 785408
        %v1122 = vsel %vm1120, %v1118, 0
        %v1125 = vsel %vm1120, %v1119, 0
        %1127 = vmatprep.subr.bf16.mxu0 0
        %1128 = vmatpush1.bf16.msra.mxu0 %v1080
        %1129 = vmatprep.subr.bf16.mxu0 0
        %1130 = vmatpush1.bf16.msra.mxu0 %v1081
        %1131 = vmatprep.subr.bf16.mxu0 0
        %1132 = vmatpush1.bf16.msra.mxu0 %v1082
        %1133 = vmatprep.subr.bf16.mxu0 0
        %1134 = vmatpush1.bf16.msra.mxu0 %v1083
        %1135 = vmatprep.subr.bf16.mxu0 0
        %1136 = vmatpush1.bf16.msra.mxu0 %v1084
        %1137 = vmatprep.subr.bf16.mxu0 0
        %1138 = vmatpush1.bf16.msra.mxu0 %v1085
        %1139 = vmatprep.subr.bf16.mxu0 0
        %1140 = vmatpush1.bf16.msra.mxu0 0
        %1141 = vmatprep.subr.bf16.mxu0 0
        %1142 = vmatpush1.bf16.msra.mxu0 0
        %1143 = vmatprep.subr.bf16.mxu0 0
        %1144 = vmatpush1.bf16.msra.mxu0 0
        %1145 = vmatprep.subr.bf16.mxu0 0
        %1146 = vmatpush1.bf16.msra.mxu0 0
        %1147 = vmatprep.subr.bf16.mxu0 0
        %1148 = vmatpush1.bf16.msra.mxu0 0
        %1149 = vmatprep.subr.bf16.mxu0 0
        %1150 = vmatpush1.bf16.msra.mxu0 0
        %1151 = vmatprep.subr.bf16.mxu0 0
        %1152 = vmatpush1.bf16.msra.mxu0 0
        %1153 = vmatprep.subr.bf16.mxu0 0
        %1154 = vmatpush1.bf16.msra.mxu0 0
        %1155 = vmatprep.subr.bf16.mxu0 0
        %1156 = vmatpush1.bf16.msra.mxu0 0
        %1157 = vmatprep.subr.bf16.mxu0 0
        %1158 = vmatpush1.bf16.msra.mxu0 0
        %1159 = vmatprep.mubr.bf16.mxu0 0
        %1160 = vmatmul.mubr.bf16.gmra.mrb[0].mxu0 %v1122
        %v1161 = vpop.f32.mrb[0].mxu0
        %v1162 = vadd.f32 %v1093, %v1161
        %v1163 = vpop.f32.mrb[0].mxu0
        %v1164 = vpop.f32.mrb[0].mxu0
        %v1165 = vadd.f32 %v1098, %v1164
        %v1166 = vpop.f32.mrb[0].mxu0
        %1167 = vmatprep.mubr.bf16.mxu0 0
        %1168 = vmatmul.mubr.bf16.gmra.mrb[0].mxu0 %v1125
        %v1169 = vpop.f32.mrb[0].mxu0
        %v1170 = vadd.f32 %v1103, %v1169
        %v1171 = vpop.f32.mrb[0].mxu0
        %v1172 = vpop.f32.mrb[0].mxu0
        %v1173 = vadd.f32 %v1108, %v1172
        %v1174 = vpop.f32.mrb[0].mxu0
        %1175 = vdwg.mxu0
        %v1176 = vtanh.pop %v1162
        %v1177 = vtanh.pop %v1165
        %v1178 = vmul.f32 %v1176, 1.9
        %v1179 = vmul.f32 %v1177, 1.9
        %v1180 = vmul.f32 %v1178, 1.442695
        %v1181 = vpow.pop %v1180
        %v1182 = vmul.f32 %v1179, 1.442695
        %v1183 = vpow.pop %v1182
        %v1184 = vmul.f32 %v843, %v1181
        %v1185 = vmul.f32 %v844, %v1183
        %v1186 = vadd.f32 %v1184, %v1170
        %v1187 = vadd.f32 %v1185, %v1173
        %v1188 = vadd.f32 %v1178, %v1179
        %v1189 = vrot.slane %v1188, 4
        %v1190 = vadd.f32 %v1188, %v1189
        %v1191 = vrot.slane %v1190, 2
        %v1192 = vadd.f32 %v1190, %v1191
        %v1193 = vrot.slane %v1192, 1
        %v1194 = vadd.f32 %v1192, %v1193
        %v1195 = vadd.f32 %v1194, 0.0
        %v1196 = vld [vmem:[%s707] sm:$0xf]
        %v1197 = vld [vmem:[%s707 + $0x4] sm:$0xf]
        %v1198 = vld [vmem:[%s707 + $0x8] sm:$0xf]
        %v1199 = vld [vmem:[%s707 + $0xc] sm:$0xf]
        %v1200 = vld [vmem:[#allocation2] sm:$0xff]
        %v1201 = vld [vmem:[%s716] sm:$0xf]
        %v1202 = vld [vmem:[%s716 + $0x4] sm:$0xf]
        %v1203 = vld [vmem:[%s716 + $0x8] sm:$0xf]
        %v1204 = vld [vmem:[%s716 + $0xc] sm:$0xf]
        %v1205 = vpack.c.bf16 %v1187, %v1186
        %v1210 = vunpack.c.l.b16 %v1201
        %v1211 = vunpack.c.l.b16 %v1202
        %v1212 = vunpack.c.l.b16 %v1203
        %v1213 = vunpack.c.l.b16 %v1204
        %v1214 = vpack.c.b16 %v1211, %v1210
        %v1215 = vpack.c.b16 %v1213, %v1212
        %vm1216 = vcmask 130048
        %v1218 = vsel %vm1216, %v1214, 0
        %v1221 = vsel %vm1216, %v1215, 0
        %1223 = vmatprep.subr.bf16.mxu0 0
        %1224 = vmatpush1.bf16.msra.mxu0 %v1205
        %1225 = vmatprep.subr.bf16.mxu0 0
        %1226 = vmatpush1.bf16.msra.mxu0 0
        %1227 = vmatprep.subr.bf16.mxu0 0
        %1228 = vmatpush1.bf16.msra.mxu0 0
        %1229 = vmatprep.subr.bf16.mxu0 0
        %1230 = vmatpush1.bf16.msra.mxu0 0
        %1231 = vmatprep.subr.bf16.mxu0 0
        %1232 = vmatpush1.bf16.msra.mxu0 0
        %1233 = vmatprep.subr.bf16.mxu0 0
        %1234 = vmatpush1.bf16.msra.mxu0 0
        %1235 = vmatprep.subr.bf16.mxu0 0
        %1236 = vmatpush1.bf16.msra.mxu0 0
        %1237 = vmatprep.subr.bf16.mxu0 0
        %1238 = vmatpush1.bf16.msra.mxu0 0
        %1239 = vmatprep.subr.bf16.mxu0 0
        %1240 = vmatpush1.bf16.msra.mxu0 0
        %1241 = vmatprep.subr.bf16.mxu0 0
        %1242 = vmatpush1.bf16.msra.mxu0 0
        %1243 = vmatprep.subr.bf16.mxu0 0
        %1244 = vmatpush1.bf16.msra.mxu0 0
        %1245 = vmatprep.subr.bf16.mxu0 0
        %1246 = vmatpush1.bf16.msra.mxu0 0
        %1247 = vmatprep.subr.bf16.mxu0 0
        %1248 = vmatpush1.bf16.msra.mxu0 0
        %1249 = vmatprep.subr.bf16.mxu0 0
        %1250 = vmatpush1.bf16.msra.mxu0 0
        %1251 = vmatprep.subr.bf16.mxu0 0
        %1252 = vmatpush1.bf16.msra.mxu0 0
        %1253 = vmatprep.subr.bf16.mxu0 0
        %1254 = vmatpush1.bf16.msra.mxu0 0
        %1255 = vmatprep.mubr.bf16.mxu0 0
        %1256 = vmatmul.mubr.bf16.gmra.mrb[0].mxu0 %v1218
        %v1257 = vpop.f32.mrb[0].mxu0
        %v1258 = vadd.f32 0.0, %v1257
        %v1259 = vpop.f32.mrb[0].mxu0
        %v1260 = vpop.f32.mrb[0].mxu0
        %v1261 = vadd.f32 0.0, %v1260
        %v1262 = vpop.f32.mrb[0].mxu0
        %1263 = vmatprep.mubr.bf16.mxu0 0
        %1264 = vmatmul.mubr.bf16.gmra.mrb[0].mxu0 %v1221
        %v1265 = vpop.f32.mrb[0].mxu0
        %v1266 = vadd.f32 0.0, %v1265
        %v1267 = vpop.f32.mrb[0].mxu0
        %v1268 = vpop.f32.mrb[0].mxu0
        %v1269 = vadd.f32 0.0, %v1268
        %v1270 = vpop.f32.mrb[0].mxu0
        %1271 = vdwg.mxu0
        %v1276 = vunpack.c.l.b16 %v1196
        %v1277 = vunpack.c.l.b16 %v1197
        %v1278 = vunpack.c.l.b16 %v1198
        %v1279 = vunpack.c.l.b16 %v1199
        %v1280 = vpack.c.b16 %v1277, %v1276
        %v1281 = vpack.c.b16 %v1279, %v1278
        %v1283 = vsel %vm1216, %v1280, 0
        %v1286 = vsel %vm1216, %v1281, 0
        %1288 = vmatprep.subr.bf16.mxu0 0
        %1289 = vmatpush1.bf16.msra.mxu0 %v1200
        %1290 = vmatprep.subr.bf16.mxu0 0
        %1291 = vmatpush1.bf16.msra.mxu0 0
        %1292 = vmatprep.subr.bf16.mxu0 0
        %1293 = vmatpush1.bf16.msra.mxu0 0
        %1294 = vmatprep.subr.bf16.mxu0 0
        %1295 = vmatpush1.bf16.msra.mxu0 0
        %1296 = vmatprep.subr.bf16.mxu0 0
        %1297 = vmatpush1.bf16.msra.mxu0 0
        %1298 = vmatprep.subr.bf16.mxu0 0
        %1299 = vmatpush1.bf16.msra.mxu0 0
        %1300 = vmatprep.subr.bf16.mxu0 0
        %1301 = vmatpush1.bf16.msra.mxu0 0
        %1302 = vmatprep.subr.bf16.mxu0 0
        %1303 = vmatpush1.bf16.msra.mxu0 0
        %1304 = vmatprep.subr.bf16.mxu0 0
        %1305 = vmatpush1.bf16.msra.mxu0 0
        %1306 = vmatprep.subr.bf16.mxu0 0
        %1307 = vmatpush1.bf16.msra.mxu0 0
        %1308 = vmatprep.subr.bf16.mxu0 0
        %1309 = vmatpush1.bf16.msra.mxu0 0
        %1310 = vmatprep.subr.bf16.mxu0 0
        %1311 = vmatpush1.bf16.msra.mxu0 0
        %1312 = vmatprep.subr.bf16.mxu0 0
        %1313 = vmatpush1.bf16.msra.mxu0 0
        %1314 = vmatprep.subr.bf16.mxu0 0
        %1315 = vmatpush1.bf16.msra.mxu0 0
        %1316 = vmatprep.subr.bf16.mxu0 0
        %1317 = vmatpush1.bf16.msra.mxu0 0
        %1318 = vmatprep.subr.bf16.mxu0 0
        %1319 = vmatpush1.bf16.msra.mxu0 0
        %1320 = vmatprep.mubr.bf16.mxu0 0
        %1321 = vmatmul.mubr.bf16.gmra.mrb[0].mxu0 %v1283
        %v1322 = vpop.f32.mrb[0].mxu0
        %v1323 = vadd.f32 %v1258, %v1322
        %v1324 = vpop.f32.mrb[0].mxu0
        %v1325 = vpop.f32.mrb[0].mxu0
        %v1326 = vadd.f32 %v1261, %v1325
        %v1327 = vpop.f32.mrb[0].mxu0
        %1328 = vmatprep.mubr.bf16.mxu0 0
        %1329 = vmatmul.mubr.bf16.gmra.mrb[0].mxu0 %v1286
        %v1330 = vpop.f32.mrb[0].mxu0
        %v1331 = vadd.f32 %v1266, %v1330
        %v1332 = vpop.f32.mrb[0].mxu0
        %v1333 = vpop.f32.mrb[0].mxu0
        %v1334 = vadd.f32 %v1269, %v1333
        %v1335 = vpop.f32.mrb[0].mxu0
        %1336 = vdwg.mxu0
        %v1337 = vld [vmem:[%s725] sm:$0xff]
        %v1338 = vld [vmem:[%s725 + $0x8] sm:$0xff]
        %v1339 = vld [vmem:[%s725 + $0x10] sm:$0xff]
        %v1340 = vld [vmem:[%s725 + $0x18] sm:$0xff]
        %1342 = vset.pattern.permute.xlu0 0
        %1343 = vperm.xlu0 %1342, %v1337
        %v1344 = vpop.permute.xlu0 %1343
        %1347 = vset.pattern.permute.xlu0 0
        %1348 = vperm.xlu0 %1347, %v1338
        %v1349 = vpop.permute.xlu0 %1348
        %1352 = vset.pattern.permute.xlu0 0
        %1353 = vperm.xlu0 %1352, %v1339
        %v1354 = vpop.permute.xlu0 %1353
        %1357 = vset.pattern.permute.xlu0 0
        %1358 = vperm.xlu0 %1357, %v1340
        %v1359 = vpop.permute.xlu0 %1358
        %v1361 = vadd.f32 %v1323, %v1344
        %v1362 = vadd.f32 %v1326, %v1349
        %v1363 = vadd.f32 %v1331, %v1354
        %v1364 = vadd.f32 %v1334, %v1359
        %v1365 = vpack.c.bf16 %v1362, %v1361
        %1366 = vst [vmem:[#allocation2] sm:$0xff] %v1365
        %s1367 = scalar_lea.vmem %s671, 48
        %v1368 = vld [vmem:[%s1367] sm:$0xf]
        %v1369 = vld [vmem:[%s1367 + $0x4] sm:$0xf]
        %v1370 = vld [vmem:[%s1367 + $0x8] sm:$0xf]
        %v1371 = vld [vmem:[%s1367 + $0xc] sm:$0xf]
        %v1372 = vld [vmem:[%s1367 + $0x10] sm:$0xf]
        %v1373 = vld [vmem:[%s1367 + $0x14] sm:$0xf]
        %v1374 = vld [vmem:[%s1367 + $0x18] sm:$0xf]
        %v1375 = vld [vmem:[%s1367 + $0x1c] sm:$0xf]
        %v1376 = vld [vmem:[%s1367 + $0x20] sm:$0xf]
        %v1377 = vld [vmem:[%s1367 + $0x24] sm:$0xf]
        %v1378 = vld [vmem:[%s1367 + $0x28] sm:$0xf]
        %v1379 = vld [vmem:[%s1367 + $0x2c] sm:$0xf]
        %v1380 = vld [vmem:[#allocation2] sm:$0xff]
        %v1381 = vld [vmem:[#allocation2 + $0x8] sm:$0xff]
        %v1382 = vld [vmem:[#allocation2 + $0x10] sm:$0xff]
        %s1383 = scalar_lea.vmem %s680, 96
        %v1384 = vld [vmem:[%s1383] sm:$0xff]
        %v1385 = vld [vmem:[%s1383 + $0x8] sm:$0xff]
        %v1386 = vld [vmem:[%s1383 + $0x10] sm:$0xff]
        %v1387 = vld [vmem:[%s1383 + $0x18] sm:$0xff]
        %v1388 = vld [vmem:[%s1383 + $0x20] sm:$0xff]
        %v1389 = vld [vmem:[%s1383 + $0x28] sm:$0xff]
        %v1390 = vld [vmem:[%s1383 + $0x30] sm:$0xff]
        %v1391 = vld [vmem:[%s1383 + $0x38] sm:$0xff]
        %v1392 = vld [vmem:[%s1383 + $0x40] sm:$0xff]
        %v1393 = vld [vmem:[%s1383 + $0x48] sm:$0xff]
        %v1394 = vld [vmem:[%s1383 + $0x50] sm:$0xff]
        %v1395 = vld [vmem:[%s1383 + $0x58] sm:$0xff]
        %1397 = vset.pattern.permute.xlu0 0
        %1398 = vperm.xlu0 %1397, %v1384
        %v1399 = vpop.permute.xlu0 %1398
        %1402 = vset.pattern.permute.xlu0 0
        %1403 = vperm.xlu0 %1402, %v1385
        %v1404 = vpop.permute.xlu0 %1403
        %1407 = vset.pattern.permute.xlu0 0
        %1408 = vperm.xlu0 %1407, %v1386
        %v1409 = vpop.permute.xlu0 %1408
        %1412 = vset.pattern.permute.xlu0 0
        %1413 = vperm.xlu0 %1412, %v1387
        %v1414 = vpop.permute.xlu0 %1413
        %1417 = vset.pattern.permute.xlu0 0
        %1418 = vperm.xlu0 %1417, %v1388
        %v1419 = vpop.permute.xlu0 %1418
        %1422 = vset.pattern.permute.xlu0 0
        %1423 = vperm.xlu0 %1422, %v1389
        %v1424 = vpop.permute.xlu0 %1423
        %1427 = vset.pattern.permute.xlu0 0
        %1428 = vperm.xlu0 %1427, %v1390
        %v1429 = vpop.permute.xlu0 %1428
        %1432 = vset.pattern.permute.xlu0 0
        %1433 = vperm.xlu0 %1432, %v1391
        %v1434 = vpop.permute.xlu0 %1433
        %1437 = vset.pattern.permute.xlu0 0
        %1438 = vperm.xlu0 %1437, %v1392
        %v1439 = vpop.permute.xlu0 %1438
        %1442 = vset.pattern.permute.xlu0 0
        %1443 = vperm.xlu0 %1442, %v1393
        %v1444 = vpop.permute.xlu0 %1443
        %1447 = vset.pattern.permute.xlu0 0
        %1448 = vperm.xlu0 %1447, %v1394
        %v1449 = vpop.permute.xlu0 %1448
        %1452 = vset.pattern.permute.xlu0 0
        %1453 = vperm.xlu0 %1452, %v1395
        %v1454 = vpop.permute.xlu0 %1453
        %v1468 = vunpack.c.l.b16 %v1368
        %v1469 = vunpack.c.l.b16 %v1369
        %v1470 = vunpack.c.l.b16 %v1370
        %v1471 = vunpack.c.l.b16 %v1371
        %v1472 = vunpack.c.l.b16 %v1372
        %v1473 = vunpack.c.l.b16 %v1373
        %v1474 = vunpack.c.l.b16 %v1374
        %v1475 = vunpack.c.l.b16 %v1375
        %v1476 = vunpack.c.l.b16 %v1376
        %v1477 = vunpack.c.l.b16 %v1377
        %v1478 = vunpack.c.l.b16 %v1378
        %v1479 = vunpack.c.l.b16 %v1379
        %v1480 = vpack.c.b16 %v1469, %v1468
        %v1481 = vpack.c.b16 %v1471, %v1470
        %v1482 = vpack.c.b16 %v1473, %v1472
        %v1483 = vpack.c.b16 %v1475, %v1474
        %v1484 = vpack.c.b16 %v1477, %v1476
        %v1485 = vpack.c.b16 %v1479, %v1478
        %v1487 = vsel %vm964, %v1480, 0
        %v1490 = vsel %vm964, %v1481, 0
        %v1493 = vsel %vm964, %v1482, 0
        %v1496 = vsel %vm964, %v1483, 0
        %v1499 = vsel %vm964, %v1484, 0
        %v1502 = vsel %vm964, %v1485, 0
        %1504 = vmatprep.subr.bf16.mxu0 0
        %1505 = vmatpush1.bf16.msra.mxu0 %v1380
        %1506 = vmatprep.subr.bf16.mxu0 0
        %1507 = vmatpush1.bf16.msra.mxu0 %v1381
        %1508 = vmatprep.subr.bf16.mxu0 0
        %1509 = vmatpush1.bf16.msra.mxu0 %v1382
        %1510 = vmatprep.subr.bf16.mxu0 0
        %1511 = vmatpush1.bf16.msra.mxu0 0
        %1512 = vmatprep.subr.bf16.mxu0 0
        %1513 = vmatpush1.bf16.msra.mxu0 0
        %1514 = vmatprep.subr.bf16.mxu0 0
        %1515 = vmatpush1.bf16.msra.mxu0 0
        %1516 = vmatprep.subr.bf16.mxu0 0
        %1517 = vmatpush1.bf16.msra.mxu0 0
        %1518 = vmatprep.subr.bf16.mxu0 0
        %1519 = vmatpush1.bf16.msra.mxu0 0
        %1520 = vmatprep.subr.bf16.mxu0 0
        %1521 = vmatpush1.bf16.msra.mxu0 0
        %1522 = vmatprep.subr.bf16.mxu0 0
        %1523 = vmatpush1.bf16.msra.mxu0 0
        %1524 = vmatprep.subr.bf16.mxu0 0
        %1525 = vmatpush1.bf16.msra.mxu0 0
        %1526 = vmatprep.subr.bf16.mxu0 0
        %1527 = vmatpush1.bf16.msra.mxu0 0
        %1528 = vmatprep.subr.bf16.mxu0 0
        %1529 = vmatpush1.bf16.msra.mxu0 0
        %1530 = vmatprep.subr.bf16.mxu0 0
        %1531 = vmatpush1.bf16.msra.mxu0 0
        %1532 = vmatprep.subr.bf16.mxu0 0
        %1533 = vmatpush1.bf16.msra.mxu0 0
        %1534 = vmatprep.subr.bf16.mxu0 0
        %1535 = vmatpush1.bf16.msra.mxu0 0
        %1536 = vmatprep.mubr.bf16.mxu0 0
        %1537 = vmatmul.mubr.bf16.gmra.mrb[0].mxu0 %v1487
        %v1538 = vpop.f32.mrb[0].mxu0
        %v1539 = vadd.f32 %v1399, %v1538
        %v1540 = vpop.f32.mrb[0].mxu0
        %v1541 = vpop.f32.mrb[0].mxu0
        %v1542 = vadd.f32 %v1404, %v1541
        %v1543 = vpop.f32.mrb[0].mxu0
        %1544 = vmatprep.mubr.bf16.mxu0 0
        %1545 = vmatmul.mubr.bf16.gmra.mrb[0].mxu0 %v1490
        %v1546 = vpop.f32.mrb[0].mxu0
        %v1547 = vadd.f32 %v1409, %v1546
        %v1548 = vpop.f32.mrb[0].mxu0
        %v1549 = vpop.f32.mrb[0].mxu0
        %v1550 = vadd.f32 %v1414, %v1549
        %v1551 = vpop.f32.mrb[0].mxu0
        %1552 = vmatprep.mubr.bf16.mxu0 0
        %1553 = vmatmul.mubr.bf16.gmra.mrb[0].mxu0 %v1493
        %v1554 = vpop.f32.mrb[0].mxu0
        %v1555 = vadd.f32 %v1419, %v1554
        %v1556 = vpop.f32.mrb[0].mxu0
        %v1557 = vpop.f32.mrb[0].mxu0
        %v1558 = vadd.f32 %v1424, %v1557
        %v1559 = vpop.f32.mrb[0].mxu0
        %1560 = vmatprep.mubr.bf16.mxu0 0
        %1561 = vmatmul.mubr.bf16.gmra.mrb[0].mxu0 %v1496
        %v1562 = vpop.f32.mrb[0].mxu0
        %v1563 = vadd.f32 %v1429, %v1562
        %v1564 = vpop.f32.mrb[0].mxu0
        %v1565 = vpop.f32.mrb[0].mxu0
        %v1566 = vadd.f32 %v1434, %v1565
        %v1567 = vpop.f32.mrb[0].mxu0
        %1568 = vmatprep.mubr.bf16.mxu0 0
        %1569 = vmatmul.mubr.bf16.gmra.mrb[0].mxu0 %v1499
        %v1570 = vpop.f32.mrb[0].mxu0
        %v1571 = vadd.f32 %v1439, %v1570
        %v1572 = vpop.f32.mrb[0].mxu0
        %v1573 = vpop.f32.mrb[0].mxu0
        %v1574 = vadd.f32 %v1444, %v1573
        %v1575 = vpop.f32.mrb[0].mxu0
        %1576 = vmatprep.mubr.bf16.mxu0 0
        %1577 = vmatmul.mubr.bf16.gmra.mrb[0].mxu0 %v1502
        %v1578 = vpop.f32.mrb[0].mxu0
        %v1579 = vadd.f32 %v1449, %v1578
        %v1580 = vpop.f32.mrb[0].mxu0
        %v1581 = vpop.f32.mrb[0].mxu0
        %v1582 = vadd.f32 %v1454, %v1581
        %v1583 = vpop.f32.mrb[0].mxu0
        %1584 = vdwg.mxu0
        %v1585 = vmax.f32 %v1539, 0.0
        %v1586 = vmax.f32 %v1542, 0.0
        %v1587 = vmax.f32 %v1547, 0.0
        %v1588 = vmax.f32 %v1550, 0.0
        %v1589 = vmax.f32 %v1555, 0.0
        %v1590 = vmax.f32 %v1558, 0.0
        %v1591 = vmax.f32 %v1563, 0.0
        %v1592 = vmax.f32 %v1566, 0.0
        %v1593 = vmax.f32 %v1571, 0.0
        %v1594 = vmax.f32 %v1574, 0.0
        %v1595 = vmax.f32 %v1579, 0.0
        %v1596 = vmax.f32 %v1582, 0.0
        %s1597 = scalar_lea.vmem %s689, 16
        %v1598 = vld [vmem:[%s1597] sm:$0xf]
        %v1599 = vld [vmem:[%s1597 + $0x4] sm:$0xf]
        %v1600 = vld [vmem:[%s1597 + $0x8] sm:$0xf]
        %v1601 = vld [vmem:[%s1597 + $0xc] sm:$0xf]
        %v1602 = vpack.c.bf16 %v1586, %v1585
        %v1603 = vpack.c.bf16 %v1588, %v1587
        %v1604 = vpack.c.bf16 %v1590, %v1589
        %v1605 = vpack.c.bf16 %v1592, %v1591
        %v1606 = vpack.c.bf16 %v1594, %v1593
        %v1607 = vpack.c.bf16 %v1596, %v1595
        %s1608 = scalar_lea.vmem %s698, 32
        %v1609 = vld [vmem:[%s1608] sm:$0xff]
        %v1610 = vld [vmem:[%s1608 + $0x8] sm:$0xff]
        %v1611 = vld [vmem:[%s1608 + $0x10] sm:$0xff]
        %v1612 = vld [vmem:[%s1608 + $0x18] sm:$0xff]
        %1614 = vset.pattern.permute.xlu0 0
        %1615 = vperm.xlu0 %1614, %v1609
        %v1616 = vpop.permute.xlu0 %1615
        %1619 = vset.pattern.permute.xlu0 0
        %1620 = vperm.xlu0 %1619, %v1610
        %v1621 = vpop.permute.xlu0 %1620
        %1624 = vset.pattern.permute.xlu0 0
        %1625 = vperm.xlu0 %1624, %v1611
        %v1626 = vpop.permute.xlu0 %1625
        %1629 = vset.pattern.permute.xlu0 0
        %1630 = vperm.xlu0 %1629, %v1612
        %v1631 = vpop.permute.xlu0 %1630
        %v1637 = vunpack.c.l.b16 %v1598
        %v1638 = vunpack.c.l.b16 %v1599
        %v1639 = vunpack.c.l.b16 %v1600
        %v1640 = vunpack.c.l.b16 %v1601
        %v1641 = vpack.c.b16 %v1638, %v1637
        %v1642 = vpack.c.b16 %v1640, %v1639
        %v1644 = vsel %vm1120, %v1641, 0
        %v1647 = vsel %vm1120, %v1642, 0
        %1649 = vmatprep.subr.bf16.mxu0 0
        %1650 = vmatpush1.bf16.msra.mxu0 %v1602
        %1651 = vmatprep.subr.bf16.mxu0 0
        %1652 = vmatpush1.bf16.msra.mxu0 %v1603
        %1653 = vmatprep.subr.bf16.mxu0 0
        %1654 = vmatpush1.bf16.msra.mxu0 %v1604
        %1655 = vmatprep.subr.bf16.mxu0 0
        %1656 = vmatpush1.bf16.msra.mxu0 %v1605
        %1657 = vmatprep.subr.bf16.mxu0 0
        %1658 = vmatpush1.bf16.msra.mxu0 %v1606
        %1659 = vmatprep.subr.bf16.mxu0 0
        %1660 = vmatpush1.bf16.msra.mxu0 %v1607
        %1661 = vmatprep.subr.bf16.mxu0 0
        %1662 = vmatpush1.bf16.msra.mxu0 0
        %1663 = vmatprep.subr.bf16.mxu0 0
        %1664 = vmatpush1.bf16.msra.mxu0 0
        %1665 = vmatprep.subr.bf16.mxu0 0
        %1666 = vmatpush1.bf16.msra.mxu0 0
        %1667 = vmatprep.subr.bf16.mxu0 0
        %1668 = vmatpush1.bf16.msra.mxu0 0
        %1669 = vmatprep.subr.bf16.mxu0 0
        %1670 = vmatpush1.bf16.msra.mxu0 0
        %1671 = vmatprep.subr.bf16.mxu0 0
        %1672 = vmatpush1.bf16.msra.mxu0 0
        %1673 = vmatprep.subr.bf16.mxu0 0
        %1674 = vmatpush1.bf16.msra.mxu0 0
        %1675 = vmatprep.subr.bf16.mxu0 0
        %1676 = vmatpush1.bf16.msra.mxu0 0
        %1677 = vmatprep.subr.bf16.mxu0 0
        %1678 = vmatpush1.bf16.msra.mxu0 0
        %1679 = vmatprep.subr.bf16.mxu0 0
        %1680 = vmatpush1.bf16.msra.mxu0 0
        %1681 = vmatprep.mubr.bf16.mxu0 0
        %1682 = vmatmul.mubr.bf16.gmra.mrb[0].mxu0 %v1644
        %v1683 = vpop.f32.mrb[0].mxu0
        %v1684 = vadd.f32 %v1616, %v1683
        %v1685 = vpop.f32.mrb[0].mxu0
        %v1686 = vpop.f32.mrb[0].mxu0
        %v1687 = vadd.f32 %v1621, %v1686
        %v1688 = vpop.f32.mrb[0].mxu0
        %1689 = vmatprep.mubr.bf16.mxu0 0
        %1690 = vmatmul.mubr.bf16.gmra.mrb[0].mxu0 %v1647
        %v1691 = vpop.f32.mrb[0].mxu0
        %v1692 = vadd.f32 %v1626, %v1691
        %v1693 = vpop.f32.mrb[0].mxu0
        %v1694 = vpop.f32.mrb[0].mxu0
        %v1695 = vadd.f32 %v1631, %v1694
        %v1696 = vpop.f32.mrb[0].mxu0
        %1697 = vdwg.mxu0
        %v1698 = vtanh.pop %v1684
        %v1699 = vtanh.pop %v1687
        %v1700 = vmul.f32 %v1698, 1.9
        %v1701 = vmul.f32 %v1699, 1.9
        %v1702 = vmul.f32 %v1700, 1.442695
        %v1703 = vpow.pop %v1702
        %v1704 = vmul.f32 %v1701, 1.442695
        %v1705 = vpow.pop %v1704
        %v1706 = vmul.f32 %v1363, %v1703
        %v1707 = vmul.f32 %v1364, %v1705
        %v1708 = vadd.f32 %v1706, %v1692
        %v1709 = vadd.f32 %v1707, %v1695
        %v1710 = vadd.f32 %v1700, %v1701
        %v1711 = vrot.slane %v1710, 4
        %v1712 = vadd.f32 %v1710, %v1711
        %v1713 = vrot.slane %v1712, 2
        %v1714 = vadd.f32 %v1712, %v1713
        %v1715 = vrot.slane %v1714, 1
        %v1716 = vadd.f32 %v1714, %v1715
        %v1717 = vadd.f32 %v1195, %v1716
        %s1718 = scalar_lea.vmem %s707, 16
        %v1719 = vld [vmem:[%s1718] sm:$0xf]
        %v1720 = vld [vmem:[%s1718 + $0x4] sm:$0xf]
        %v1721 = vld [vmem:[%s1718 + $0x8] sm:$0xf]
        %v1722 = vld [vmem:[%s1718 + $0xc] sm:$0xf]
        %v1723 = vld [vmem:[#allocation2] sm:$0xff]
        %s1724 = scalar_lea.vmem %s716, 16
        %v1725 = vld [vmem:[%s1724] sm:$0xf]
        %v1726 = vld [vmem:[%s1724 + $0x4] sm:$0xf]
        %v1727 = vld [vmem:[%s1724 + $0x8] sm:$0xf]
        %v1728 = vld [vmem:[%s1724 + $0xc] sm:$0xf]
        %v1729 = vpack.c.bf16 %v1709, %v1708
        %v1734 = vunpack.c.l.b16 %v1725
        %v1735 = vunpack.c.l.b16 %v1726
        %v1736 = vunpack.c.l.b16 %v1727
        %v1737 = vunpack.c.l.b16 %v1728
        %v1738 = vpack.c.b16 %v1735, %v1734
        %v1739 = vpack.c.b16 %v1737, %v1736
        %v1741 = vsel %vm1216, %v1738, 0
        %v1744 = vsel %vm1216, %v1739, 0
        %1746 = vmatprep.subr.bf16.mxu0 0
        %1747 = vmatpush1.bf16.msra.mxu0 %v1729
        %1748 = vmatprep.subr.bf16.mxu0 0
        %1749 = vmatpush1.bf16.msra.mxu0 0
        %1750 = vmatprep.subr.bf16.mxu0 0
        %1751 = vmatpush1.bf16.msra.mxu0 0
        %1752 = vmatprep.subr.bf16.mxu0 0
        %1753 = vmatpush1.bf16.msra.mxu0 0
        %1754 = vmatprep.subr.bf16.mxu0 0
        %1755 = vmatpush1.bf16.msra.mxu0 0
        %1756 = vmatprep.subr.bf16.mxu0 0
        %1757 = vmatpush1.bf16.msra.mxu0 0
        %1758 = vmatprep.subr.bf16.mxu0 0
        %1759 = vmatpush1.bf16.msra.mxu0 0
        %1760 = vmatprep.subr.bf16.mxu0 0
        %1761 = vmatpush1.bf16.msra.mxu0 0
        %1762 = vmatprep.subr.bf16.mxu0 0
        %1763 = vmatpush1.bf16.msra.mxu0 0
        %1764 = vmatprep.subr.bf16.mxu0 0
        %1765 = vmatpush1.bf16.msra.mxu0 0
        %1766 = vmatprep.subr.bf16.mxu0 0
        %1767 = vmatpush1.bf16.msra.mxu0 0
        %1768 = vmatprep.subr.bf16.mxu0 0
        %1769 = vmatpush1.bf16.msra.mxu0 0
        %1770 = vmatprep.subr.bf16.mxu0 0
        %1771 = vmatpush1.bf16.msra.mxu0 0
        %1772 = vmatprep.subr.bf16.mxu0 0
        %1773 = vmatpush1.bf16.msra.mxu0 0
        %1774 = vmatprep.subr.bf16.mxu0 0
        %1775 = vmatpush1.bf16.msra.mxu0 0
        %1776 = vmatprep.subr.bf16.mxu0 0
        %1777 = vmatpush1.bf16.msra.mxu0 0
        %1778 = vmatprep.mubr.bf16.mxu0 0
        %1779 = vmatmul.mubr.bf16.gmra.mrb[0].mxu0 %v1741
        %v1780 = vpop.f32.mrb[0].mxu0
        %v1781 = vadd.f32 0.0, %v1780
        %v1782 = vpop.f32.mrb[0].mxu0
        %v1783 = vpop.f32.mrb[0].mxu0
        %v1784 = vadd.f32 0.0, %v1783
        %v1785 = vpop.f32.mrb[0].mxu0
        %1786 = vmatprep.mubr.bf16.mxu0 0
        %1787 = vmatmul.mubr.bf16.gmra.mrb[0].mxu0 %v1744
        %v1788 = vpop.f32.mrb[0].mxu0
        %v1789 = vadd.f32 0.0, %v1788
        %v1790 = vpop.f32.mrb[0].mxu0
        %v1791 = vpop.f32.mrb[0].mxu0
        %v1792 = vadd.f32 0.0, %v1791
        %v1793 = vpop.f32.mrb[0].mxu0
        %1794 = vdwg.mxu0
        %v1799 = vunpack.c.l.b16 %v1719
        %v1800 = vunpack.c.l.b16 %v1720
        %v1801 = vunpack.c.l.b16 %v1721
        %v1802 = vunpack.c.l.b16 %v1722
        %v1803 = vpack.c.b16 %v1800, %v1799
        %v1804 = vpack.c.b16 %v1802, %v1801
        %v1806 = vsel %vm1216, %v1803, 0
        %v1809 = vsel %vm1216, %v1804, 0
        %1811 = vmatprep.subr.bf16.mxu0 0
        %1812 = vmatpush1.bf16.msra.mxu0 %v1723
        %1813 = vmatprep.subr.bf16.mxu0 0
        %1814 = vmatpush1.bf16.msra.mxu0 0
        %1815 = vmatprep.subr.bf16.mxu0 0
        %1816 = vmatpush1.bf16.msra.mxu0 0
        %1817 = vmatprep.subr.bf16.mxu0 0
        %1818 = vmatpush1.bf16.msra.mxu0 0
        %1819 = vmatprep.subr.bf16.mxu0 0
        %1820 = vmatpush1.bf16.msra.mxu0 0
        %1821 = vmatprep.subr.bf16.mxu0 0
        %1822 = vmatpush1.bf16.msra.mxu0 0
        %1823 = vmatprep.subr.bf16.mxu0 0
        %1824 = vmatpush1.bf16.msra.mxu0 0
        %1825 = vmatprep.subr.bf16.mxu0 0
        %1826 = vmatpush1.bf16.msra.mxu0 0
        %1827 = vmatprep.subr.bf16.mxu0 0
        %1828 = vmatpush1.bf16.msra.mxu0 0
        %1829 = vmatprep.subr.bf16.mxu0 0
        %1830 = vmatpush1.bf16.msra.mxu0 0
        %1831 = vmatprep.subr.bf16.mxu0 0
        %1832 = vmatpush1.bf16.msra.mxu0 0
        %1833 = vmatprep.subr.bf16.mxu0 0
        %1834 = vmatpush1.bf16.msra.mxu0 0
        %1835 = vmatprep.subr.bf16.mxu0 0
        %1836 = vmatpush1.bf16.msra.mxu0 0
        %1837 = vmatprep.subr.bf16.mxu0 0
        %1838 = vmatpush1.bf16.msra.mxu0 0
        %1839 = vmatprep.subr.bf16.mxu0 0
        %1840 = vmatpush1.bf16.msra.mxu0 0
        %1841 = vmatprep.subr.bf16.mxu0 0
        %1842 = vmatpush1.bf16.msra.mxu0 0
        %1843 = vmatprep.mubr.bf16.mxu0 0
        %1844 = vmatmul.mubr.bf16.gmra.mrb[0].mxu0 %v1806
        %v1845 = vpop.f32.mrb[0].mxu0
        %v1846 = vadd.f32 %v1781, %v1845
        %v1847 = vpop.f32.mrb[0].mxu0
        %v1848 = vpop.f32.mrb[0].mxu0
        %v1849 = vadd.f32 %v1784, %v1848
        %v1850 = vpop.f32.mrb[0].mxu0
        %1851 = vmatprep.mubr.bf16.mxu0 0
        %1852 = vmatmul.mubr.bf16.gmra.mrb[0].mxu0 %v1809
        %v1853 = vpop.f32.mrb[0].mxu0
        %v1854 = vadd.f32 %v1789, %v1853
        %v1855 = vpop.f32.mrb[0].mxu0
        %v1856 = vpop.f32.mrb[0].mxu0
        %v1857 = vadd.f32 %v1792, %v1856
        %v1858 = vpop.f32.mrb[0].mxu0
        %1859 = vdwg.mxu0
        %s1860 = scalar_lea.vmem %s725, 32
        %v1861 = vld [vmem:[%s1860] sm:$0xff]
        %v1862 = vld [vmem:[%s1860 + $0x8] sm:$0xff]
        %v1863 = vld [vmem:[%s1860 + $0x10] sm:$0xff]
        %v1864 = vld [vmem:[%s1860 + $0x18] sm:$0xff]
        %1866 = vset.pattern.permute.xlu0 0
        %1867 = vperm.xlu0 %1866, %v1861
        %v1868 = vpop.permute.xlu0 %1867
        %1871 = vset.pattern.permute.xlu0 0
        %1872 = vperm.xlu0 %1871, %v1862
        %v1873 = vpop.permute.xlu0 %1872
        %1876 = vset.pattern.permute.xlu0 0
        %1877 = vperm.xlu0 %1876, %v1863
        %v1878 = vpop.permute.xlu0 %1877
        %1881 = vset.pattern.permute.xlu0 0
        %1882 = vperm.xlu0 %1881, %v1864
        %v1883 = vpop.permute.xlu0 %1882
        %v1885 = vadd.f32 %v1846, %v1868
        %v1886 = vadd.f32 %v1849, %v1873
        %v1887 = vadd.f32 %v1854, %v1878
        %v1888 = vadd.f32 %v1857, %v1883
        %v1889 = vpack.c.bf16 %v1886, %v1885
        %1890 = vst [vmem:[#allocation2] sm:$0xff] %v1889
        %s1891 = scalar_lea.vmem %s671, 96
        %v1892 = vld [vmem:[%s1891] sm:$0xf]
        %v1893 = vld [vmem:[%s1891 + $0x4] sm:$0xf]
        %v1894 = vld [vmem:[%s1891 + $0x8] sm:$0xf]
        %v1895 = vld [vmem:[%s1891 + $0xc] sm:$0xf]
        %v1896 = vld [vmem:[%s1891 + $0x10] sm:$0xf]
        %v1897 = vld [vmem:[%s1891 + $0x14] sm:$0xf]
        %v1898 = vld [vmem:[%s1891 + $0x18] sm:$0xf]
        %v1899 = vld [vmem:[%s1891 + $0x1c] sm:$0xf]
        %v1900 = vld [vmem:[%s1891 + $0x20] sm:$0xf]
        %v1901 = vld [vmem:[%s1891 + $0x24] sm:$0xf]
        %v1902 = vld [vmem:[%s1891 + $0x28] sm:$0xf]
        %v1903 = vld [vmem:[%s1891 + $0x2c] sm:$0xf]
        %v1904 = vld [vmem:[#allocation2] sm:$0xff]
        %v1905 = vld [vmem:[#allocation2 + $0x8] sm:$0xff]
        %v1906 = vld [vmem:[#allocation2 + $0x10] sm:$0xff]
        %s1907 = scalar_lea.vmem %s680, 192
        %v1908 = vld [vmem:[%s1907] sm:$0xff]
        %v1909 = vld [vmem:[%s1907 + $0x8] sm:$0xff]
        %v1910 = vld [vmem:[%s1907 + $0x10] sm:$0xff]
        %v1911 = vld [vmem:[%s1907 + $0x18] sm:$0xff]
        %v1912 = vld [vmem:[%s1907 + $0x20] sm:$0xff]
        %v1913 = vld [vmem:[%s1907 + $0x28] sm:$0xff]
        %v1914 = vld [vmem:[%s1907 + $0x30] sm:$0xff]
        %v1915 = vld [vmem:[%s1907 + $0x38] sm:$0xff]
        %v1916 = vld [vmem:[%s1907 + $0x40] sm:$0xff]
        %v1917 = vld [vmem:[%s1907 + $0x48] sm:$0xff]
        %v1918 = vld [vmem:[%s1907 + $0x50] sm:$0xff]
        %v1919 = vld [vmem:[%s1907 + $0x58] sm:$0xff]
        %1921 = vset.pattern.permute.xlu0 0
        %1922 = vperm.xlu0 %1921, %v1908
        %v1923 = vpop.permute.xlu0 %1922
        %1926 = vset.pattern.permute.xlu0 0
        %1927 = vperm.xlu0 %1926, %v1909
        %v1928 = vpop.permute.xlu0 %1927
        %1931 = vset.pattern.permute.xlu0 0
        %1932 = vperm.xlu0 %1931, %v1910
        %v1933 = vpop.permute.xlu0 %1932
        %1936 = vset.pattern.permute.xlu0 0
        %1937 = vperm.xlu0 %1936, %v1911
        %v1938 = vpop.permute.xlu0 %1937
        %1941 = vset.pattern.permute.xlu0 0
        %1942 = vperm.xlu0 %1941, %v1912
        %v1943 = vpop.permute.xlu0 %1942
        %1946 = vset.pattern.permute.xlu0 0
        %1947 = vperm.xlu0 %1946, %v1913
        %v1948 = vpop.permute.xlu0 %1947
        %1951 = vset.pattern.permute.xlu0 0
        %1952 = vperm.xlu0 %1951, %v1914
        %v1953 = vpop.permute.xlu0 %1952
        %1956 = vset.pattern.permute.xlu0 0
        %1957 = vperm.xlu0 %1956, %v1915
        %v1958 = vpop.permute.xlu0 %1957
        %1961 = vset.pattern.permute.xlu0 0
        %1962 = vperm.xlu0 %1961, %v1916
        %v1963 = vpop.permute.xlu0 %1962
        %1966 = vset.pattern.permute.xlu0 0
        %1967 = vperm.xlu0 %1966, %v1917
        %v1968 = vpop.permute.xlu0 %1967
        %1971 = vset.pattern.permute.xlu0 0
        %1972 = vperm.xlu0 %1971, %v1918
        %v1973 = vpop.permute.xlu0 %1972
        %1976 = vset.pattern.permute.xlu0 0
        %1977 = vperm.xlu0 %1976, %v1919
        %v1978 = vpop.permute.xlu0 %1977
        %v1992 = vunpack.c.l.b16 %v1892
        %v1993 = vunpack.c.l.b16 %v1893
        %v1994 = vunpack.c.l.b16 %v1894
        %v1995 = vunpack.c.l.b16 %v1895
        %v1996 = vunpack.c.l.b16 %v1896
        %v1997 = vunpack.c.l.b16 %v1897
        %v1998 = vunpack.c.l.b16 %v1898
        %v1999 = vunpack.c.l.b16 %v1899
        %v2000 = vunpack.c.l.b16 %v1900
        %v2001 = vunpack.c.l.b16 %v1901
        %v2002 = vunpack.c.l.b16 %v1902
        %v2003 = vunpack.c.l.b16 %v1903
        %v2004 = vpack.c.b16 %v1993, %v1992
        %v2005 = vpack.c.b16 %v1995, %v1994
        %v2006 = vpack.c.b16 %v1997, %v1996
        %v2007 = vpack.c.b16 %v1999, %v1998
        %v2008 = vpack.c.b16 %v2001, %v2000
        %v2009 = vpack.c.b16 %v2003, %v2002
        %v2011 = vsel %vm964, %v2004, 0
        %v2014 = vsel %vm964, %v2005, 0
        %v2017 = vsel %vm964, %v2006, 0
        %v2020 = vsel %vm964, %v2007, 0
        %v2023 = vsel %vm964, %v2008, 0
        %v2026 = vsel %vm964, %v2009, 0
        %2028 = vmatprep.subr.bf16.mxu0 0
        %2029 = vmatpush1.bf16.msra.mxu0 %v1904
        %2030 = vmatprep.subr.bf16.mxu0 0
        %2031 = vmatpush1.bf16.msra.mxu0 %v1905
        %2032 = vmatprep.subr.bf16.mxu0 0
        %2033 = vmatpush1.bf16.msra.mxu0 %v1906
        %2034 = vmatprep.subr.bf16.mxu0 0
        %2035 = vmatpush1.bf16.msra.mxu0 0
        %2036 = vmatprep.subr.bf16.mxu0 0
        %2037 = vmatpush1.bf16.msra.mxu0 0
        %2038 = vmatprep.subr.bf16.mxu0 0
        %2039 = vmatpush1.bf16.msra.mxu0 0
        %2040 = vmatprep.subr.bf16.mxu0 0
        %2041 = vmatpush1.bf16.msra.mxu0 0
        %2042 = vmatprep.subr.bf16.mxu0 0
        %2043 = vmatpush1.bf16.msra.mxu0 0
        %2044 = vmatprep.subr.bf16.mxu0 0
        %2045 = vmatpush1.bf16.msra.mxu0 0
        %2046 = vmatprep.subr.bf16.mxu0 0
        %2047 = vmatpush1.bf16.msra.mxu0 0
        %2048 = vmatprep.subr.bf16.mxu0 0
        %2049 = vmatpush1.bf16.msra.mxu0 0
        %2050 = vmatprep.subr.bf16.mxu0 0
        %2051 = vmatpush1.bf16.msra.mxu0 0
        %2052 = vmatprep.subr.bf16.mxu0 0
        %2053 = vmatpush1.bf16.msra.mxu0 0
        %2054 = vmatprep.subr.bf16.mxu0 0
        %2055 = vmatpush1.bf16.msra.mxu0 0
        %2056 = vmatprep.subr.bf16.mxu0 0
        %2057 = vmatpush1.bf16.msra.mxu0 0
        %2058 = vmatprep.subr.bf16.mxu0 0
        %2059 = vmatpush1.bf16.msra.mxu0 0
        %2060 = vmatprep.mubr.bf16.mxu0 0
        %2061 = vmatmul.mubr.bf16.gmra.mrb[0].mxu0 %v2011
        %v2062 = vpop.f32.mrb[0].mxu0
        %v2063 = vadd.f32 %v1923, %v2062
        %v2064 = vpop.f32.mrb[0].mxu0
        %v2065 = vpop.f32.mrb[0].mxu0
        %v2066 = vadd.f32 %v1928, %v2065
        %v2067 = vpop.f32.mrb[0].mxu0
        %2068 = vmatprep.mubr.bf16.mxu0 0
        %2069 = vmatmul.mubr.bf16.gmra.mrb[0].mxu0 %v2014
        %v2070 = vpop.f32.mrb[0].mxu0
        %v2071 = vadd.f32 %v1933, %v2070
        %v2072 = vpop.f32.mrb[0].mxu0
        %v2073 = vpop.f32.mrb[0].mxu0
        %v2074 = vadd.f32 %v1938, %v2073
        %v2075 = vpop.f32.mrb[0].mxu0
        %2076 = vmatprep.mubr.bf16.mxu0 0
        %2077 = vmatmul.mubr.bf16.gmra.mrb[0].mxu0 %v2017
        %v2078 = vpop.f32.mrb[0].mxu0
        %v2079 = vadd.f32 %v1943, %v2078
        %v2080 = vpop.f32.mrb[0].mxu0
        %v2081 = vpop.f32.mrb[0].mxu0
        %v2082 = vadd.f32 %v1948, %v2081
        %v2083 = vpop.f32.mrb[0].mxu0
        %2084 = vmatprep.mubr.bf16.mxu0 0
        %2085 = vmatmul.mubr.bf16.gmra.mrb[0].mxu0 %v2020
        %v2086 = vpop.f32.mrb[0].mxu0
        %v2087 = vadd.f32 %v1953, %v2086
        %v2088 = vpop.f32.mrb[0].mxu0
        %v2089 = vpop.f32.mrb[0].mxu0
        %v2090 = vadd.f32 %v1958, %v2089
        %v2091 = vpop.f32.mrb[0].mxu0
        %2092 = vmatprep.mubr.bf16.mxu0 0
        %2093 = vmatmul.mubr.bf16.gmra.mrb[0].mxu0 %v2023
        %v2094 = vpop.f32.mrb[0].mxu0
        %v2095 = vadd.f32 %v1963, %v2094
        %v2096 = vpop.f32.mrb[0].mxu0
        %v2097 = vpop.f32.mrb[0].mxu0
        %v2098 = vadd.f32 %v1968, %v2097
        %v2099 = vpop.f32.mrb[0].mxu0
        %2100 = vmatprep.mubr.bf16.mxu0 0
        %2101 = vmatmul.mubr.bf16.gmra.mrb[0].mxu0 %v2026
        %v2102 = vpop.f32.mrb[0].mxu0
        %v2103 = vadd.f32 %v1973, %v2102
        %v2104 = vpop.f32.mrb[0].mxu0
        %v2105 = vpop.f32.mrb[0].mxu0
        %v2106 = vadd.f32 %v1978, %v2105
        %v2107 = vpop.f32.mrb[0].mxu0
        %2108 = vdwg.mxu0
        %v2109 = vmax.f32 %v2063, 0.0
        %v2110 = vmax.f32 %v2066, 0.0
        %v2111 = vmax.f32 %v2071, 0.0
        %v2112 = vmax.f32 %v2074, 0.0
        %v2113 = vmax.f32 %v2079, 0.0
        %v2114 = vmax.f32 %v2082, 0.0
        %v2115 = vmax.f32 %v2087, 0.0
        %v2116 = vmax.f32 %v2090, 0.0
        %v2117 = vmax.f32 %v2095, 0.0
        %v2118 = vmax.f32 %v2098, 0.0
        %v2119 = vmax.f32 %v2103, 0.0
        %v2120 = vmax.f32 %v2106, 0.0
        %s2121 = scalar_lea.vmem %s689, 32
        %v2122 = vld [vmem:[%s2121] sm:$0xf]
        %v2123 = vld [vmem:[%s2121 + $0x4] sm:$0xf]
        %v2124 = vld [vmem:[%s2121 + $0x8] sm:$0xf]
        %v2125 = vld [vmem:[%s2121 + $0xc] sm:$0xf]
        %v2126 = vpack.c.bf16 %v2110, %v2109
        %v2127 = vpack.c.bf16 %v2112, %v2111
        %v2128 = vpack.c.bf16 %v2114, %v2113
        %v2129 = vpack.c.bf16 %v2116, %v2115
        %v2130 = vpack.c.bf16 %v2118, %v2117
        %v2131 = vpack.c.bf16 %v2120, %v2119
        %s2132 = scalar_lea.vmem %s698, 64
        %v2133 = vld [vmem:[%s2132] sm:$0xff]
        %v2134 = vld [vmem:[%s2132 + $0x8] sm:$0xff]
        %v2135 = vld [vmem:[%s2132 + $0x10] sm:$0xff]
        %v2136 = vld [vmem:[%s2132 + $0x18] sm:$0xff]
        %2138 = vset.pattern.permute.xlu0 0
        %2139 = vperm.xlu0 %2138, %v2133
        %v2140 = vpop.permute.xlu0 %2139
        %2143 = vset.pattern.permute.xlu0 0
        %2144 = vperm.xlu0 %2143, %v2134
        %v2145 = vpop.permute.xlu0 %2144
        %2148 = vset.pattern.permute.xlu0 0
        %2149 = vperm.xlu0 %2148, %v2135
        %v2150 = vpop.permute.xlu0 %2149
        %2153 = vset.pattern.permute.xlu0 0
        %2154 = vperm.xlu0 %2153, %v2136
        %v2155 = vpop.permute.xlu0 %2154
        %v2161 = vunpack.c.l.b16 %v2122
        %v2162 = vunpack.c.l.b16 %v2123
        %v2163 = vunpack.c.l.b16 %v2124
        %v2164 = vunpack.c.l.b16 %v2125
        %v2165 = vpack.c.b16 %v2162, %v2161
        %v2166 = vpack.c.b16 %v2164, %v2163
        %v2168 = vsel %vm1120, %v2165, 0
        %v2171 = vsel %vm1120, %v2166, 0
        %2173 = vmatprep.subr.bf16.mxu0 0
        %2174 = vmatpush1.bf16.msra.mxu0 %v2126
        %2175 = vmatprep.subr.bf16.mxu0 0
        %2176 = vmatpush1.bf16.msra.mxu0 %v2127
        %2177 = vmatprep.subr.bf16.mxu0 0
        %2178 = vmatpush1.bf16.msra.mxu0 %v2128
        %2179 = vmatprep.subr.bf16.mxu0 0
        %2180 = vmatpush1.bf16.msra.mxu0 %v2129
        %2181 = vmatprep.subr.bf16.mxu0 0
        %2182 = vmatpush1.bf16.msra.mxu0 %v2130
        %2183 = vmatprep.subr.bf16.mxu0 0
        %2184 = vmatpush1.bf16.msra.mxu0 %v2131
        %2185 = vmatprep.subr.bf16.mxu0 0
        %2186 = vmatpush1.bf16.msra.mxu0 0
        %2187 = vmatprep.subr.bf16.mxu0 0
        %2188 = vmatpush1.bf16.msra.mxu0 0
        %2189 = vmatprep.subr.bf16.mxu0 0
        %2190 = vmatpush1.bf16.msra.mxu0 0
        %2191 = vmatprep.subr.bf16.mxu0 0
        %2192 = vmatpush1.bf16.msra.mxu0 0
        %2193 = vmatprep.subr.bf16.mxu0 0
        %2194 = vmatpush1.bf16.msra.mxu0 0
        %2195 = vmatprep.subr.bf16.mxu0 0
        %2196 = vmatpush1.bf16.msra.mxu0 0
        %2197 = vmatprep.subr.bf16.mxu0 0
        %2198 = vmatpush1.bf16.msra.mxu0 0
        %2199 = vmatprep.subr.bf16.mxu0 0
        %2200 = vmatpush1.bf16.msra.mxu0 0
        %2201 = vmatprep.subr.bf16.mxu0 0
        %2202 = vmatpush1.bf16.msra.mxu0 0
        %2203 = vmatprep.subr.bf16.mxu0 0
        %2204 = vmatpush1.bf16.msra.mxu0 0
        %2205 = vmatprep.mubr.bf16.mxu0 0
        %2206 = vmatmul.mubr.bf16.gmra.mrb[0].mxu0 %v2168
        %v2207 = vpop.f32.mrb[0].mxu0
        %v2208 = vadd.f32 %v2140, %v2207
        %v2209 = vpop.f32.mrb[0].mxu0
        %v2210 = vpop.f32.mrb[0].mxu0
        %v2211 = vadd.f32 %v2145, %v2210
        %v2212 = vpop.f32.mrb[0].mxu0
        %2213 = vmatprep.mubr.bf16.mxu0 0
        %2214 = vmatmul.mubr.bf16.gmra.mrb[0].mxu0 %v2171
        %v2215 = vpop.f32.mrb[0].mxu0
        %v2216 = vadd.f32 %v2150, %v2215
        %v2217 = vpop.f32.mrb[0].mxu0
        %v2218 = vpop.f32.mrb[0].mxu0
        %v2219 = vadd.f32 %v2155, %v2218
        %v2220 = vpop.f32.mrb[0].mxu0
        %2221 = vdwg.mxu0
        %v2222 = vtanh.pop %v2208
        %v2223 = vtanh.pop %v2211
        %v2224 = vmul.f32 %v2222, 1.9
        %v2225 = vmul.f32 %v2223, 1.9
        %v2226 = vmul.f32 %v2224, 1.442695
        %v2227 = vpow.pop %v2226
        %v2228 = vmul.f32 %v2225, 1.442695
        %v2229 = vpow.pop %v2228
        %v2230 = vmul.f32 %v1887, %v2227
        %v2231 = vmul.f32 %v1888, %v2229
        %v2232 = vadd.f32 %v2230, %v2216
        %v2233 = vadd.f32 %v2231, %v2219
        %v2234 = vadd.f32 %v2224, %v2225
        %v2235 = vrot.slane %v2234, 4
        %v2236 = vadd.f32 %v2234, %v2235
        %v2237 = vrot.slane %v2236, 2
        %v2238 = vadd.f32 %v2236, %v2237
        %v2239 = vrot.slane %v2238, 1
        %v2240 = vadd.f32 %v2238, %v2239
        %v2241 = vadd.f32 %v1717, %v2240
        %s2242 = scalar_lea.vmem %s707, 32
        %v2243 = vld [vmem:[%s2242] sm:$0xf]
        %v2244 = vld [vmem:[%s2242 + $0x4] sm:$0xf]
        %v2245 = vld [vmem:[%s2242 + $0x8] sm:$0xf]
        %v2246 = vld [vmem:[%s2242 + $0xc] sm:$0xf]
        %v2247 = vld [vmem:[#allocation2] sm:$0xff]
        %s2248 = scalar_lea.vmem %s716, 32
        %v2249 = vld [vmem:[%s2248] sm:$0xf]
        %v2250 = vld [vmem:[%s2248 + $0x4] sm:$0xf]
        %v2251 = vld [vmem:[%s2248 + $0x8] sm:$0xf]
        %v2252 = vld [vmem:[%s2248 + $0xc] sm:$0xf]
        %v2253 = vpack.c.bf16 %v2233, %v2232
        %v2258 = vunpack.c.l.b16 %v2249
        %v2259 = vunpack.c.l.b16 %v2250
        %v2260 = vunpack.c.l.b16 %v2251
        %v2261 = vunpack.c.l.b16 %v2252
        %v2262 = vpack.c.b16 %v2259, %v2258
        %v2263 = vpack.c.b16 %v2261, %v2260
        %v2265 = vsel %vm1216, %v2262, 0
        %v2268 = vsel %vm1216, %v2263, 0
        %2270 = vmatprep.subr.bf16.mxu0 0
        %2271 = vmatpush1.bf16.msra.mxu0 %v2253
        %2272 = vmatprep.subr.bf16.mxu0 0
        %2273 = vmatpush1.bf16.msra.mxu0 0
        %2274 = vmatprep.subr.bf16.mxu0 0
        %2275 = vmatpush1.bf16.msra.mxu0 0
        %2276 = vmatprep.subr.bf16.mxu0 0
        %2277 = vmatpush1.bf16.msra.mxu0 0
        %2278 = vmatprep.subr.bf16.mxu0 0
        %2279 = vmatpush1.bf16.msra.mxu0 0
        %2280 = vmatprep.subr.bf16.mxu0 0
        %2281 = vmatpush1.bf16.msra.mxu0 0
        %2282 = vmatprep.subr.bf16.mxu0 0
        %2283 = vmatpush1.bf16.msra.mxu0 0
        %2284 = vmatprep.subr.bf16.mxu0 0
        %2285 = vmatpush1.bf16.msra.mxu0 0
        %2286 = vmatprep.subr.bf16.mxu0 0
        %2287 = vmatpush1.bf16.msra.mxu0 0
        %2288 = vmatprep.subr.bf16.mxu0 0
        %2289 = vmatpush1.bf16.msra.mxu0 0
        %2290 = vmatprep.subr.bf16.mxu0 0
        %2291 = vmatpush1.bf16.msra.mxu0 0
        %2292 = vmatprep.subr.bf16.mxu0 0
        %2293 = vmatpush1.bf16.msra.mxu0 0
        %2294 = vmatprep.subr.bf16.mxu0 0
        %2295 = vmatpush1.bf16.msra.mxu0 0
        %2296 = vmatprep.subr.bf16.mxu0 0
        %2297 = vmatpush1.bf16.msra.mxu0 0
        %2298 = vmatprep.subr.bf16.mxu0 0
        %2299 = vmatpush1.bf16.msra.mxu0 0
        %2300 = vmatprep.subr.bf16.mxu0 0
        %2301 = vmatpush1.bf16.msra.mxu0 0
        %2302 = vmatprep.mubr.bf16.mxu0 0
        %2303 = vmatmul.mubr.bf16.gmra.mrb[0].mxu0 %v2265
        %v2304 = vpop.f32.mrb[0].mxu0
        %v2305 = vadd.f32 0.0, %v2304
        %v2306 = vpop.f32.mrb[0].mxu0
        %v2307 = vpop.f32.mrb[0].mxu0
        %v2308 = vadd.f32 0.0, %v2307
        %v2309 = vpop.f32.mrb[0].mxu0
        %2310 = vmatprep.mubr.bf16.mxu0 0
        %2311 = vmatmul.mubr.bf16.gmra.mrb[0].mxu0 %v2268
        %v2312 = vpop.f32.mrb[0].mxu0
        %v2313 = vadd.f32 0.0, %v2312
        %v2314 = vpop.f32.mrb[0].mxu0
        %v2315 = vpop.f32.mrb[0].mxu0
        %v2316 = vadd.f32 0.0, %v2315
        %v2317 = vpop.f32.mrb[0].mxu0
        %2318 = vdwg.mxu0
        %v2323 = vunpack.c.l.b16 %v2243
        %v2324 = vunpack.c.l.b16 %v2244
        %v2325 = vunpack.c.l.b16 %v2245
        %v2326 = vunpack.c.l.b16 %v2246
        %v2327 = vpack.c.b16 %v2324, %v2323
        %v2328 = vpack.c.b16 %v2326, %v2325
        %v2330 = vsel %vm1216, %v2327, 0
        %v2333 = vsel %vm1216, %v2328, 0
        %2335 = vmatprep.subr.bf16.mxu0 0
        %2336 = vmatpush1.bf16.msra.mxu0 %v2247
        %2337 = vmatprep.subr.bf16.mxu0 0
        %2338 = vmatpush1.bf16.msra.mxu0 0
        %2339 = vmatprep.subr.bf16.mxu0 0
        %2340 = vmatpush1.bf16.msra.mxu0 0
        %2341 = vmatprep.subr.bf16.mxu0 0
        %2342 = vmatpush1.bf16.msra.mxu0 0
        %2343 = vmatprep.subr.bf16.mxu0 0
        %2344 = vmatpush1.bf16.msra.mxu0 0
        %2345 = vmatprep.subr.bf16.mxu0 0
        %2346 = vmatpush1.bf16.msra.mxu0 0
        %2347 = vmatprep.subr.bf16.mxu0 0
        %2348 = vmatpush1.bf16.msra.mxu0 0
        %2349 = vmatprep.subr.bf16.mxu0 0
        %2350 = vmatpush1.bf16.msra.mxu0 0
        %2351 = vmatprep.subr.bf16.mxu0 0
        %2352 = vmatpush1.bf16.msra.mxu0 0
        %2353 = vmatprep.subr.bf16.mxu0 0
        %2354 = vmatpush1.bf16.msra.mxu0 0
        %2355 = vmatprep.subr.bf16.mxu0 0
        %2356 = vmatpush1.bf16.msra.mxu0 0
        %2357 = vmatprep.subr.bf16.mxu0 0
        %2358 = vmatpush1.bf16.msra.mxu0 0
        %2359 = vmatprep.subr.bf16.mxu0 0
        %2360 = vmatpush1.bf16.msra.mxu0 0
        %2361 = vmatprep.subr.bf16.mxu0 0
        %2362 = vmatpush1.bf16.msra.mxu0 0
        %2363 = vmatprep.subr.bf16.mxu0 0
        %2364 = vmatpush1.bf16.msra.mxu0 0
        %2365 = vmatprep.subr.bf16.mxu0 0
        %2366 = vmatpush1.bf16.msra.mxu0 0
        %2367 = vmatprep.mubr.bf16.mxu0 0
        %2368 = vmatmul.mubr.bf16.gmra.mrb[0].mxu0 %v2330
        %v2369 = vpop.f32.mrb[0].mxu0
        %v2370 = vadd.f32 %v2305, %v2369
        %v2371 = vpop.f32.mrb[0].mxu0
        %v2372 = vpop.f32.mrb[0].mxu0
        %v2373 = vadd.f32 %v2308, %v2372
        %v2374 = vpop.f32.mrb[0].mxu0
        %2375 = vmatprep.mubr.bf16.mxu0 0
        %2376 = vmatmul.mubr.bf16.gmra.mrb[0].mxu0 %v2333
        %v2377 = vpop.f32.mrb[0].mxu0
        %v2378 = vadd.f32 %v2313, %v2377
        %v2379 = vpop.f32.mrb[0].mxu0
        %v2380 = vpop.f32.mrb[0].mxu0
        %v2381 = vadd.f32 %v2316, %v2380
        %v2382 = vpop.f32.mrb[0].mxu0
        %2383 = vdwg.mxu0
        %s2384 = scalar_lea.vmem %s725, 64
        %v2385 = vld [vmem:[%s2384] sm:$0xff]
        %v2386 = vld [vmem:[%s2384 + $0x8] sm:$0xff]
        %v2387 = vld [vmem:[%s2384 + $0x10] sm:$0xff]
        %v2388 = vld [vmem:[%s2384 + $0x18] sm:$0xff]
        %2390 = vset.pattern.permute.xlu0 0
        %2391 = vperm.xlu0 %2390, %v2385
        %v2392 = vpop.permute.xlu0 %2391
        %2395 = vset.pattern.permute.xlu0 0
        %2396 = vperm.xlu0 %2395, %v2386
        %v2397 = vpop.permute.xlu0 %2396
        %2400 = vset.pattern.permute.xlu0 0
        %2401 = vperm.xlu0 %2400, %v2387
        %v2402 = vpop.permute.xlu0 %2401
        %2405 = vset.pattern.permute.xlu0 0
        %2406 = vperm.xlu0 %2405, %v2388
        %v2407 = vpop.permute.xlu0 %2406
        %v2409 = vadd.f32 %v2370, %v2392
        %v2410 = vadd.f32 %v2373, %v2397
        %v2411 = vadd.f32 %v2378, %v2402
        %v2412 = vadd.f32 %v2381, %v2407
        %v2413 = vpack.c.bf16 %v2410, %v2409
        %2414 = vst [vmem:[#allocation2] sm:$0xff] %v2413
        %s2415 = scalar_lea.vmem %s671, 144
        %v2416 = vld [vmem:[%s2415] sm:$0xf]
        %v2417 = vld [vmem:[%s2415 + $0x4] sm:$0xf]
        %v2418 = vld [vmem:[%s2415 + $0x8] sm:$0xf]
        %v2419 = vld [vmem:[%s2415 + $0xc] sm:$0xf]
        %v2420 = vld [vmem:[%s2415 + $0x10] sm:$0xf]
        %v2421 = vld [vmem:[%s2415 + $0x14] sm:$0xf]
        %v2422 = vld [vmem:[%s2415 + $0x18] sm:$0xf]
        %v2423 = vld [vmem:[%s2415 + $0x1c] sm:$0xf]
        %v2424 = vld [vmem:[%s2415 + $0x20] sm:$0xf]
        %v2425 = vld [vmem:[%s2415 + $0x24] sm:$0xf]
        %v2426 = vld [vmem:[%s2415 + $0x28] sm:$0xf]
        %v2427 = vld [vmem:[%s2415 + $0x2c] sm:$0xf]
        %v2428 = vld [vmem:[#allocation2] sm:$0xff]
        %v2429 = vld [vmem:[#allocation2 + $0x8] sm:$0xff]
        %v2430 = vld [vmem:[#allocation2 + $0x10] sm:$0xff]
        %s2431 = scalar_lea.vmem %s680, 288
        %v2432 = vld [vmem:[%s2431] sm:$0xff]
        %v2433 = vld [vmem:[%s2431 + $0x8] sm:$0xff]
        %v2434 = vld [vmem:[%s2431 + $0x10] sm:$0xff]
        %v2435 = vld [vmem:[%s2431 + $0x18] sm:$0xff]
        %v2436 = vld [vmem:[%s2431 + $0x20] sm:$0xff]
        %v2437 = vld [vmem:[%s2431 + $0x28] sm:$0xff]
        %v2438 = vld [vmem:[%s2431 + $0x30] sm:$0xff]
        %v2439 = vld [vmem:[%s2431 + $0x38] sm:$0xff]
        %v2440 = vld [vmem:[%s2431 + $0x40] sm:$0xff]
        %v2441 = vld [vmem:[%s2431 + $0x48] sm:$0xff]
        %v2442 = vld [vmem:[%s2431 + $0x50] sm:$0xff]
        %v2443 = vld [vmem:[%s2431 + $0x58] sm:$0xff]
        %2445 = vset.pattern.permute.xlu0 0
        %2446 = vperm.xlu0 %2445, %v2432
        %v2447 = vpop.permute.xlu0 %2446
        %2450 = vset.pattern.permute.xlu0 0
        %2451 = vperm.xlu0 %2450, %v2433
        %v2452 = vpop.permute.xlu0 %2451
        %2455 = vset.pattern.permute.xlu0 0
        %2456 = vperm.xlu0 %2455, %v2434
        %v2457 = vpop.permute.xlu0 %2456
        %2460 = vset.pattern.permute.xlu0 0
        %2461 = vperm.xlu0 %2460, %v2435
        %v2462 = vpop.permute.xlu0 %2461
        %2465 = vset.pattern.permute.xlu0 0
        %2466 = vperm.xlu0 %2465, %v2436
        %v2467 = vpop.permute.xlu0 %2466
        %2470 = vset.pattern.permute.xlu0 0
        %2471 = vperm.xlu0 %2470, %v2437
        %v2472 = vpop.permute.xlu0 %2471
        %2475 = vset.pattern.permute.xlu0 0
        %2476 = vperm.xlu0 %2475, %v2438
        %v2477 = vpop.permute.xlu0 %2476
        %2480 = vset.pattern.permute.xlu0 0
        %2481 = vperm.xlu0 %2480, %v2439
        %v2482 = vpop.permute.xlu0 %2481
        %2485 = vset.pattern.permute.xlu0 0
        %2486 = vperm.xlu0 %2485, %v2440
        %v2487 = vpop.permute.xlu0 %2486
        %2490 = vset.pattern.permute.xlu0 0
        %2491 = vperm.xlu0 %2490, %v2441
        %v2492 = vpop.permute.xlu0 %2491
        %2495 = vset.pattern.permute.xlu0 0
        %2496 = vperm.xlu0 %2495, %v2442
        %v2497 = vpop.permute.xlu0 %2496
        %2500 = vset.pattern.permute.xlu0 0
        %2501 = vperm.xlu0 %2500, %v2443
        %v2502 = vpop.permute.xlu0 %2501
        %v2516 = vunpack.c.l.b16 %v2416
        %v2517 = vunpack.c.l.b16 %v2417
        %v2518 = vunpack.c.l.b16 %v2418
        %v2519 = vunpack.c.l.b16 %v2419
        %v2520 = vunpack.c.l.b16 %v2420
        %v2521 = vunpack.c.l.b16 %v2421
        %v2522 = vunpack.c.l.b16 %v2422
        %v2523 = vunpack.c.l.b16 %v2423
        %v2524 = vunpack.c.l.b16 %v2424
        %v2525 = vunpack.c.l.b16 %v2425
        %v2526 = vunpack.c.l.b16 %v2426
        %v2527 = vunpack.c.l.b16 %v2427
        %v2528 = vpack.c.b16 %v2517, %v2516
        %v2529 = vpack.c.b16 %v2519, %v2518
        %v2530 = vpack.c.b16 %v2521, %v2520
        %v2531 = vpack.c.b16 %v2523, %v2522
        %v2532 = vpack.c.b16 %v2525, %v2524
        %v2533 = vpack.c.b16 %v2527, %v2526
        %v2535 = vsel %vm964, %v2528, 0
        %v2538 = vsel %vm964, %v2529, 0
        %v2541 = vsel %vm964, %v2530, 0
        %v2544 = vsel %vm964, %v2531, 0
        %v2547 = vsel %vm964, %v2532, 0
        %v2550 = vsel %vm964, %v2533, 0
        %2552 = vmatprep.subr.bf16.mxu0 0
        %2553 = vmatpush1.bf16.msra.mxu0 %v2428
        %2554 = vmatprep.subr.bf16.mxu0 0
        %2555 = vmatpush1.bf16.msra.mxu0 %v2429
        %2556 = vmatprep.subr.bf16.mxu0 0
        %2557 = vmatpush1.bf16.msra.mxu0 %v2430
        %2558 = vmatprep.subr.bf16.mxu0 0
        %2559 = vmatpush1.bf16.msra.mxu0 0
        %2560 = vmatprep.subr.bf16.mxu0 0
        %2561 = vmatpush1.bf16.msra.mxu0 0
        %2562 = vmatprep.subr.bf16.mxu0 0
        %2563 = vmatpush1.bf16.msra.mxu0 0
        %2564 = vmatprep.subr.bf16.mxu0 0
        %2565 = vmatpush1.bf16.msra.mxu0 0
        %2566 = vmatprep.subr.bf16.mxu0 0
        %2567 = vmatpush1.bf16.msra.mxu0 0
        %2568 = vmatprep.subr.bf16.mxu0 0
        %2569 = vmatpush1.bf16.msra.mxu0 0
        %2570 = vmatprep.subr.bf16.mxu0 0
        %2571 = vmatpush1.bf16.msra.mxu0 0
        %2572 = vmatprep.subr.bf16.mxu0 0
        %2573 = vmatpush1.bf16.msra.mxu0 0
        %2574 = vmatprep.subr.bf16.mxu0 0
        %2575 = vmatpush1.bf16.msra.mxu0 0
        %2576 = vmatprep.subr.bf16.mxu0 0
        %2577 = vmatpush1.bf16.msra.mxu0 0
        %2578 = vmatprep.subr.bf16.mxu0 0
        %2579 = vmatpush1.bf16.msra.mxu0 0
        %2580 = vmatprep.subr.bf16.mxu0 0
        %2581 = vmatpush1.bf16.msra.mxu0 0
        %2582 = vmatprep.subr.bf16.mxu0 0
        %2583 = vmatpush1.bf16.msra.mxu0 0
        %2584 = vmatprep.mubr.bf16.mxu0 0
        %2585 = vmatmul.mubr.bf16.gmra.mrb[0].mxu0 %v2535
        %v2586 = vpop.f32.mrb[0].mxu0
        %v2587 = vadd.f32 %v2447, %v2586
        %v2588 = vpop.f32.mrb[0].mxu0
        %v2589 = vpop.f32.mrb[0].mxu0
        %v2590 = vadd.f32 %v2452, %v2589
        %v2591 = vpop.f32.mrb[0].mxu0
        %2592 = vmatprep.mubr.bf16.mxu0 0
        %2593 = vmatmul.mubr.bf16.gmra.mrb[0].mxu0 %v2538
        %v2594 = vpop.f32.mrb[0].mxu0
        %v2595 = vadd.f32 %v2457, %v2594
        %v2596 = vpop.f32.mrb[0].mxu0
        %v2597 = vpop.f32.mrb[0].mxu0
        %v2598 = vadd.f32 %v2462, %v2597
        %v2599 = vpop.f32.mrb[0].mxu0
        %2600 = vmatprep.mubr.bf16.mxu0 0
        %2601 = vmatmul.mubr.bf16.gmra.mrb[0].mxu0 %v2541
        %v2602 = vpop.f32.mrb[0].mxu0
        %v2603 = vadd.f32 %v2467, %v2602
        %v2604 = vpop.f32.mrb[0].mxu0
        %v2605 = vpop.f32.mrb[0].mxu0
        %v2606 = vadd.f32 %v2472, %v2605
        %v2607 = vpop.f32.mrb[0].mxu0
        %2608 = vmatprep.mubr.bf16.mxu0 0
        %2609 = vmatmul.mubr.bf16.gmra.mrb[0].mxu0 %v2544
        %v2610 = vpop.f32.mrb[0].mxu0
        %v2611 = vadd.f32 %v2477, %v2610
        %v2612 = vpop.f32.mrb[0].mxu0
        %v2613 = vpop.f32.mrb[0].mxu0
        %v2614 = vadd.f32 %v2482, %v2613
        %v2615 = vpop.f32.mrb[0].mxu0
        %2616 = vmatprep.mubr.bf16.mxu0 0
        %2617 = vmatmul.mubr.bf16.gmra.mrb[0].mxu0 %v2547
        %v2618 = vpop.f32.mrb[0].mxu0
        %v2619 = vadd.f32 %v2487, %v2618
        %v2620 = vpop.f32.mrb[0].mxu0
        %v2621 = vpop.f32.mrb[0].mxu0
        %v2622 = vadd.f32 %v2492, %v2621
        %v2623 = vpop.f32.mrb[0].mxu0
        %2624 = vmatprep.mubr.bf16.mxu0 0
        %2625 = vmatmul.mubr.bf16.gmra.mrb[0].mxu0 %v2550
        %v2626 = vpop.f32.mrb[0].mxu0
        %v2627 = vadd.f32 %v2497, %v2626
        %v2628 = vpop.f32.mrb[0].mxu0
        %v2629 = vpop.f32.mrb[0].mxu0
        %v2630 = vadd.f32 %v2502, %v2629
        %v2631 = vpop.f32.mrb[0].mxu0
        %2632 = vdwg.mxu0
        %v2633 = vmax.f32 %v2587, 0.0
        %v2634 = vmax.f32 %v2590, 0.0
        %v2635 = vmax.f32 %v2595, 0.0
        %v2636 = vmax.f32 %v2598, 0.0
        %v2637 = vmax.f32 %v2603, 0.0
        %v2638 = vmax.f32 %v2606, 0.0
        %v2639 = vmax.f32 %v2611, 0.0
        %v2640 = vmax.f32 %v2614, 0.0
        %v2641 = vmax.f32 %v2619, 0.0
        %v2642 = vmax.f32 %v2622, 0.0
        %v2643 = vmax.f32 %v2627, 0.0
        %v2644 = vmax.f32 %v2630, 0.0
        %s2645 = scalar_lea.vmem %s689, 48
        %v2646 = vld [vmem:[%s2645] sm:$0xf]
        %v2647 = vld [vmem:[%s2645 + $0x4] sm:$0xf]
        %v2648 = vld [vmem:[%s2645 + $0x8] sm:$0xf]
        %v2649 = vld [vmem:[%s2645 + $0xc] sm:$0xf]
        %v2650 = vpack.c.bf16 %v2634, %v2633
        %v2651 = vpack.c.bf16 %v2636, %v2635
        %v2652 = vpack.c.bf16 %v2638, %v2637
        %v2653 = vpack.c.bf16 %v2640, %v2639
        %v2654 = vpack.c.bf16 %v2642, %v2641
        %v2655 = vpack.c.bf16 %v2644, %v2643
        %s2656 = scalar_lea.vmem %s698, 96
        %v2657 = vld [vmem:[%s2656] sm:$0xff]
        %v2658 = vld [vmem:[%s2656 + $0x8] sm:$0xff]
        %v2659 = vld [vmem:[%s2656 + $0x10] sm:$0xff]
        %v2660 = vld [vmem:[%s2656 + $0x18] sm:$0xff]
        %2662 = vset.pattern.permute.xlu0 0
        %2663 = vperm.xlu0 %2662, %v2657
        %v2664 = vpop.permute.xlu0 %2663
        %2667 = vset.pattern.permute.xlu0 0
        %2668 = vperm.xlu0 %2667, %v2658
        %v2669 = vpop.permute.xlu0 %2668
        %2672 = vset.pattern.permute.xlu0 0
        %2673 = vperm.xlu0 %2672, %v2659
        %v2674 = vpop.permute.xlu0 %2673
        %2677 = vset.pattern.permute.xlu0 0
        %2678 = vperm.xlu0 %2677, %v2660
        %v2679 = vpop.permute.xlu0 %2678
        %v2685 = vunpack.c.l.b16 %v2646
        %v2686 = vunpack.c.l.b16 %v2647
        %v2687 = vunpack.c.l.b16 %v2648
        %v2688 = vunpack.c.l.b16 %v2649
        %v2689 = vpack.c.b16 %v2686, %v2685
        %v2690 = vpack.c.b16 %v2688, %v2687
        %v2692 = vsel %vm1120, %v2689, 0
        %v2695 = vsel %vm1120, %v2690, 0
        %2697 = vmatprep.subr.bf16.mxu0 0
        %2698 = vmatpush1.bf16.msra.mxu0 %v2650
        %2699 = vmatprep.subr.bf16.mxu0 0
        %2700 = vmatpush1.bf16.msra.mxu0 %v2651
        %2701 = vmatprep.subr.bf16.mxu0 0
        %2702 = vmatpush1.bf16.msra.mxu0 %v2652
        %2703 = vmatprep.subr.bf16.mxu0 0
        %2704 = vmatpush1.bf16.msra.mxu0 %v2653
        %2705 = vmatprep.subr.bf16.mxu0 0
        %2706 = vmatpush1.bf16.msra.mxu0 %v2654
        %2707 = vmatprep.subr.bf16.mxu0 0
        %2708 = vmatpush1.bf16.msra.mxu0 %v2655
        %2709 = vmatprep.subr.bf16.mxu0 0
        %2710 = vmatpush1.bf16.msra.mxu0 0
        %2711 = vmatprep.subr.bf16.mxu0 0
        %2712 = vmatpush1.bf16.msra.mxu0 0
        %2713 = vmatprep.subr.bf16.mxu0 0
        %2714 = vmatpush1.bf16.msra.mxu0 0
        %2715 = vmatprep.subr.bf16.mxu0 0
        %2716 = vmatpush1.bf16.msra.mxu0 0
        %2717 = vmatprep.subr.bf16.mxu0 0
        %2718 = vmatpush1.bf16.msra.mxu0 0
        %2719 = vmatprep.subr.bf16.mxu0 0
        %2720 = vmatpush1.bf16.msra.mxu0 0
        %2721 = vmatprep.subr.bf16.mxu0 0
        %2722 = vmatpush1.bf16.msra.mxu0 0
        %2723 = vmatprep.subr.bf16.mxu0 0
        %2724 = vmatpush1.bf16.msra.mxu0 0
        %2725 = vmatprep.subr.bf16.mxu0 0
        %2726 = vmatpush1.bf16.msra.mxu0 0
        %2727 = vmatprep.subr.bf16.mxu0 0
        %2728 = vmatpush1.bf16.msra.mxu0 0
        %2729 = vmatprep.mubr.bf16.mxu0 0
        %2730 = vmatmul.mubr.bf16.gmra.mrb[0].mxu0 %v2692
        %v2731 = vpop.f32.mrb[0].mxu0
        %v2732 = vadd.f32 %v2664, %v2731
        %v2733 = vpop.f32.mrb[0].mxu0
        %v2734 = vpop.f32.mrb[0].mxu0
        %v2735 = vadd.f32 %v2669, %v2734
        %v2736 = vpop.f32.mrb[0].mxu0
        %2737 = vmatprep.mubr.bf16.mxu0 0
        %2738 = vmatmul.mubr.bf16.gmra.mrb[0].mxu0 %v2695
        %v2739 = vpop.f32.mrb[0].mxu0
        %v2740 = vadd.f32 %v2674, %v2739
        %v2741 = vpop.f32.mrb[0].mxu0
        %v2742 = vpop.f32.mrb[0].mxu0
        %v2743 = vadd.f32 %v2679, %v2742
        %v2744 = vpop.f32.mrb[0].mxu0
        %2745 = vdwg.mxu0
        %v2746 = vtanh.pop %v2732
        %v2747 = vtanh.pop %v2735
        %v2748 = vmul.f32 %v2746, 1.9
        %v2749 = vmul.f32 %v2747, 1.9
        %v2750 = vmul.f32 %v2748, 1.442695
        %v2751 = vpow.pop %v2750
        %v2752 = vmul.f32 %v2749, 1.442695
        %v2753 = vpow.pop %v2752
        %v2754 = vmul.f32 %v2411, %v2751
        %v2755 = vmul.f32 %v2412, %v2753
        %v2756 = vadd.f32 %v2754, %v2740
        %v2757 = vadd.f32 %v2755, %v2743
        %v2758 = vadd.f32 %v2748, %v2749
        %v2759 = vrot.slane %v2758, 4
        %v2760 = vadd.f32 %v2758, %v2759
        %v2761 = vrot.slane %v2760, 2
        %v2762 = vadd.f32 %v2760, %v2761
        %v2763 = vrot.slane %v2762, 1
        %v2764 = vadd.f32 %v2762, %v2763
        %v2765 = vadd.f32 %v2241, %v2764
        %s2766 = scalar_lea.vmem %s707, 48
        %v2767 = vld [vmem:[%s2766] sm:$0xf]
        %v2768 = vld [vmem:[%s2766 + $0x4] sm:$0xf]
        %v2769 = vld [vmem:[%s2766 + $0x8] sm:$0xf]
        %v2770 = vld [vmem:[%s2766 + $0xc] sm:$0xf]
        %v2771 = vld [vmem:[#allocation2] sm:$0xff]
        %s2772 = scalar_lea.vmem %s716, 48
        %v2773 = vld [vmem:[%s2772] sm:$0xf]
        %v2774 = vld [vmem:[%s2772 + $0x4] sm:$0xf]
        %v2775 = vld [vmem:[%s2772 + $0x8] sm:$0xf]
        %v2776 = vld [vmem:[%s2772 + $0xc] sm:$0xf]
        %v2777 = vpack.c.bf16 %v2757, %v2756
        %v2782 = vunpack.c.l.b16 %v2773
        %v2783 = vunpack.c.l.b16 %v2774
        %v2784 = vunpack.c.l.b16 %v2775
        %v2785 = vunpack.c.l.b16 %v2776
        %v2786 = vpack.c.b16 %v2783, %v2782
        %v2787 = vpack.c.b16 %v2785, %v2784
        %v2789 = vsel %vm1216, %v2786, 0
        %v2792 = vsel %vm1216, %v2787, 0
        %2794 = vmatprep.subr.bf16.mxu0 0
        %2795 = vmatpush1.bf16.msra.mxu0 %v2777
        %2796 = vmatprep.subr.bf16.mxu0 0
        %2797 = vmatpush1.bf16.msra.mxu0 0
        %2798 = vmatprep.subr.bf16.mxu0 0
        %2799 = vmatpush1.bf16.msra.mxu0 0
        %2800 = vmatprep.subr.bf16.mxu0 0
        %2801 = vmatpush1.bf16.msra.mxu0 0
        %2802 = vmatprep.subr.bf16.mxu0 0
        %2803 = vmatpush1.bf16.msra.mxu0 0
        %2804 = vmatprep.subr.bf16.mxu0 0
        %2805 = vmatpush1.bf16.msra.mxu0 0
        %2806 = vmatprep.subr.bf16.mxu0 0
        %2807 = vmatpush1.bf16.msra.mxu0 0
        %2808 = vmatprep.subr.bf16.mxu0 0
        %2809 = vmatpush1.bf16.msra.mxu0 0
        %2810 = vmatprep.subr.bf16.mxu0 0
        %2811 = vmatpush1.bf16.msra.mxu0 0
        %2812 = vmatprep.subr.bf16.mxu0 0
        %2813 = vmatpush1.bf16.msra.mxu0 0
        %2814 = vmatprep.subr.bf16.mxu0 0
        %2815 = vmatpush1.bf16.msra.mxu0 0
        %2816 = vmatprep.subr.bf16.mxu0 0
        %2817 = vmatpush1.bf16.msra.mxu0 0
        %2818 = vmatprep.subr.bf16.mxu0 0
        %2819 = vmatpush1.bf16.msra.mxu0 0
        %2820 = vmatprep.subr.bf16.mxu0 0
        %2821 = vmatpush1.bf16.msra.mxu0 0
        %2822 = vmatprep.subr.bf16.mxu0 0
        %2823 = vmatpush1.bf16.msra.mxu0 0
        %2824 = vmatprep.subr.bf16.mxu0 0
        %2825 = vmatpush1.bf16.msra.mxu0 0
        %2826 = vmatprep.mubr.bf16.mxu0 0
        %2827 = vmatmul.mubr.bf16.gmra.mrb[0].mxu0 %v2789
        %v2828 = vpop.f32.mrb[0].mxu0
        %v2829 = vadd.f32 0.0, %v2828
        %v2830 = vpop.f32.mrb[0].mxu0
        %v2831 = vpop.f32.mrb[0].mxu0
        %v2832 = vadd.f32 0.0, %v2831
        %v2833 = vpop.f32.mrb[0].mxu0
        %2834 = vmatprep.mubr.bf16.mxu0 0
        %2835 = vmatmul.mubr.bf16.gmra.mrb[0].mxu0 %v2792
        %v2836 = vpop.f32.mrb[0].mxu0
        %v2837 = vadd.f32 0.0, %v2836
        %v2838 = vpop.f32.mrb[0].mxu0
        %v2839 = vpop.f32.mrb[0].mxu0
        %v2840 = vadd.f32 0.0, %v2839
        %v2841 = vpop.f32.mrb[0].mxu0
        %2842 = vdwg.mxu0
        %v2847 = vunpack.c.l.b16 %v2767
        %v2848 = vunpack.c.l.b16 %v2768
        %v2849 = vunpack.c.l.b16 %v2769
        %v2850 = vunpack.c.l.b16 %v2770
        %v2851 = vpack.c.b16 %v2848, %v2847
        %v2852 = vpack.c.b16 %v2850, %v2849
        %v2854 = vsel %vm1216, %v2851, 0
        %v2857 = vsel %vm1216, %v2852, 0
        %2859 = vmatprep.subr.bf16.mxu0 0
        %2860 = vmatpush1.bf16.msra.mxu0 %v2771
        %2861 = vmatprep.subr.bf16.mxu0 0
        %2862 = vmatpush1.bf16.msra.mxu0 0
        %2863 = vmatprep.subr.bf16.mxu0 0
        %2864 = vmatpush1.bf16.msra.mxu0 0
        %2865 = vmatprep.subr.bf16.mxu0 0
        %2866 = vmatpush1.bf16.msra.mxu0 0
        %2867 = vmatprep.subr.bf16.mxu0 0
        %2868 = vmatpush1.bf16.msra.mxu0 0
        %2869 = vmatprep.subr.bf16.mxu0 0
        %2870 = vmatpush1.bf16.msra.mxu0 0
        %2871 = vmatprep.subr.bf16.mxu0 0
        %2872 = vmatpush1.bf16.msra.mxu0 0
        %2873 = vmatprep.subr.bf16.mxu0 0
        %2874 = vmatpush1.bf16.msra.mxu0 0
        %2875 = vmatprep.subr.bf16.mxu0 0
        %2876 = vmatpush1.bf16.msra.mxu0 0
        %2877 = vmatprep.subr.bf16.mxu0 0
        %2878 = vmatpush1.bf16.msra.mxu0 0
        %2879 = vmatprep.subr.bf16.mxu0 0
        %2880 = vmatpush1.bf16.msra.mxu0 0
        %2881 = vmatprep.subr.bf16.mxu0 0
        %2882 = vmatpush1.bf16.msra.mxu0 0
        %2883 = vmatprep.subr.bf16.mxu0 0
        %2884 = vmatpush1.bf16.msra.mxu0 0
        %2885 = vmatprep.subr.bf16.mxu0 0
        %2886 = vmatpush1.bf16.msra.mxu0 0
        %2887 = vmatprep.subr.bf16.mxu0 0
        %2888 = vmatpush1.bf16.msra.mxu0 0
        %2889 = vmatprep.subr.bf16.mxu0 0
        %2890 = vmatpush1.bf16.msra.mxu0 0
        %2891 = vmatprep.mubr.bf16.mxu0 0
        %2892 = vmatmul.mubr.bf16.gmra.mrb[0].mxu0 %v2854
        %v2893 = vpop.f32.mrb[0].mxu0
        %v2894 = vadd.f32 %v2829, %v2893
        %v2895 = vpop.f32.mrb[0].mxu0
        %v2896 = vpop.f32.mrb[0].mxu0
        %v2897 = vadd.f32 %v2832, %v2896
        %v2898 = vpop.f32.mrb[0].mxu0
        %2899 = vmatprep.mubr.bf16.mxu0 0
        %2900 = vmatmul.mubr.bf16.gmra.mrb[0].mxu0 %v2857
        %v2901 = vpop.f32.mrb[0].mxu0
        %v2902 = vadd.f32 %v2837, %v2901
        %v2903 = vpop.f32.mrb[0].mxu0
        %v2904 = vpop.f32.mrb[0].mxu0
        %v2905 = vadd.f32 %v2840, %v2904
        %v2906 = vpop.f32.mrb[0].mxu0
        %2907 = vdwg.mxu0
        %s2908 = scalar_lea.vmem %s725, 96
        %v2909 = vld [vmem:[%s2908] sm:$0xff]
        %v2910 = vld [vmem:[%s2908 + $0x8] sm:$0xff]
        %v2911 = vld [vmem:[%s2908 + $0x10] sm:$0xff]
        %v2912 = vld [vmem:[%s2908 + $0x18] sm:$0xff]
        %2914 = vset.pattern.permute.xlu0 0
        %2915 = vperm.xlu0 %2914, %v2909
        %v2916 = vpop.permute.xlu0 %2915
        %2919 = vset.pattern.permute.xlu0 0
        %2920 = vperm.xlu0 %2919, %v2910
        %v2921 = vpop.permute.xlu0 %2920
        %2924 = vset.pattern.permute.xlu0 0
        %2925 = vperm.xlu0 %2924, %v2911
        %v2926 = vpop.permute.xlu0 %2925
        %2929 = vset.pattern.permute.xlu0 0
        %2930 = vperm.xlu0 %2929, %v2912
        %v2931 = vpop.permute.xlu0 %2930
        %v2933 = vadd.f32 %v2894, %v2916
        %v2934 = vadd.f32 %v2897, %v2921
        %v2935 = vadd.f32 %v2902, %v2926
        %v2936 = vadd.f32 %v2905, %v2931
        %p2937 = scmp.eq.s32.totalorder %s732, 1
        %s2938 = scalar_select %p2937, 0.03125, 0.0625
        %v2939 = vmul.f32 %v2933, %v2933
        %v2940 = vmul.f32 %v2934, %v2934
        %v2941 = vmul.f32 %v2935, %v2935
        %v2942 = vmul.f32 %v2936, %v2936
        %v2943 = vadd.f32 %v2939, %v2940
        %v2944 = vadd.f32 %v2943, %v2941
        %v2945 = vadd.f32 %v2944, %v2942
        %v2946 = vrot.slane %v2945, 4
        %v2947 = vadd.f32 %v2945, %v2946
        %v2948 = vrot.slane %v2947, 2
        %v2949 = vadd.f32 %v2947, %v2948
        %v2950 = vrot.slane %v2949, 1
        %v2951 = vadd.f32 %v2949, %v2950
        %v2952 = vmul.f32 %v2951, 0.5
        %v2953 = vsub.f32 %v2765, %v2952
        %v2954 = vstv %s2938
        %v2955 = vmul.f32 %v2953, %v2954
        %v2956 = vadd.f32 %v2955, -0.9189385
        %2957 = vst [vmem:[%s730] sm:$0x1] %v2956
        %p2958 = scmp.lt.s32.totalorder %s29, 1
        %s2959 = scalar_select %p2958, %s29, 1
        %s2960 = scalar_lea.vmem %s12, %s2959
        // Predicated region
        $region103: #{_forward.1} parent=97 // pred_check
          %p2961 = pneg %p351
        $region104: #{_forward.1} parent=97 // pred_check_branch
          %2963 = sbr.rel (%p2961) target = $region106
        $region105: #{_forward.1} parent=97 // pred_region
          _
        $region106: #{_forward.1} parent=97 // pred_fallthru
          _
      $region98: #{_forward.1} parent=5 // pred_fallthru
        _
      %p2964 = scmp.le.s32.totalorder 2, %s24
      // Predicated region
      $region107: #{_forward.1} parent=5 // pred_check
        %p2965 = pneg %p2964
      $region108: #{_forward.1} parent=5 // pred_check_branch
        %2967 = sbr.rel (%p2965) target = $region110
      $region109: #{_forward.1} parent=5 // pred_region
        %s2968 = ssub.s32 %s24, 2
        // Predicated region
        $region111: #{_forward.1} parent=109 // pred_check
          %p2969 = pneg %p357
        $region112: #{_forward.1} parent=109 // pred_check_branch
          %2971 = sbr.rel (%p2969) target = $region114
        $region113: #{_forward.1} parent=109 // pred_region
          %p2972 = scmp.lt.s32.totalorder %s30, 1
          %s2973 = scalar_select %p2972, %s30, 1
          %s2974 = scalar_lea.vmem %s12, %s2973
        $region114: #{_forward.1} parent=109 // pred_fallthru
          _
      $region110: #{_forward.1} parent=5 // pred_fallthru
        _
    $region6: #{_forward.1} parent=1 // loop_footer
      %s28 = sadd.s32 1, %s24
    $region7: #{_forward.1} parent=1 // loop_footer_branch
      %23 = sbr.rel target = $region3
    $region8: #{_forward.1} parent=1 // loop_exit
      _

</llo_original>
